<compile_context>
chip_gen: v7x
topology: tpu7x:2x2x1
jax: 0.10.0
libtpu: 0.0.40
codegen_flags: <defaults>
</compile_context>

<pallas_src>
import functools

import jax
import jax.numpy as jnp
import numpy as np
from jax.experimental import pallas as pl
from jax.experimental.pallas import tpu as pltpu


def stn3d_kernel(x_ref,                       # (1, TN, C)
                 w1_ref, b1_ref,              # (C,   64), (1,   64)
                 w2_ref, b2_ref,              # (64, 128), (1,  128)
                 w3_ref, b3_ref,              # (128,1024), (1, 1024)
                 w4_ref, b4_ref,              # (1024,512), (1,  512)
                 w5_ref, b5_ref,              # (512, 256), (1,  256)
                 w6_ref, b6_ref,              # (256,   9), (1,    9)
                 out_ref,                     # (1, 1, 9)
                 acc_ref,                     # (1, 1024)  running max scratch
                 *, n_points):
    n = pl.program_id(1)
    tn = x_ref.shape[1]

    @pl.when(n == 0)
    def _init():
        # Post-ReLU activations are >= 0, so 0 is a valid identity for the max.
        acc_ref[...] = jnp.zeros_like(acc_ref)

    x = x_ref[0]                                                     # (TN, C)

    # conv1..conv3 (kernel-size-1 Conv1d == channel matmul), BN folded, ReLU.
    h = jnp.dot(x.astype(w1_ref.dtype), w1_ref[...],
                preferred_element_type=jnp.float32) + b1_ref[...]
    h = jnp.maximum(h, 0.0)
    h = jnp.dot(h.astype(w2_ref.dtype), w2_ref[...],
                preferred_element_type=jnp.float32) + b2_ref[...]
    h = jnp.maximum(h, 0.0)
    h = jnp.dot(h.astype(w3_ref.dtype), w3_ref[...],
                preferred_element_type=jnp.float32) + b3_ref[...]
    h = jnp.maximum(h, 0.0)                                          # (TN, 1024)

    # Mask rows that are only padding (only generated when N % TN != 0).
    if n_points % tn != 0:
        row = n * tn + jax.lax.broadcasted_iota(jnp.int32, (tn, 1), 0)
        h = jnp.where(row < n_points, h, 0.0)

    # Running max over point tiles (sublane-axis reduce, lanes hold the 1024 ch).
    acc_ref[...] = jnp.maximum(acc_ref[...], jnp.max(h, axis=0, keepdims=True))

    # Tiny FC head executes exactly once, on the last point tile.
    @pl.when(n == pl.num_programs(1) - 1)
    def _head():
        g = acc_ref[...]                                             # (1, 1024)
        f = jnp.dot(g.astype(w4_ref.dtype), w4_ref[...],
                    preferred_element_type=jnp.float32) + b4_ref[...]
        f = jnp.maximum(f, 0.0)
        f = jnp.dot(f.astype(w5_ref.dtype), w5_ref[...],
                    preferred_element_type=jnp.float32) + b5_ref[...]
        f = jnp.maximum(f, 0.0)
        y = jnp.dot(f, w6_ref[...],
                    preferred_element_type=jnp.float32) + b6_ref[...]  # (1, 9)
        # Flattened 3x3 identity: ones at columns 0, 4, 8.
        col = jax.lax.broadcasted_iota(jnp.int32, (1, 9), 1)
        iden = jnp.where(col % 4 == 0, 1.0, 0.0).astype(y.dtype)
        out_ref[...] = (y + iden).reshape(1, 1, 9)


def _fold_bn(w, b, gamma, beta, mean, var, eps=1e-5):
    """Fold eval-mode BatchNorm1d into the preceding (out, in) weight & bias."""
    scale = gamma / jnp.sqrt(var + eps)
    return w * scale[:, None], (b - mean) * scale + beta


def make_params(channel, key):
    """Deterministic synthetic parameters matching STN3d.__init__ shapes."""
    ks = jax.random.split(key, 32)
    i = iter(range(32))

    def rnd(shape, scale=0.1):
        return scale * jax.random.normal(ks[next(i)], shape, dtype=jnp.float32)

    def bn(c):
        gamma = 1.0 + 0.05 * jax.random.normal(ks[next(i)], (c,), dtype=jnp.float32)
        beta = 0.05 * jax.random.normal(ks[next(i)], (c,), dtype=jnp.float32)
        mean = 0.05 * jax.random.normal(ks[next(i)], (c,), dtype=jnp.float32)
        var = 1.0 + 0.1 * jax.random.uniform(ks[next(i)], (c,), dtype=jnp.float32)
        return gamma, beta, mean, var

    p = {}
    # torch Conv1d weights are (out, in, 1); kernel-size-1 -> stored as (out, in).
    p["conv1_w"], p["conv1_b"] = rnd((64, channel)), rnd((64,))
    p["bn1"] = bn(64)
    p["conv2_w"], p["conv2_b"] = rnd((128, 64)), rnd((128,))
    p["bn2"] = bn(128)
    p["conv3_w"], p["conv3_b"] = rnd((1024, 128)), rnd((1024,))
    p["bn3"] = bn(1024)
    p["fc1_w"], p["fc1_b"] = rnd((512, 1024)), rnd((512,))
    p["bn4"] = bn(512)
    p["fc2_w"], p["fc2_b"] = rnd((256, 512)), rnd((256,))
    p["bn5"] = bn(256)
    p["fc3_w"], p["fc3_b"] = rnd((9, 256)), rnd((9,))
    return p


def stn3d_forward(x_bcn, params, *, tile_n=1024, use_bf16=False):
    """x_bcn: (B, channel, N) float32, same layout as the PyTorch module.

    tile_n: point-tile size (rounded down to what the input needs, kept a
            multiple of 8). ~1024 fits the default scoped VMEM on v5e/v6e/v7x;
            raise vmem_limit_bytes below if you sweep it larger.
    use_bf16: cast conv/fc weights (except fc3) to bf16 for native MXU rate
              (relaxes accuracy to ~1e-2).
    """
    B, C, N = x_bcn.shape
    # TODO(synk): keeping (B, N, C) puts C(=3..4) on the lane axis (lane-sparse
    # input vregs); accepted since conv1 is a negligible fraction of the FLOPs.
    x = jnp.transpose(x_bcn, (0, 2, 1)).astype(jnp.float32)          # (B, N, C)

    # Point tile: multiple of 8 (sublane), capped by tile_n.
    tn = max(8, min(int(tile_n), -(-N // 8) * 8))
    tn = (tn // 8) * 8
    n_pad = -(-N // tn) * tn
    if n_pad != N:
        x = jnp.pad(x, ((0, 0), (0, n_pad - N), (0, 0)))

    # Fold eval-mode BN into conv/fc weights; pre-transpose to (in, out).
    w1, b1 = _fold_bn(params["conv1_w"], params["conv1_b"], *params["bn1"])
    w2, b2 = _fold_bn(params["conv2_w"], params["conv2_b"], *params["bn2"])
    w3, b3 = _fold_bn(params["conv3_w"], params["conv3_b"], *params["bn3"])
    w4, b4 = _fold_bn(params["fc1_w"], params["fc1_b"], *params["bn4"])
    w5, b5 = _fold_bn(params["fc2_w"], params["fc2_b"], *params["bn5"])
    w6, b6 = params["fc3_w"], params["fc3_b"]

    wdt = jnp.bfloat16 if use_bf16 else jnp.float32
    weights = (w1.T.astype(wdt), b1.reshape(1, -1),
               w2.T.astype(wdt), b2.reshape(1, -1),
               w3.T.astype(wdt), b3.reshape(1, -1),
               w4.T.astype(wdt), b4.reshape(1, -1),
               w5.T.astype(wdt), b5.reshape(1, -1),
               w6.T.astype(jnp.float32), b6.reshape(1, -1))

    def const_spec(a):
        # Full-array block, constant index_map -> weight stays VMEM-resident.
        return pl.BlockSpec(a.shape, lambda b, n: (0,) * a.ndim)

    grid = (B, n_pad // tn)
    kernel = functools.partial(stn3d_kernel, n_points=N)

    out = pl.pallas_call(
        kernel,
        out_shape=jax.ShapeDtypeStruct((B, 1, 9), jnp.float32),
        grid_spec=pltpu.PrefetchScalarGridSpec(
            num_scalar_prefetch=0,
            grid=grid,
            in_specs=[pl.BlockSpec((1, tn, C), lambda b, n: (b, n, 0))]
                     + [const_spec(a) for a in weights],
            out_specs=pl.BlockSpec((1, 1, 9), lambda b, n: (b, 0, 0)),
            scratch_shapes=[pltpu.VMEM((1, 1024), jnp.float32)],
        ),
        compiler_params=pltpu.CompilerParams(
            dimension_semantics=("parallel", "arbitrary"),
            vmem_limit_bytes=48 * 1024 * 1024,   # < v7x 64 MiB physical; fine on v5e/v6e
        ),
    )(x, *weights)

    return out.reshape(B, 3, 3)


def stn3d_reference(x_bcn, params):
    """Pure-JAX reference with identical (eval-mode BN) semantics."""
    def bn(h, g, bta, m, v, eps=1e-5):
        return g * (h - m) / jnp.sqrt(v + eps) + bta

    x = jnp.transpose(x_bcn, (0, 2, 1)).astype(jnp.float32)          # (B, N, C)
    h = jax.nn.relu(bn(x @ params["conv1_w"].T + params["conv1_b"], *params["bn1"]))
    h = jax.nn.relu(bn(h @ params["conv2_w"].T + params["conv2_b"], *params["bn2"]))
    h = jax.nn.relu(bn(h @ params["conv3_w"].T + params["conv3_b"], *params["bn3"]))
    h = jnp.max(h, axis=1)                                           # (B, 1024)
    h = jax.nn.relu(bn(h @ params["fc1_w"].T + params["fc1_b"], *params["bn4"]))
    h = jax.nn.relu(bn(h @ params["fc2_w"].T + params["fc2_b"], *params["bn5"]))
    y = h @ params["fc3_w"].T + params["fc3_b"]
    y = y + jnp.array([1, 0, 0, 0, 1, 0, 0, 0, 1], jnp.float32)[None, :]
    return y.reshape(-1, 3, 3)


if __name__ == "__main__":
    key = jax.random.PRNGKey(0)
    kx1, kx2, kp = jax.random.split(key, 3)

    B, C = 2, 4
    params = make_params(C, kp)

    # Case 1: N multiple of the point tile -> exercises multi-tile running max.
    x1 = jax.random.normal(kx1, (B, C, 16), dtype=jnp.float32)       # (B, channel, N)
    out1 = stn3d_forward(x1, params, tile_n=8)
    jax.block_until_ready(out1)
    np.testing.assert_allclose(np.asarray(out1), np.asarray(stn3d_reference(x1, params)),
                               rtol=1e-4, atol=1e-4)
    assert out1.shape == (B, 3, 3)

    # Case 2: ragged N -> exercises padded-row masking.
    x2 = jax.random.normal(kx2, (B, C, 20), dtype=jnp.float32)
    out2 = stn3d_forward(x2, params, tile_n=8)
    jax.block_until_ready(out2)
    np.testing.assert_allclose(np.asarray(out2), np.asarray(stn3d_reference(x2, params)),
                               rtol=1e-4, atol=1e-4)

    print("KERNEL_OK")
</pallas_src>

<mosaic_0001>
module attributes {stable_mosaic.version = 11 : i64} {
  func.func @stn3d_kernel(%arg0: i32, %arg1: i32, %arg2: memref<1x8x4xf32, #tpu.memory_space<vmem>>, %arg3: memref<4x64xf32, #tpu.memory_space<vmem>>, %arg4: memref<1x64xf32, #tpu.memory_space<vmem>>, %arg5: memref<64x128xf32, #tpu.memory_space<vmem>>, %arg6: memref<1x128xf32, #tpu.memory_space<vmem>>, %arg7: memref<128x1024xf32, #tpu.memory_space<vmem>>, %arg8: memref<1x1024xf32, #tpu.memory_space<vmem>>, %arg9: memref<1024x512xf32, #tpu.memory_space<vmem>>, %arg10: memref<1x512xf32, #tpu.memory_space<vmem>>, %arg11: memref<512x256xf32, #tpu.memory_space<vmem>>, %arg12: memref<1x256xf32, #tpu.memory_space<vmem>>, %arg13: memref<256x9xf32, #tpu.memory_space<vmem>>, %arg14: memref<1x9xf32, #tpu.memory_space<vmem>>, %arg15: memref<1x1x9xf32, #tpu.memory_space<vmem>>, %arg16: memref<1x1024xf32, #tpu.memory_space<vmem>>) attributes {dimension_semantics = [#tpu.dimension_semantics<parallel>, #tpu.dimension_semantics<arbitrary>], iteration_bounds = array<i64: 2, 2>, scalar_prefetch = 0 : i64, scratch_operands = 1 : i64, tpu.core_type = #tpu.core_type<tc>, window_params = [{transform_indices = @transform_0, window_bounds = array<i64: 1, 8, 4>}, {pipeline_mode = #tpu.pipeline_mode<synchronous>, transform_indices = @transform_1, window_bounds = array<i64: 4, 64>}, {pipeline_mode = #tpu.pipeline_mode<synchronous>, transform_indices = @transform_2, window_bounds = array<i64: 1, 64>}, {pipeline_mode = #tpu.pipeline_mode<synchronous>, transform_indices = @transform_3, window_bounds = array<i64: 64, 128>}, {pipeline_mode = #tpu.pipeline_mode<synchronous>, transform_indices = @transform_4, window_bounds = array<i64: 1, 128>}, {pipeline_mode = #tpu.pipeline_mode<synchronous>, transform_indices = @transform_5, window_bounds = array<i64: 128, 1024>}, {pipeline_mode = #tpu.pipeline_mode<synchronous>, transform_indices = @transform_6, window_bounds = array<i64: 1, 1024>}, {pipeline_mode = #tpu.pipeline_mode<synchronous>, transform_indices = @transform_7, window_bounds = array<i64: 1024, 512>}, {pipeline_mode = #tpu.pipeline_mode<synchronous>, transform_indices = @transform_8, window_bounds = array<i64: 1, 512>}, {pipeline_mode = #tpu.pipeline_mode<synchronous>, transform_indices = @transform_9, window_bounds = array<i64: 512, 256>}, {pipeline_mode = #tpu.pipeline_mode<synchronous>, transform_indices = @transform_10, window_bounds = array<i64: 1, 256>}, {pipeline_mode = #tpu.pipeline_mode<synchronous>, transform_indices = @transform_11, window_bounds = array<i64: 256, 9>}, {pipeline_mode = #tpu.pipeline_mode<synchronous>, transform_indices = @transform_12, window_bounds = array<i64: 1, 9>}, {transform_indices = @transform_13, window_bounds = array<i64: 1, 1, 9>}]} {
    %c0_i32 = arith.constant 0 : i32
    %0 = arith.cmpi eq, %arg1, %c0_i32 : i32
    %1 = arith.extui %0 : i1 to i32
    %c0_i32_0 = arith.constant 0 : i32
    %2 = arith.cmpi ne, %1, %c0_i32_0 : i32
    scf.if %2 {
      %cst_26 = arith.constant 0.000000e+00 : f32
      %34 = vector.broadcast %cst_26 : f32 to vector<1x1024xf32>
      %c0_27 = arith.constant 0 : index
      %c0_28 = arith.constant 0 : index
      %35 = vector.load %arg16[%c0_27, %c0_28] : memref<1x1024xf32, #tpu.memory_space<vmem>>, vector<1x1024xf32>
      tpu.vector_store %arg16[%c0_27, %c0_28], %34 {strides = array<i32>} : memref<1x1024xf32, #tpu.memory_space<vmem>>, vector<1x1024xf32>,
    } else {
    }
    %c0 = arith.constant 0 : index
    %c0_1 = arith.constant 0 : index
    %c0_2 = arith.constant 0 : index
    %3 = vector.load %arg2[%c0, %c0_1, %c0_2] : memref<1x8x4xf32, #tpu.memory_space<vmem>>, vector<1x8x4xf32>
    %4 = vector.shape_cast %3 : vector<1x8x4xf32> to vector<8x4xf32>
    %c0_3 = arith.constant 0 : index
    %c0_4 = arith.constant 0 : index
    %5 = vector.load %arg3[%c0_3, %c0_4] : memref<4x64xf32, #tpu.memory_space<vmem>>, vector<4x64xf32>
    %cst = arith.constant dense<0.000000e+00> : vector<8x64xf32>
    %6 = tpu.matmul %4, %5, %cst {dimension_numbers = #tpu.dot_dimension_numbers<[1], [0], [0], [1], [0, 0, 1, 1], [], []>} : vector<8x4xf32>, vector<4x64xf32>, vector<8x64xf32> -> vector<8x64xf32>
    %c0_5 = arith.constant 0 : index
    %c0_6 = arith.constant 0 : index
    %7 = vector.load %arg4[%c0_5, %c0_6] : memref<1x64xf32, #tpu.memory_space<vmem>>, vector<1x64xf32>
    %8 = vector.broadcast %7 : vector<1x64xf32> to vector<8x64xf32>
    %9 = arith.addf %6, %8 : vector<8x64xf32>
    %cst_7 = arith.constant 0.000000e+00 : f32
    %10 = vector.broadcast %cst_7 : f32 to vector<8x64xf32>
    %11 = arith.maximumf %9, %10 : vector<8x64xf32>
    %c0_8 = arith.constant 0 : index
    %c0_9 = arith.constant 0 : index
    %12 = vector.load %arg5[%c0_8, %c0_9] : memref<64x128xf32, #tpu.memory_space<vmem>>, vector<64x128xf32>
    %cst_10 = arith.constant dense<0.000000e+00> : vector<8x128xf32>
    %13 = tpu.matmul %11, %12, %cst_10 {dimension_numbers = #tpu.dot_dimension_numbers<[1], [0], [0], [1], [0, 0, 1, 1], [], []>} : vector<8x64xf32>, vector<64x128xf32>, vector<8x128xf32> -> vector<8x128xf32>
    %c0_11 = arith.constant 0 : index
    %c0_12 = arith.constant 0 : index
    %14 = vector.load %arg6[%c0_11, %c0_12] : memref<1x128xf32, #tpu.memory_space<vmem>>, vector<1x128xf32>
    %15 = vector.broadcast %14 : vector<1x128xf32> to vector<8x128xf32>
    %16 = arith.addf %13, %15 : vector<8x128xf32>
    %cst_13 = arith.constant 0.000000e+00 : f32
    %17 = vector.broadcast %cst_13 : f32 to vector<8x128xf32>
    %18 = arith.maximumf %16, %17 : vector<8x128xf32>
    %c0_14 = arith.constant 0 : index
    %c0_15 = arith.constant 0 : index
    %19 = vector.load %arg7[%c0_14, %c0_15] : memref<128x1024xf32, #tpu.memory_space<vmem>>, vector<128x1024xf32>
    %cst_16 = arith.constant dense<0.000000e+00> : vector<8x1024xf32>
    %20 = tpu.matmul %18, %19, %cst_16 {dimension_numbers = #tpu.dot_dimension_numbers<[1], [0], [0], [1], [0, 0, 1, 1], [], []>} : vector<8x128xf32>, vector<128x1024xf32>, vector<8x1024xf32> -> vector<8x1024xf32>
    %c0_17 = arith.constant 0 : index
    %c0_18 = arith.constant 0 : index
    %21 = vector.load %arg8[%c0_17, %c0_18] : memref<1x1024xf32, #tpu.memory_space<vmem>>, vector<1x1024xf32>
    %22 = vector.broadcast %21 : vector<1x1024xf32> to vector<8x1024xf32>
    %23 = arith.addf %20, %22 : vector<8x1024xf32>
    %cst_19 = arith.constant 0.000000e+00 : f32
    %24 = vector.broadcast %cst_19 : f32 to vector<8x1024xf32>
    %25 = arith.maximumf %23, %24 : vector<8x1024xf32>
    %c0_20 = arith.constant 0 : index
    %c0_21 = arith.constant 0 : index
    %26 = vector.load %arg16[%c0_20, %c0_21] : memref<1x1024xf32, #tpu.memory_space<vmem>>, vector<1x1024xf32>
    %cst_22 = arith.constant dense<0xFF800000> : vector<1024xf32>
    %27 = vector.multi_reduction <maximumf>, %25, %cst_22 [0] : vector<8x1024xf32> to vector<1024xf32>
    %28 = vector.shape_cast %27 : vector<1024xf32> to vector<1x1024xf32>
    %29 = arith.maximumf %26, %28 : vector<1x1024xf32>
    %c0_23 = arith.constant 0 : index
    %c0_24 = arith.constant 0 : index
    %30 = vector.load %arg16[%c0_23, %c0_24] : memref<1x1024xf32, #tpu.memory_space<vmem>>, vector<1x1024xf32>
    tpu.vector_store %arg16[%c0_23, %c0_24], %29 {strides = array<i32>} : memref<1x1024xf32, #tpu.memory_space<vmem>>, vector<1x1024xf32>,
    %c1_i32 = arith.constant 1 : i32
    %31 = arith.cmpi eq, %arg1, %c1_i32 : i32
    %32 = arith.extui %31 : i1 to i32
    %c0_i32_25 = arith.constant 0 : i32
    %33 = arith.cmpi ne, %32, %c0_i32_25 : i32
    scf.if %33 {
      %c0_26 = arith.constant 0 : index
      %c0_27 = arith.constant 0 : index
      %34 = vector.load %arg16[%c0_26, %c0_27] : memref<1x1024xf32, #tpu.memory_space<vmem>>, vector<1x1024xf32>
      %c0_28 = arith.constant 0 : index
      %c0_29 = arith.constant 0 : index
      %35 = vector.load %arg9[%c0_28, %c0_29] : memref<1024x512xf32, #tpu.memory_space<vmem>>, vector<1024x512xf32>
      %cst_30 = arith.constant dense<0.000000e+00> : vector<1x512xf32>
      %36 = tpu.matmul %34, %35, %cst_30 {dimension_numbers = #tpu.dot_dimension_numbers<[1], [0], [0], [1], [0, 0, 1, 1], [], []>} : vector<1x1024xf32>, vector<1024x512xf32>, vector<1x512xf32> -> vector<1x512xf32>
      %c0_31 = arith.constant 0 : index
      %c0_32 = arith.constant 0 : index
      %37 = vector.load %arg10[%c0_31, %c0_32] : memref<1x512xf32, #tpu.memory_space<vmem>>, vector<1x512xf32>
      %38 = arith.addf %36, %37 : vector<1x512xf32>
      %cst_33 = arith.constant 0.000000e+00 : f32
      %39 = vector.broadcast %cst_33 : f32 to vector<1x512xf32>
      %40 = arith.maximumf %38, %39 : vector<1x512xf32>
      %c0_34 = arith.constant 0 : index
      %c0_35 = arith.constant 0 : index
      %41 = vector.load %arg11[%c0_34, %c0_35] : memref<512x256xf32, #tpu.memory_space<vmem>>, vector<512x256xf32>
      %cst_36 = arith.constant dense<0.000000e+00> : vector<1x256xf32>
      %42 = tpu.matmul %40, %41, %cst_36 {dimension_numbers = #tpu.dot_dimension_numbers<[1], [0], [0], [1], [0, 0, 1, 1], [], []>} : vector<1x512xf32>, vector<512x256xf32>, vector<1x256xf32> -> vector<1x256xf32>
      %c0_37 = arith.constant 0 : index
      %c0_38 = arith.constant 0 : index
      %43 = vector.load %arg12[%c0_37, %c0_38] : memref<1x256xf32, #tpu.memory_space<vmem>>, vector<1x256xf32>
      %44 = arith.addf %42, %43 : vector<1x256xf32>
      %cst_39 = arith.constant 0.000000e+00 : f32
      %45 = vector.broadcast %cst_39 : f32 to vector<1x256xf32>
      %46 = arith.maximumf %44, %45 : vector<1x256xf32>
      %c0_40 = arith.constant 0 : index
      %c0_41 = arith.constant 0 : index
      %47 = vector.load %arg13[%c0_40, %c0_41] : memref<256x9xf32, #tpu.memory_space<vmem>>, vector<256x9xf32>
      %cst_42 = arith.constant dense<0.000000e+00> : vector<1x9xf32>
      %48 = tpu.matmul %46, %47, %cst_42 {dimension_numbers = #tpu.dot_dimension_numbers<[1], [0], [0], [1], [0, 0, 1, 1], [], []>} : vector<1x256xf32>, vector<256x9xf32>, vector<1x9xf32> -> vector<1x9xf32>
      %c0_43 = arith.constant 0 : index
      %c0_44 = arith.constant 0 : index
      %49 = vector.load %arg14[%c0_43, %c0_44] : memref<1x9xf32, #tpu.memory_space<vmem>>, vector<1x9xf32>
      %50 = arith.addf %48, %49 : vector<1x9xf32>
      %51 = tpu.iota {dimensions = array<i32: 1>} : vector<1x9xi32>
      %c4_i32 = arith.constant 4 : i32
      %c0_i32_45 = arith.constant 0 : i32
      %52 = arith.cmpi eq, %c4_i32, %c0_i32_45 : i32
      %c1_i32_46 = arith.constant 1 : i32
      %53 = arith.select %52, %c1_i32_46, %c4_i32 : i32
      %54 = vector.broadcast %53 : i32 to vector<1x9xi32>
      %55 = arith.remsi %51, %54 : vector<1x9xi32>
      %c0_i32_47 = arith.constant 0 : i32
      %56 = vector.broadcast %c0_i32_47 : i32 to vector<1x9xi32>
      %57 = arith.cmpi ne, %55, %56 : vector<1x9xi32>
      %c0_i32_48 = arith.constant 0 : i32
      %58 = vector.broadcast %c0_i32_48 : i32 to vector<1x9xi32>
      %59 = arith.cmpi slt, %55, %58 : vector<1x9xi32>
      %c0_i32_49 = arith.constant 0 : i32
      %60 = arith.cmpi slt, %53, %c0_i32_49 : i32
      %61 = vector.broadcast %60 : i1 to vector<1x9xi1>
      %62 = vector.broadcast %61 : vector<1x9xi1> to vector<1x9xi1>
      %63 = arith.xori %59, %62 : vector<1x9xi1>
      %64 = arith.andi %63, %57 : vector<1x9xi1>
      %65 = vector.broadcast %53 : i32 to vector<1x9xi32>
      %66 = arith.addi %55, %65 : vector<1x9xi32>
      %67 = arith.select %64, %66, %55 : vector<1x9xi1>, vector<1x9xi32>
      %c0_i32_50 = arith.constant 0 : i32
      %68 = vector.broadcast %c0_i32_50 : i32 to vector<1x9xi32>
      %69 = arith.cmpi eq, %67, %68 : vector<1x9xi32>
      %cst_51 = arith.constant 1.000000e+00 : f32
      %cst_52 = arith.constant 0.000000e+00 : f32
      %70 = vector.broadcast %cst_51 : f32 to vector<1x9xf32>
      %71 = vector.broadcast %cst_52 : f32 to vector<1x9xf32>
      %72 = arith.select %69, %70, %71 : vector<1x9xi1>, vector<1x9xf32>
      %73 = arith.addf %50, %72 : vector<1x9xf32>
      %74 = vector.shape_cast %73 : vector<1x9xf32> to vector<1x1x9xf32>
      %c0_53 = arith.constant 0 : index
      %c0_54 = arith.constant 0 : index
      %c0_55 = arith.constant 0 : index
      %75 = vector.load %arg15[%c0_53, %c0_54, %c0_55] : memref<1x1x9xf32, #tpu.memory_space<vmem>>, vector<1x1x9xf32>
      tpu.vector_store %arg15[%c0_53, %c0_54, %c0_55], %74 {strides = array<i32>} : memref<1x1x9xf32, #tpu.memory_space<vmem>>, vector<1x1x9xf32>,
    } else {
    }
    return
  }
  func.func @transform_0(%arg0: i32, %arg1: i32) -> (i32, i32, i32) {
    %c0_i32 = arith.constant 0 : i32
    %c0_i32_0 = arith.constant 0 : i32
    return %arg0, %arg1, %c0_i32 : i32, i32, i32
  }
  func.func @transform_1(%arg0: i32, %arg1: i32) -> (i32, i32) {
    %c0_i32 = arith.constant 0 : i32
    %c0_i32_0 = arith.constant 0 : i32
    %c0_i32_1 = arith.constant 0 : i32
    return %c0_i32, %c0_i32_0 : i32, i32
  }
  func.func @transform_2(%arg0: i32, %arg1: i32) -> (i32, i32) {
    %c0_i32 = arith.constant 0 : i32
    %c0_i32_0 = arith.constant 0 : i32
    %c0_i32_1 = arith.constant 0 : i32
    return %c0_i32, %c0_i32_0 : i32, i32
  }
  func.func @transform_3(%arg0: i32, %arg1: i32) -> (i32, i32) {
    %c0_i32 = arith.constant 0 : i32
    %c0_i32_0 = arith.constant 0 : i32
    %c0_i32_1 = arith.constant 0 : i32
    return %c0_i32, %c0_i32_0 : i32, i32
  }
  func.func @transform_4(%arg0: i32, %arg1: i32) -> (i32, i32) {
    %c0_i32 = arith.constant 0 : i32
    %c0_i32_0 = arith.constant 0 : i32
    %c0_i32_1 = arith.constant 0 : i32
    return %c0_i32, %c0_i32_0 : i32, i32
  }
  func.func @transform_5(%arg0: i32, %arg1: i32) -> (i32, i32) {
    %c0_i32 = arith.constant 0 : i32
    %c0_i32_0 = arith.constant 0 : i32
    %c0_i32_1 = arith.constant 0 : i32
    return %c0_i32, %c0_i32_0 : i32, i32
  }
  func.func @transform_6(%arg0: i32, %arg1: i32) -> (i32, i32) {
    %c0_i32 = arith.constant 0 : i32
    %c0_i32_0 = arith.constant 0 : i32
    %c0_i32_1 = arith.constant 0 : i32
    return %c0_i32, %c0_i32_0 : i32, i32
  }
  func.func @transform_7(%arg0: i32, %arg1: i32) -> (i32, i32) {
    %c0_i32 = arith.constant 0 : i32
    %c0_i32_0 = arith.constant 0 : i32
    %c0_i32_1 = arith.constant 0 : i32
    return %c0_i32, %c0_i32_0 : i32, i32
  }
  func.func @transform_8(%arg0: i32, %arg1: i32) -> (i32, i32) {
    %c0_i32 = arith.constant 0 : i32
    %c0_i32_0 = arith.constant 0 : i32
    %c0_i32_1 = arith.constant 0 : i32
    return %c0_i32, %c0_i32_0 : i32, i32
  }
  func.func @transform_9(%arg0: i32, %arg1: i32) -> (i32, i32) {
    %c0_i32 = arith.constant 0 : i32
    %c0_i32_0 = arith.constant 0 : i32
    %c0_i32_1 = arith.constant 0 : i32
    return %c0_i32, %c0_i32_0 : i32, i32
  }
  func.func @transform_10(%arg0: i32, %arg1: i32) -> (i32, i32) {
    %c0_i32 = arith.constant 0 : i32
    %c0_i32_0 = arith.constant 0 : i32
    %c0_i32_1 = arith.constant 0 : i32
    return %c0_i32, %c0_i32_0 : i32, i32
  }
  func.func @transform_11(%arg0: i32, %arg1: i32) -> (i32, i32) {
    %c0_i32 = arith.constant 0 : i32
    %c0_i32_0 = arith.constant 0 : i32
    %c0_i32_1 = arith.constant 0 : i32
    return %c0_i32, %c0_i32_0 : i32, i32
  }
  func.func @transform_12(%arg0: i32, %arg1: i32) -> (i32, i32) {
    %c0_i32 = arith.constant 0 : i32
    %c0_i32_0 = arith.constant 0 : i32
    %c0_i32_1 = arith.constant 0 : i32
    return %c0_i32, %c0_i32_0 : i32, i32
  }
  func.func @transform_13(%arg0: i32, %arg1: i32) -> (i32, i32, i32) {
    %c0_i32 = arith.constant 0 : i32
    %c0_i32_0 = arith.constant 0 : i32
    %c0_i32_1 = arith.constant 0 : i32
    return %arg0, %c0_i32, %c0_i32_0 : i32, i32, i32
  }
}

</mosaic_0001>

<llo_original>
// kernel: tpu_custom_call.1
$region0: #{tpu_custom_call.1}
  #allocation0 [shape = 'u32[]', space=smem, size = 0x4, offset = 0x4, fixed_abs, tag = 'smem constant byte address 0x4 - core index']
  #allocation1 [shape = 'u32[144,128]{1,0:T(1,128)}', space=vmem, size = 0x12000, scoped, tag = 'internal scratch']
  #allocation2 [shape = 'f32[1,1024]{1,0:T(1,128)}', space=vmem, size = 0x1000, scoped, tag = 'scratch operand']
  %s0 = inlined_call_operand.vmem [shape: f32[2,16,4], index: 0, kind: input, shape index: {}]
  %s1 = inlined_call_operand.hbm [shape: f32[4,64], index: 1, kind: input, shape index: {}]
  %s2 = inlined_call_operand.hbm [shape: f32[1,64], index: 2, kind: input, shape index: {}]
  %s3 = inlined_call_operand.hbm [shape: f32[64,128], index: 3, kind: input, shape index: {}]
  %s4 = inlined_call_operand.hbm [shape: f32[1,128], index: 4, kind: input, shape index: {}]
  %s5 = inlined_call_operand.hbm [shape: f32[128,1024], index: 5, kind: input, shape index: {}]
  %s6 = inlined_call_operand.hbm [shape: f32[1,1024], index: 6, kind: input, shape index: {}]
  %s7 = inlined_call_operand.hbm [shape: f32[1024,512], index: 7, kind: input, shape index: {}]
  %s8 = inlined_call_operand.hbm [shape: f32[1,512], index: 8, kind: input, shape index: {}]
  %s9 = inlined_call_operand.hbm [shape: f32[512,256], index: 9, kind: input, shape index: {}]
  %s10 = inlined_call_operand.hbm [shape: f32[1,256], index: 10, kind: input, shape index: {}]
  %s11 = inlined_call_operand.vmem [shape: f32[256,9], index: 11, kind: input, shape index: {}]
  %s12 = inlined_call_operand.hbm [shape: f32[1,9], index: 12, kind: input, shape index: {}]
  %s13 = inlined_call_operand.hbm [shape: f32[2,1,9], index: 13, kind: output, shape index: {}]
  %s14 = sld [smem:[#allocation0]]
  $region137: #{tpu_custom_call.1} parent=0
    _
  %s16 = ssub.s32 1, %s14
  %s17 = scalar_select 0, %s16, %s14
  $region1: #{tpu_custom_call.1} parent=0
    #allocation3 [shape = 'u8[2048]{0}', space=vmem, size = 0x800, scoped, tag = 'input window, operand 1, single buffered']
    #allocation4 [shape = 's32[2]{0}', space=sflag, size = 0x8, scoped, tag = 'scoped memory for tpu_custom_call.1']
    #allocation5 [shape = 's32[2]{0}', space=sflag, size = 0x8, scoped, tag = 'scoped memory for tpu_custom_call.1']
    #allocation6 [shape = 'u8[512]{0}', space=vmem, size = 0x400, scoped, tag = 'input window, operand 2, single buffered']
    #allocation7 [shape = 's32[1]{0}', space=sflag, size = 0x4, scoped, tag = 'scoped memory for tpu_custom_call.1']
    #allocation8 [shape = 'u8[32768]{0}', space=vmem, size = 0x8000, scoped, tag = 'input window, operand 3, single buffered']
    #allocation9 [shape = 'u8[512]{0}', space=vmem, size = 0x400, scoped, tag = 'input window, operand 4, single buffered']
    #allocation10 [shape = 's32[1]{0}', space=sflag, size = 0x4, scoped, tag = 'scoped memory for tpu_custom_call.1']
    #allocation11 [shape = 'u8[524288]{0}', space=vmem, size = 0x80000, scoped, tag = 'input window, operand 5, single buffered']
    #allocation12 [shape = 'u8[4096]{0}', space=vmem, size = 0x1000, scoped, tag = 'input window, operand 6, single buffered']
    #allocation13 [shape = 's32[1]{0}', space=sflag, size = 0x4, scoped, tag = 'scoped memory for tpu_custom_call.1']
    #allocation14 [shape = 'u8[2097152]{0}', space=vmem, size = 0x200000, scoped, tag = 'input window, operand 7, single buffered']
    #allocation15 [shape = 'u8[2048]{0}', space=vmem, size = 0x800, scoped, tag = 'input window, operand 8, single buffered']
    #allocation16 [shape = 's32[1]{0}', space=sflag, size = 0x4, scoped, tag = 'scoped memory for tpu_custom_call.1']
    #allocation17 [shape = 'u8[524288]{0}', space=vmem, size = 0x80000, scoped, tag = 'input window, operand 9, single buffered']
    #allocation18 [shape = 'u8[1024]{0}', space=vmem, size = 0x400, scoped, tag = 'input window, operand 10, single buffered']
    #allocation19 [shape = 's32[1]{0}', space=sflag, size = 0x4, scoped, tag = 'scoped memory for tpu_custom_call.1']
    #allocation20 [shape = 'u8[512]{0}', space=vmem, size = 0x400, scoped, tag = 'input window, operand 12, single buffered']
    #allocation21 [shape = 'u8[1024]{0}', space=vmem, size = 0x400, scoped, tag = 'output window, operand 0']
    %18 = vsyncpa [#allocation4], 0
    %19 = vsyncpa [#allocation7], 0
    %20 = vsyncpa [#allocation10], 0
    %21 = vsyncpa [#allocation13], 0
    %22 = vsyncpa [#allocation16], 0
    %23 = vsyncpa [#allocation19], 0
    %24 = vsyncpa [#allocation5], 0
    %s25 = scalar_lea.sflag [#allocation5], 1
    %26 = vsyncpa %s25, 0
    loop: start=0, step=1, limit=6
    $region2: #{tpu_custom_call.1} parent=1 // loop_pre_header
      _
    $region3: #{tpu_custom_call.1} parent=1 // loop_header
      %s28 = sphi 0, %s32
      %p29 = scmp.ge.s32.totalorder %s28, 6
      %s35 = sphi 0, %s47
      %s36 = sphi 0, %s43
      %s37 = sphi 0, %s35
      %s38 = sphi 0, %s36
      %s39 = sphi 0, %s37
      %s40 = sphi 0, %s38
      %s52 = sphi 0, %s54
      %s55 = sphi 0, %s52
      %s56 = sphi 0, %s55
      %s72 = sphi 0, %s56
      %s76 = sphi 0, %s76
      %s78 = sphi 0, %s76
      %s79 = sphi 0, %s78
      %s93 = sphi 0, %s79
      %s97 = sphi 0, %s97
      %s99 = sphi 0, %s97
      %s100 = sphi 0, %s99
      %s114 = sphi 0, %s100
      %s118 = sphi 0, %s118
      %s120 = sphi 0, %s118
      %s121 = sphi 0, %s120
      %s135 = sphi 0, %s121
      %s139 = sphi 0, %s139
      %s141 = sphi 0, %s139
      %s142 = sphi 0, %s141
      %s156 = sphi 0, %s142
      %s160 = sphi 0, %s160
      %s162 = sphi 0, %s160
      %s163 = sphi 0, %s162
      %s177 = sphi 0, %s163
      %s181 = sphi 0, %s181
      %s183 = sphi 0, %s181
      %s184 = sphi 0, %s183
      %s198 = sphi 0, %s184
      %s202 = sphi 0, %s202
      %s204 = sphi 0, %s202
      %s205 = sphi 0, %s204
      %s219 = sphi 0, %s205
      %s223 = sphi 0, %s223
      %s225 = sphi 0, %s223
      %s226 = sphi 0, %s225
      %s240 = sphi 0, %s226
      %s244 = sphi 0, %s244
      %s246 = sphi 0, %s244
      %s247 = sphi 0, %s246
      %s261 = sphi 0, %s247
      %s265 = sphi 0, %s265
      %s267 = sphi 0, %s265
      %s268 = sphi 0, %s267
      %s282 = sphi 0, %s268
      %s286 = sphi 0, %s286
      %s288 = sphi 0, %s286
      %s289 = sphi 0, %s288
      %s303 = sphi 0, %s289
      %s307 = sphi 0, %s307
      %s309 = sphi 0, %s307
      %s310 = sphi 0, %s309
      %s324 = sphi 0, %s310
      %s330 = sphi 0, %s332
      %s333 = sphi 0, %s330
      %s334 = sphi 0, %s333
      %s350 = sphi 0, %s334
    $region4: #{tpu_custom_call.1} parent=1 // loop_header_branch
      %31 = sbr.rel (%p29) target = $region8
    $region5: #{tpu_custom_call.1} parent=1 // loop_body
      %s33 = ssub.s32 %s28, 1
      %s34 = ssub.s32 %s28, 2
      %s41 = sadd.s32 1, %s36
      %p42 = scmp.ge.s32.totalorder %s41, 2
      %s43 = scalar_select %p42, 0, %s41
      %s44 = sadd.s32 1, %s35
      %s45 = scalar_select %p42, %s44, %s35
      %p46 = scmp.ge.s32.totalorder %s45, 2
      %s47 = scalar_select %p46, 0, %s45
      %s48 = ssub.s32 %s35, %s47
      %s49 = ssub.s32 %s36, %s43
      %s50 = sor.u32 %s48, %s49
      %p51 = scmp.eq.s32.totalorder %s50, 0
      %s53 = sadd.s32 %s52, 1
      %s54 = scalar_select %p51, %s52, %s53
      %p57 = pneg %p51
      %p58 = scmp.eq.s32.totalorder %s28, 3
      %p59 = por %p57, %p58
      %p60 = scmp.ne.s32.totalorder %s52, %s55
      %p61 = scmp.eq.s32.totalorder %s28, 0
      %p62 = por %p60, %p61
      %p63 = scmp.ne.s32.totalorder %s52, %s55
      %p64 = scmp.eq.s32.totalorder %s33, 3
      %p65 = por %p63, %p64
      %p66 = scmp.ne.s32.totalorder %s55, %s56
      %p67 = scmp.eq.s32.totalorder %s33, 0
      %p68 = por %p66, %p67
      %p69 = scmp.ne.s32.totalorder %s55, %s56
      %p70 = scmp.eq.s32.totalorder %s34, 3
      %p71 = por %p69, %p70
      %p73 = scmp.ne.s32.totalorder %s56, %s72
      %p74 = scmp.eq.s32.totalorder %s34, 0
      %p75 = por %p73, %p74
      %s77 = sadd.s32 %s76, 1
      %p80 = scmp.eq.s32.totalorder %s28, 3
      %p81 = scmp.ne.s32.totalorder %s76, %s78
      %p82 = scmp.eq.s32.totalorder %s28, 0
      %p83 = por %p81, %p82
      %p84 = scmp.ne.s32.totalorder %s76, %s78
      %p85 = scmp.eq.s32.totalorder %s33, 3
      %p86 = por %p84, %p85
      %p87 = scmp.ne.s32.totalorder %s78, %s79
      %p88 = scmp.eq.s32.totalorder %s33, 0
      %p89 = por %p87, %p88
      %p90 = scmp.ne.s32.totalorder %s78, %s79
      %p91 = scmp.eq.s32.totalorder %s34, 3
      %p92 = por %p90, %p91
      %p94 = scmp.ne.s32.totalorder %s79, %s93
      %p95 = scmp.eq.s32.totalorder %s34, 0
      %p96 = por %p94, %p95
      %s98 = sadd.s32 %s97, 1
      %p101 = scmp.eq.s32.totalorder %s28, 3
      %p102 = scmp.ne.s32.totalorder %s97, %s99
      %p103 = scmp.eq.s32.totalorder %s28, 0
      %p104 = por %p102, %p103
      %p105 = scmp.ne.s32.totalorder %s97, %s99
      %p106 = scmp.eq.s32.totalorder %s33, 3
      %p107 = por %p105, %p106
      %p108 = scmp.ne.s32.totalorder %s99, %s100
      %p109 = scmp.eq.s32.totalorder %s33, 0
      %p110 = por %p108, %p109
      %p111 = scmp.ne.s32.totalorder %s99, %s100
      %p112 = scmp.eq.s32.totalorder %s34, 3
      %p113 = por %p111, %p112
      %p115 = scmp.ne.s32.totalorder %s100, %s114
      %p116 = scmp.eq.s32.totalorder %s34, 0
      %p117 = por %p115, %p116
      %s119 = sadd.s32 %s118, 1
      %p122 = scmp.eq.s32.totalorder %s28, 3
      %p123 = scmp.ne.s32.totalorder %s118, %s120
      %p124 = scmp.eq.s32.totalorder %s28, 0
      %p125 = por %p123, %p124
      %p126 = scmp.ne.s32.totalorder %s118, %s120
      %p127 = scmp.eq.s32.totalorder %s33, 3
      %p128 = por %p126, %p127
      %p129 = scmp.ne.s32.totalorder %s120, %s121
      %p130 = scmp.eq.s32.totalorder %s33, 0
      %p131 = por %p129, %p130
      %p132 = scmp.ne.s32.totalorder %s120, %s121
      %p133 = scmp.eq.s32.totalorder %s34, 3
      %p134 = por %p132, %p133
      %p136 = scmp.ne.s32.totalorder %s121, %s135
      %p137 = scmp.eq.s32.totalorder %s34, 0
      %p138 = por %p136, %p137
      %s140 = sadd.s32 %s139, 1
      %p143 = scmp.eq.s32.totalorder %s28, 3
      %p144 = scmp.ne.s32.totalorder %s139, %s141
      %p145 = scmp.eq.s32.totalorder %s28, 0
      %p146 = por %p144, %p145
      %p147 = scmp.ne.s32.totalorder %s139, %s141
      %p148 = scmp.eq.s32.totalorder %s33, 3
      %p149 = por %p147, %p148
      %p150 = scmp.ne.s32.totalorder %s141, %s142
      %p151 = scmp.eq.s32.totalorder %s33, 0
      %p152 = por %p150, %p151
      %p153 = scmp.ne.s32.totalorder %s141, %s142
      %p154 = scmp.eq.s32.totalorder %s34, 3
      %p155 = por %p153, %p154
      %p157 = scmp.ne.s32.totalorder %s142, %s156
      %p158 = scmp.eq.s32.totalorder %s34, 0
      %p159 = por %p157, %p158
      %s161 = sadd.s32 %s160, 1
      %p164 = scmp.eq.s32.totalorder %s28, 3
      %p165 = scmp.ne.s32.totalorder %s160, %s162
      %p166 = scmp.eq.s32.totalorder %s28, 0
      %p167 = por %p165, %p166
      %p168 = scmp.ne.s32.totalorder %s160, %s162
      %p169 = scmp.eq.s32.totalorder %s33, 3
      %p170 = por %p168, %p169
      %p171 = scmp.ne.s32.totalorder %s162, %s163
      %p172 = scmp.eq.s32.totalorder %s33, 0
      %p173 = por %p171, %p172
      %p174 = scmp.ne.s32.totalorder %s162, %s163
      %p175 = scmp.eq.s32.totalorder %s34, 3
      %p176 = por %p174, %p175
      %p178 = scmp.ne.s32.totalorder %s163, %s177
      %p179 = scmp.eq.s32.totalorder %s34, 0
      %p180 = por %p178, %p179
      %s182 = sadd.s32 %s181, 1
      %p185 = scmp.eq.s32.totalorder %s28, 3
      %p186 = scmp.ne.s32.totalorder %s181, %s183
      %p187 = scmp.eq.s32.totalorder %s28, 0
      %p188 = por %p186, %p187
      %p189 = scmp.ne.s32.totalorder %s181, %s183
      %p190 = scmp.eq.s32.totalorder %s33, 3
      %p191 = por %p189, %p190
      %p192 = scmp.ne.s32.totalorder %s183, %s184
      %p193 = scmp.eq.s32.totalorder %s33, 0
      %p194 = por %p192, %p193
      %p195 = scmp.ne.s32.totalorder %s183, %s184
      %p196 = scmp.eq.s32.totalorder %s34, 3
      %p197 = por %p195, %p196
      %p199 = scmp.ne.s32.totalorder %s184, %s198
      %p200 = scmp.eq.s32.totalorder %s34, 0
      %p201 = por %p199, %p200
      %s203 = sadd.s32 %s202, 1
      %p206 = scmp.eq.s32.totalorder %s28, 3
      %p207 = scmp.ne.s32.totalorder %s202, %s204
      %p208 = scmp.eq.s32.totalorder %s28, 0
      %p209 = por %p207, %p208
      %p210 = scmp.ne.s32.totalorder %s202, %s204
      %p211 = scmp.eq.s32.totalorder %s33, 3
      %p212 = por %p210, %p211
      %p213 = scmp.ne.s32.totalorder %s204, %s205
      %p214 = scmp.eq.s32.totalorder %s33, 0
      %p215 = por %p213, %p214
      %p216 = scmp.ne.s32.totalorder %s204, %s205
      %p217 = scmp.eq.s32.totalorder %s34, 3
      %p218 = por %p216, %p217
      %p220 = scmp.ne.s32.totalorder %s205, %s219
      %p221 = scmp.eq.s32.totalorder %s34, 0
      %p222 = por %p220, %p221
      %s224 = sadd.s32 %s223, 1
      %p227 = scmp.eq.s32.totalorder %s28, 3
      %p228 = scmp.ne.s32.totalorder %s223, %s225
      %p229 = scmp.eq.s32.totalorder %s28, 0
      %p230 = por %p228, %p229
      %p231 = scmp.ne.s32.totalorder %s223, %s225
      %p232 = scmp.eq.s32.totalorder %s33, 3
      %p233 = por %p231, %p232
      %p234 = scmp.ne.s32.totalorder %s225, %s226
      %p235 = scmp.eq.s32.totalorder %s33, 0
      %p236 = por %p234, %p235
      %p237 = scmp.ne.s32.totalorder %s225, %s226
      %p238 = scmp.eq.s32.totalorder %s34, 3
      %p239 = por %p237, %p238
      %p241 = scmp.ne.s32.totalorder %s226, %s240
      %p242 = scmp.eq.s32.totalorder %s34, 0
      %p243 = por %p241, %p242
      %s245 = sadd.s32 %s244, 1
      %p248 = scmp.eq.s32.totalorder %s28, 3
      %p249 = scmp.ne.s32.totalorder %s244, %s246
      %p250 = scmp.eq.s32.totalorder %s28, 0
      %p251 = por %p249, %p250
      %p252 = scmp.ne.s32.totalorder %s244, %s246
      %p253 = scmp.eq.s32.totalorder %s33, 3
      %p254 = por %p252, %p253
      %p255 = scmp.ne.s32.totalorder %s246, %s247
      %p256 = scmp.eq.s32.totalorder %s33, 0
      %p257 = por %p255, %p256
      %p258 = scmp.ne.s32.totalorder %s246, %s247
      %p259 = scmp.eq.s32.totalorder %s34, 3
      %p260 = por %p258, %p259
      %p262 = scmp.ne.s32.totalorder %s247, %s261
      %p263 = scmp.eq.s32.totalorder %s34, 0
      %p264 = por %p262, %p263
      %s266 = sadd.s32 %s265, 1
      %p269 = scmp.eq.s32.totalorder %s28, 3
      %p270 = scmp.ne.s32.totalorder %s265, %s267
      %p271 = scmp.eq.s32.totalorder %s28, 0
      %p272 = por %p270, %p271
      %p273 = scmp.ne.s32.totalorder %s265, %s267
      %p274 = scmp.eq.s32.totalorder %s33, 3
      %p275 = por %p273, %p274
      %p276 = scmp.ne.s32.totalorder %s267, %s268
      %p277 = scmp.eq.s32.totalorder %s33, 0
      %p278 = por %p276, %p277
      %p279 = scmp.ne.s32.totalorder %s267, %s268
      %p280 = scmp.eq.s32.totalorder %s34, 3
      %p281 = por %p279, %p280
      %p283 = scmp.ne.s32.totalorder %s268, %s282
      %p284 = scmp.eq.s32.totalorder %s34, 0
      %p285 = por %p283, %p284
      %s287 = sadd.s32 %s286, 1
      %p290 = scmp.eq.s32.totalorder %s28, 3
      %p291 = scmp.ne.s32.totalorder %s286, %s288
      %p292 = scmp.eq.s32.totalorder %s28, 0
      %p293 = por %p291, %p292
      %p294 = scmp.ne.s32.totalorder %s286, %s288
      %p295 = scmp.eq.s32.totalorder %s33, 3
      %p296 = por %p294, %p295
      %p297 = scmp.ne.s32.totalorder %s288, %s289
      %p298 = scmp.eq.s32.totalorder %s33, 0
      %p299 = por %p297, %p298
      %p300 = scmp.ne.s32.totalorder %s288, %s289
      %p301 = scmp.eq.s32.totalorder %s34, 3
      %p302 = por %p300, %p301
      %p304 = scmp.ne.s32.totalorder %s289, %s303
      %p305 = scmp.eq.s32.totalorder %s34, 0
      %p306 = por %p304, %p305
      %s308 = sadd.s32 %s307, 1
      %p311 = scmp.eq.s32.totalorder %s28, 3
      %p312 = scmp.ne.s32.totalorder %s307, %s309
      %p313 = scmp.eq.s32.totalorder %s28, 0
      %p314 = por %p312, %p313
      %p315 = scmp.ne.s32.totalorder %s307, %s309
      %p316 = scmp.eq.s32.totalorder %s33, 3
      %p317 = por %p315, %p316
      %p318 = scmp.ne.s32.totalorder %s309, %s310
      %p319 = scmp.eq.s32.totalorder %s33, 0
      %p320 = por %p318, %p319
      %p321 = scmp.ne.s32.totalorder %s309, %s310
      %p322 = scmp.eq.s32.totalorder %s34, 3
      %p323 = por %p321, %p322
      %p325 = scmp.ne.s32.totalorder %s310, %s324
      %p326 = scmp.eq.s32.totalorder %s34, 0
      %p327 = por %p325, %p326
      %s328 = ssub.s32 %s35, %s47
      %p329 = scmp.eq.s32.totalorder %s328, 0
      %s331 = sadd.s32 %s330, 1
      %s332 = scalar_select %p329, %s330, %s331
      %p335 = pneg %p329
      %p336 = scmp.eq.s32.totalorder %s28, 3
      %p337 = por %p335, %p336
      %p338 = scmp.ne.s32.totalorder %s330, %s333
      %p339 = scmp.eq.s32.totalorder %s28, 0
      %p340 = por %p338, %p339
      %p341 = scmp.ne.s32.totalorder %s330, %s333
      %p342 = scmp.eq.s32.totalorder %s33, 3
      %p343 = por %p341, %p342
      %p344 = scmp.ne.s32.totalorder %s333, %s334
      %p345 = scmp.eq.s32.totalorder %s33, 0
      %p346 = por %p344, %p345
      %p347 = scmp.ne.s32.totalorder %s333, %s334
      %p348 = scmp.eq.s32.totalorder %s34, 3
      %p349 = por %p347, %p348
      %p351 = scmp.ne.s32.totalorder %s334, %s350
      %p352 = scmp.eq.s32.totalorder %s34, 0
      %p353 = por %p351, %p352
      %p354 = scmp.le.s32.totalorder 1, %s28
      %p355 = scmp.lt.s32.totalorder %s28, 5
      %p356 = pnand %p354, %p355
      %p357 = pneg %p356
      // Predicated region
      $region9: #{tpu_custom_call.1} parent=5 // pred_check
        _
      $region10: #{tpu_custom_call.1} parent=5 // pred_check_branch
        %359 = sbr.rel (%p356) target = $region12
      $region11: #{tpu_custom_call.1} parent=5 // pred_region
        %s360 = ssub.s32 %s28, 1
        // Predicated region
        $region13: #{tpu_custom_call.1} parent=11 // pred_check
          %p361 = pneg %p89
        $region14: #{tpu_custom_call.1} parent=11 // pred_check_branch
          %363 = sbr.rel (%p361) target = $region16
        $region15: #{tpu_custom_call.1} parent=11 // pred_region
          %s365 = ssub.s32 64, 64
          %366 = vsyncadd [#allocation4], %s365
          %s368 = sshll.u32 [#allocation3], 4
          %s369 = int_to_ptr.vmem [resolvable:$true] %s368
          %371 = dma.hbm_to_vmem [thread:$0]  %s1, 64, %s369, [#allocation4]
        $region16: #{tpu_custom_call.1} parent=11 // pred_fallthru
          _
        // Predicated region
        $region17: #{tpu_custom_call.1} parent=11 // pred_check
          %p372 = pneg %p110
        $region18: #{tpu_custom_call.1} parent=11 // pred_check_branch
          %374 = sbr.rel (%p372) target = $region20
        $region19: #{tpu_custom_call.1} parent=11 // pred_region
          %s376 = ssub.s32 16, 16
          %377 = vsyncadd [#allocation7], %s376
          %s379 = sshll.u32 [#allocation6], 4
          %s380 = int_to_ptr.vmem [resolvable:$true] %s379
          %382 = dma.hbm_to_vmem [thread:$0]  %s2, 16, %s380, [#allocation7]
        $region20: #{tpu_custom_call.1} parent=11 // pred_fallthru
          _
        // Predicated region
        $region21: #{tpu_custom_call.1} parent=11 // pred_check
          %p383 = pneg %p131
        $region22: #{tpu_custom_call.1} parent=11 // pred_check_branch
          %385 = sbr.rel (%p383) target = $region24
        $region23: #{tpu_custom_call.1} parent=11 // pred_region
          %s387 = ssub.s32 1024, 1024
          %388 = vsyncadd [#allocation7], %s387
          %s389 = sshll.u32 [#allocation8], 4
          %s390 = int_to_ptr.vmem [resolvable:$true] %s389
          %395 = dma.hbm_to_vmem [thread:$0]  %s3, 1024, %s390, [#allocation7], 128, 128, 8
        $region24: #{tpu_custom_call.1} parent=11 // pred_fallthru
          _
        // Predicated region
        $region25: #{tpu_custom_call.1} parent=11 // pred_check
          %p396 = pneg %p152
        $region26: #{tpu_custom_call.1} parent=11 // pred_check_branch
          %398 = sbr.rel (%p396) target = $region28
        $region27: #{tpu_custom_call.1} parent=11 // pred_region
          %s400 = ssub.s32 16, 16
          %401 = vsyncadd [#allocation10], %s400
          %s403 = sshll.u32 [#allocation9], 4
          %s404 = int_to_ptr.vmem [resolvable:$true] %s403
          %406 = dma.hbm_to_vmem [thread:$0]  %s4, 16, %s404, [#allocation10]
        $region28: #{tpu_custom_call.1} parent=11 // pred_fallthru
          _
        // Predicated region
        $region29: #{tpu_custom_call.1} parent=11 // pred_check
          %p407 = pneg %p173
        $region30: #{tpu_custom_call.1} parent=11 // pred_check_branch
          %409 = sbr.rel (%p407) target = $region32
        $region31: #{tpu_custom_call.1} parent=11 // pred_region
          %s411 = ssub.s32 16384, 16384
          %412 = vsyncadd [#allocation10], %s411
          %s413 = sshll.u32 [#allocation11], 4
          %s414 = int_to_ptr.vmem [resolvable:$true] %s413
          %419 = dma.hbm_to_vmem [thread:$0]  %s5, 16384, %s414, [#allocation10], 1024, 1024, 64
        $region32: #{tpu_custom_call.1} parent=11 // pred_fallthru
          _
        // Predicated region
        $region33: #{tpu_custom_call.1} parent=11 // pred_check
          %p420 = pneg %p194
        $region34: #{tpu_custom_call.1} parent=11 // pred_check_branch
          %422 = sbr.rel (%p420) target = $region36
        $region35: #{tpu_custom_call.1} parent=11 // pred_region
          %s424 = ssub.s32 128, 128
          %425 = vsyncadd [#allocation13], %s424
          %s427 = sshll.u32 [#allocation12], 4
          %s428 = int_to_ptr.vmem [resolvable:$true] %s427
          %430 = dma.hbm_to_vmem [thread:$0]  %s6, 128, %s428, [#allocation13]
        $region36: #{tpu_custom_call.1} parent=11 // pred_fallthru
          _
        // Predicated region
        $region37: #{tpu_custom_call.1} parent=11 // pred_check
          %p431 = pneg %p215
        $region38: #{tpu_custom_call.1} parent=11 // pred_check_branch
          %433 = sbr.rel (%p431) target = $region40
        $region39: #{tpu_custom_call.1} parent=11 // pred_region
          %s435 = ssub.s32 65536, 65536
          %436 = vsyncadd [#allocation13], %s435
          %s437 = sshll.u32 [#allocation14], 4
          %s438 = int_to_ptr.vmem [resolvable:$true] %s437
          %443 = dma.hbm_to_vmem [thread:$0]  %s7, 65536, %s438, [#allocation13], 512, 512, 32
        $region40: #{tpu_custom_call.1} parent=11 // pred_fallthru
          _
        // Predicated region
        $region41: #{tpu_custom_call.1} parent=11 // pred_check
          %p444 = pneg %p236
        $region42: #{tpu_custom_call.1} parent=11 // pred_check_branch
          %446 = sbr.rel (%p444) target = $region44
        $region43: #{tpu_custom_call.1} parent=11 // pred_region
          %s448 = ssub.s32 64, 64
          %449 = vsyncadd [#allocation16], %s448
          %s451 = sshll.u32 [#allocation15], 4
          %s452 = int_to_ptr.vmem [resolvable:$true] %s451
          %454 = dma.hbm_to_vmem [thread:$0]  %s8, 64, %s452, [#allocation16]
        $region44: #{tpu_custom_call.1} parent=11 // pred_fallthru
          _
        // Predicated region
        $region45: #{tpu_custom_call.1} parent=11 // pred_check
          %p455 = pneg %p257
        $region46: #{tpu_custom_call.1} parent=11 // pred_check_branch
          %457 = sbr.rel (%p455) target = $region48
        $region47: #{tpu_custom_call.1} parent=11 // pred_region
          %s459 = ssub.s32 16384, 16384
          %460 = vsyncadd [#allocation16], %s459
          %s461 = sshll.u32 [#allocation17], 4
          %s462 = int_to_ptr.vmem [resolvable:$true] %s461
          %467 = dma.hbm_to_vmem [thread:$0]  %s9, 16384, %s462, [#allocation16], 256, 256, 16
        $region48: #{tpu_custom_call.1} parent=11 // pred_fallthru
          _
        // Predicated region
        $region49: #{tpu_custom_call.1} parent=11 // pred_check
          %p468 = pneg %p278
        $region50: #{tpu_custom_call.1} parent=11 // pred_check_branch
          %470 = sbr.rel (%p468) target = $region52
        $region51: #{tpu_custom_call.1} parent=11 // pred_region
          %s472 = ssub.s32 32, 32
          %473 = vsyncadd [#allocation19], %s472
          %s475 = sshll.u32 [#allocation18], 4
          %s476 = int_to_ptr.vmem [resolvable:$true] %s475
          %478 = dma.hbm_to_vmem [thread:$0]  %s10, 32, %s476, [#allocation19]
        $region52: #{tpu_custom_call.1} parent=11 // pred_fallthru
          _
        // Predicated region
        $region53: #{tpu_custom_call.1} parent=11 // pred_check
          %p479 = pneg %p299
        $region54: #{tpu_custom_call.1} parent=11 // pred_check_branch
          %481 = sbr.rel (%p479) target = $region56
        $region55: #{tpu_custom_call.1} parent=11 // pred_region
          _
        $region56: #{tpu_custom_call.1} parent=11 // pred_fallthru
          _
        // Predicated region
        $region57: #{tpu_custom_call.1} parent=11 // pred_check
          %p482 = pneg %p320
        $region58: #{tpu_custom_call.1} parent=11 // pred_check_branch
          %484 = sbr.rel (%p482) target = $region60
        $region59: #{tpu_custom_call.1} parent=11 // pred_region
          %s486 = ssub.s32 16, 16
          %487 = vsyncadd [#allocation19], %s486
          %s489 = sshll.u32 [#allocation20], 4
          %s490 = int_to_ptr.vmem [resolvable:$true] %s489
          %492 = dma.hbm_to_vmem [thread:$0]  %s12, 16, %s490, [#allocation19]
        $region60: #{tpu_custom_call.1} parent=11 // pred_fallthru
          _
      $region12: #{tpu_custom_call.1} parent=5 // pred_fallthru
        _
      %p493 = scmp.lt.s32.totalorder %s28, 4
      // Predicated region
      $region61: #{tpu_custom_call.1} parent=5 // pred_check
        %p494 = pneg %p493
      $region62: #{tpu_custom_call.1} parent=5 // pred_check_branch
        %496 = sbr.rel (%p494) target = $region64
      $region63: #{tpu_custom_call.1} parent=5 // pred_region
        // Predicated region
        $region65: #{tpu_custom_call.1} parent=63 // pred_check
          %p497 = pneg %p62
        $region66: #{tpu_custom_call.1} parent=63 // pred_check_branch
          %499 = sbr.rel (%p497) target = $region68
        $region67: #{tpu_custom_call.1} parent=63 // pred_region
          %p500 = scmp.lt.s32.totalorder %s35, 1
          %s501 = scalar_select %p500, %s35, 1
          %p502 = scmp.lt.s32.totalorder %s36, 1
          %s503 = scalar_select %p502, %s36, 1
          %s504 = smul.addr %s501, 2
          %s505 = sadd.s32 %s503, %s504
          %s506 = smul.addr %s505, 8
          %s507 = scalar_lea.vmem %s0, %s506
        $region68: #{tpu_custom_call.1} parent=63 // pred_fallthru
          _
      $region64: #{tpu_custom_call.1} parent=5 // pred_fallthru
        _
      %p508 = scmp.le.s32.totalorder 1, %s28
      %p509 = scmp.lt.s32.totalorder %s28, 5
      %p510 = pnand %p508, %p509
      %p511 = pneg %p510
      // Predicated region
      $region69: #{tpu_custom_call.1} parent=5 // pred_check
        _
      $region70: #{tpu_custom_call.1} parent=5 // pred_check_branch
        %513 = sbr.rel (%p510) target = $region72
      $region71: #{tpu_custom_call.1} parent=5 // pred_region
        %s514 = ssub.s32 %s28, 1
        // Predicated region
        $region73: #{tpu_custom_call.1} parent=71 // pred_check
          %p515 = pneg %p89
        $region74: #{tpu_custom_call.1} parent=71 // pred_check_branch
          %517 = sbr.rel (%p515) target = $region76
        $region75: #{tpu_custom_call.1} parent=71 // pred_region
          %518 = dma.done [#allocation4], 64
        $region76: #{tpu_custom_call.1} parent=71 // pred_fallthru
          _
        // Predicated region
        $region77: #{tpu_custom_call.1} parent=71 // pred_check
          %p519 = pneg %p110
        $region78: #{tpu_custom_call.1} parent=71 // pred_check_branch
          %521 = sbr.rel (%p519) target = $region80
        $region79: #{tpu_custom_call.1} parent=71 // pred_region
          %522 = dma.done [#allocation7], 16
        $region80: #{tpu_custom_call.1} parent=71 // pred_fallthru
          _
        // Predicated region
        $region81: #{tpu_custom_call.1} parent=71 // pred_check
          %p523 = pneg %p131
        $region82: #{tpu_custom_call.1} parent=71 // pred_check_branch
          %525 = sbr.rel (%p523) target = $region84
        $region83: #{tpu_custom_call.1} parent=71 // pred_region
          %526 = dma.done [#allocation7], 1024
        $region84: #{tpu_custom_call.1} parent=71 // pred_fallthru
          _
        // Predicated region
        $region85: #{tpu_custom_call.1} parent=71 // pred_check
          %p527 = pneg %p152
        $region86: #{tpu_custom_call.1} parent=71 // pred_check_branch
          %529 = sbr.rel (%p527) target = $region88
        $region87: #{tpu_custom_call.1} parent=71 // pred_region
          %530 = dma.done [#allocation10], 16
        $region88: #{tpu_custom_call.1} parent=71 // pred_fallthru
          _
        // Predicated region
        $region89: #{tpu_custom_call.1} parent=71 // pred_check
          %p531 = pneg %p173
        $region90: #{tpu_custom_call.1} parent=71 // pred_check_branch
          %533 = sbr.rel (%p531) target = $region92
        $region91: #{tpu_custom_call.1} parent=71 // pred_region
          %534 = dma.done [#allocation10], 16384
        $region92: #{tpu_custom_call.1} parent=71 // pred_fallthru
          _
        // Predicated region
        $region93: #{tpu_custom_call.1} parent=71 // pred_check
          %p535 = pneg %p194
        $region94: #{tpu_custom_call.1} parent=71 // pred_check_branch
          %537 = sbr.rel (%p535) target = $region96
        $region95: #{tpu_custom_call.1} parent=71 // pred_region
          %538 = dma.done [#allocation13], 128
        $region96: #{tpu_custom_call.1} parent=71 // pred_fallthru
          _
        // Predicated region
        $region97: #{tpu_custom_call.1} parent=71 // pred_check
          %p539 = pneg %p215
        $region98: #{tpu_custom_call.1} parent=71 // pred_check_branch
          %541 = sbr.rel (%p539) target = $region100
        $region99: #{tpu_custom_call.1} parent=71 // pred_region
          %542 = dma.done [#allocation13], 65536
        $region100: #{tpu_custom_call.1} parent=71 // pred_fallthru
          _
        // Predicated region
        $region101: #{tpu_custom_call.1} parent=71 // pred_check
          %p543 = pneg %p236
        $region102: #{tpu_custom_call.1} parent=71 // pred_check_branch
          %545 = sbr.rel (%p543) target = $region104
        $region103: #{tpu_custom_call.1} parent=71 // pred_region
          %546 = dma.done [#allocation16], 64
        $region104: #{tpu_custom_call.1} parent=71 // pred_fallthru
          _
        // Predicated region
        $region105: #{tpu_custom_call.1} parent=71 // pred_check
          %p547 = pneg %p257
        $region106: #{tpu_custom_call.1} parent=71 // pred_check_branch
          %549 = sbr.rel (%p547) target = $region108
        $region107: #{tpu_custom_call.1} parent=71 // pred_region
          %550 = dma.done [#allocation16], 16384
        $region108: #{tpu_custom_call.1} parent=71 // pred_fallthru
          _
        // Predicated region
        $region109: #{tpu_custom_call.1} parent=71 // pred_check
          %p551 = pneg %p278
        $region110: #{tpu_custom_call.1} parent=71 // pred_check_branch
          %553 = sbr.rel (%p551) target = $region112
        $region111: #{tpu_custom_call.1} parent=71 // pred_region
          %554 = dma.done [#allocation19], 32
        $region112: #{tpu_custom_call.1} parent=71 // pred_fallthru
          _
        // Predicated region
        $region113: #{tpu_custom_call.1} parent=71 // pred_check
          %p555 = pneg %p320
        $region114: #{tpu_custom_call.1} parent=71 // pred_check_branch
          %557 = sbr.rel (%p555) target = $region116
        $region115: #{tpu_custom_call.1} parent=71 // pred_region
          %558 = dma.done [#allocation19], 16
        $region116: #{tpu_custom_call.1} parent=71 // pred_fallthru
          _
        %p559 = scmp.lt.s32.totalorder %s37, 1
        %s560 = scalar_select %p559, %s37, 1
        %p561 = scmp.lt.s32.totalorder %s38, 1
        %s562 = scalar_select %p561, %s38, 1
        %s563 = smul.addr %s560, 2
        %s564 = sadd.s32 %s562, %s563
        %s565 = smul.addr %s564, 8
        %s566 = scalar_lea.vmem %s0, %s565
        %p567 = pneg %p68
        %p568 = pneg %p65
        %p569 = pneg %p89
        %p570 = pneg %p86
        %p571 = pneg %p110
        %p572 = pneg %p107
        %p573 = pneg %p131
        %p574 = pneg %p128
        %p575 = pneg %p152
        %p576 = pneg %p149
        %p577 = pneg %p173
        %p578 = pneg %p170
        %p579 = pneg %p194
        %p580 = pneg %p191
        %p581 = pneg %p215
        %p582 = pneg %p212
        %p583 = pneg %p236
        %p584 = pneg %p233
        %p585 = pneg %p257
        %p586 = pneg %p254
        %p587 = pneg %p278
        %p588 = pneg %p275
        %p589 = pneg %p299
        %p590 = pneg %p296
        %p591 = pneg %p320
        %p592 = pneg %p317
        %p593 = pneg %p346
        %p594 = pneg %p343
        %s595 = sand.u32 %s333, 1
        %s596 = scalar_lea.sflag [#allocation5], %s595
        %s597 = sand.u32 %s333, 1
        %s598 = scalar_lea.vmem [#allocation21], %s597
        %p599 = scmp.lt.s32.totalorder %s37, 1
        %s600 = scalar_select %p599, %s37, 1
        %p601 = scmp.lt.s32.totalorder %s38, 1
        %s602 = scalar_select %p601, %s38, 1
        %s603 = smul.addr %s600, 2
        %s604 = sadd.s32 %s602, %s603
        %s605 = smul.addr %s604, 8
        %s606 = scalar_lea.vmem %s0, %s605
        %p607 = scmp.eq.s32.totalorder %s38, 0
        // Predicated region
        $region117: #{tpu_custom_call.1} parent=71 // pred_check
          %p608 = pneg %p607
        $region118: #{tpu_custom_call.1} parent=71 // pred_check_branch
          %610 = sbr.rel (%p608) target = $region120
        $region119: #{tpu_custom_call.1} parent=71 // pred_region
          %611 = vst [vmem:[#allocation2] sm:$0xff] 0.0
        $region120: #{tpu_custom_call.1} parent=71 // pred_fallthru
          _
        %v612 = vld [vmem:[%s606] sm:$0xff]
        %v613 = vld [vmem:[#allocation3] sm:$0xf]
        %v614 = vld [vmem:[#allocation6] sm:$0x1]
        %v616 = vlaneseq
        %v617 = vshrl.u32 %v616, 7
        %v618 = vsub.s32 0, %v617
        %v619 = vrot.slane %v614, %v618
        %vm621 = vcmask 31744
        %v623 = vsel %vm621, %v612, 0
        %vm625 = vcmask 1043456
        %v627 = vsel %vm625, %v613, 0
        %629 = vmatprep.subr.mxu0 0.0
        %630 = vmatpush1.msra.mxu0 %v627
        %631 = vmatprep.subr.mxu0 0.0
        %632 = vmatpush1.msra.mxu0 0.0
        %633 = vmatprep.subr.mxu0 0.0
        %634 = vmatpush1.msra.mxu0 0.0
        %635 = vmatprep.subr.mxu0 0.0
        %636 = vmatpush1.msra.mxu0 0.0
        %637 = vmatprep.subr.mxu0 0.0
        %638 = vmatpush1.msra.mxu0 0.0
        %639 = vmatprep.subr.mxu0 0.0
        %640 = vmatpush1.msra.mxu0 0.0
        %641 = vmatprep.subr.mxu0 0.0
        %642 = vmatpush1.msra.mxu0 0.0
        %643 = vmatprep.subr.mxu0 0.0
        %644 = vmatpush1.msra.mxu0 0.0
        %645 = vmatprep.subr.mxu0 0.0
        %646 = vmatpush1.msra.mxu0 0.0
        %647 = vmatprep.subr.mxu0 0.0
        %648 = vmatpush1.msra.mxu0 0.0
        %649 = vmatprep.subr.mxu0 0.0
        %650 = vmatpush1.msra.mxu0 0.0
        %651 = vmatprep.subr.mxu0 0.0
        %652 = vmatpush1.msra.mxu0 0.0
        %653 = vmatprep.subr.mxu0 0.0
        %654 = vmatpush1.msra.mxu0 0.0
        %655 = vmatprep.subr.mxu0 0.0
        %656 = vmatpush1.msra.mxu0 0.0
        %657 = vmatprep.subr.mxu0 0.0
        %658 = vmatpush1.msra.mxu0 0.0
        %659 = vmatprep.subr.mxu0 0.0
        %660 = vmatpush1.msra.mxu0 0.0
        %661 = vmatprep.subr.mxu0 0.0
        %662 = vmatpush1.msra.mxu0 0.0
        %663 = vmatprep.subr.mxu0 0.0
        %664 = vmatpush1.msra.mxu0 0.0
        %665 = vmatprep.subr.mxu0 0.0
        %666 = vmatpush1.msra.mxu0 0.0
        %667 = vmatprep.subr.mxu0 0.0
        %668 = vmatpush1.msra.mxu0 0.0
        %669 = vmatprep.subr.mxu0 0.0
        %670 = vmatpush1.msra.mxu0 0.0
        %671 = vmatprep.subr.mxu0 0.0
        %672 = vmatpush1.msra.mxu0 0.0
        %673 = vmatprep.subr.mxu0 0.0
        %674 = vmatpush1.msra.mxu0 0.0
        %675 = vmatprep.subr.mxu0 0.0
        %676 = vmatpush1.msra.mxu0 0.0
        %677 = vmatprep.subr.mxu0 0.0
        %678 = vmatpush1.msra.mxu0 0.0
        %679 = vmatprep.subr.mxu0 0.0
        %680 = vmatpush1.msra.mxu0 0.0
        %681 = vmatprep.subr.mxu0 0.0
        %682 = vmatpush1.msra.mxu0 0.0
        %683 = vmatprep.subr.mxu0 0.0
        %684 = vmatpush1.msra.mxu0 0.0
        %685 = vmatprep.subr.mxu0 0.0
        %686 = vmatpush1.msra.mxu0 0.0
        %687 = vmatprep.subr.mxu0 0.0
        %688 = vmatpush1.msra.mxu0 0.0
        %689 = vmatprep.subr.mxu0 0.0
        %690 = vmatpush1.msra.mxu0 0.0
        %691 = vmatprep.subr.mxu0 0.0
        %692 = vmatpush1.msra.mxu0 0.0
        %693 = vmatprep.mubr.f32.mxu0 0.0
        %694 = vmatmul.mubr.f32.gmra.mrb[0].mxu0 %v623
        %v695 = vpop.f32.mrb[0].mxu0
        %v696 = vadd.f32 %v619, %v695
        %v697 = vpop.f32.mrb[0].mxu0
        %698 = vdwg.mxu0
        %v699 = vmax.f32 %v696, 0.0
        %v700 = vld [vmem:[#allocation8] sm:$0xff]
        %v701 = vld [vmem:[#allocation8 + $0x8] sm:$0xff]
        %v702 = vld [vmem:[#allocation8 + $0x10] sm:$0xff]
        %v703 = vld [vmem:[#allocation8 + $0x18] sm:$0xff]
        %v704 = vld [vmem:[#allocation8 + $0x20] sm:$0xff]
        %v705 = vld [vmem:[#allocation8 + $0x28] sm:$0xff]
        %v706 = vld [vmem:[#allocation8 + $0x30] sm:$0xff]
        %v707 = vld [vmem:[#allocation8 + $0x38] sm:$0xff]
        %v708 = vld [vmem:[#allocation9] sm:$0x1]
        %v710 = vlaneseq
        %v711 = vshrl.u32 %v710, 7
        %v712 = vsub.s32 0, %v711
        %v713 = vrot.slane %v708, %v712
        %vm715 = vcmask 523264
        %v717 = vsel %vm715, %v699, 0
        %719 = vmatprep.subr.mxu0 0.0
        %720 = vmatpush1.msra.mxu0 %v700
        %721 = vmatprep.subr.mxu0 0.0
        %722 = vmatpush1.msra.mxu0 %v701
        %723 = vmatprep.subr.mxu0 0.0
        %724 = vmatpush1.msra.mxu0 %v702
        %725 = vmatprep.subr.mxu0 0.0
        %726 = vmatpush1.msra.mxu0 %v703
        %727 = vmatprep.subr.mxu0 0.0
        %728 = vmatpush1.msra.mxu0 %v704
        %729 = vmatprep.subr.mxu0 0.0
        %730 = vmatpush1.msra.mxu0 %v705
        %731 = vmatprep.subr.mxu0 0.0
        %732 = vmatpush1.msra.mxu0 %v706
        %733 = vmatprep.subr.mxu0 0.0
        %734 = vmatpush1.msra.mxu0 %v707
        %735 = vmatprep.subr.mxu0 0.0
        %736 = vmatpush1.msra.mxu0 0.0
        %737 = vmatprep.subr.mxu0 0.0
        %738 = vmatpush1.msra.mxu0 0.0
        %739 = vmatprep.subr.mxu0 0.0
        %740 = vmatpush1.msra.mxu0 0.0
        %741 = vmatprep.subr.mxu0 0.0
        %742 = vmatpush1.msra.mxu0 0.0
        %743 = vmatprep.subr.mxu0 0.0
        %744 = vmatpush1.msra.mxu0 0.0
        %745 = vmatprep.subr.mxu0 0.0
        %746 = vmatpush1.msra.mxu0 0.0
        %747 = vmatprep.subr.mxu0 0.0
        %748 = vmatpush1.msra.mxu0 0.0
        %749 = vmatprep.subr.mxu0 0.0
        %750 = vmatpush1.msra.mxu0 0.0
        %751 = vmatprep.subr.mxu0 0.0
        %752 = vmatpush1.msra.mxu0 0.0
        %753 = vmatprep.subr.mxu0 0.0
        %754 = vmatpush1.msra.mxu0 0.0
        %755 = vmatprep.subr.mxu0 0.0
        %756 = vmatpush1.msra.mxu0 0.0
        %757 = vmatprep.subr.mxu0 0.0
        %758 = vmatpush1.msra.mxu0 0.0
        %759 = vmatprep.subr.mxu0 0.0
        %760 = vmatpush1.msra.mxu0 0.0
        %761 = vmatprep.subr.mxu0 0.0
        %762 = vmatpush1.msra.mxu0 0.0
        %763 = vmatprep.subr.mxu0 0.0
        %764 = vmatpush1.msra.mxu0 0.0
        %765 = vmatprep.subr.mxu0 0.0
        %766 = vmatpush1.msra.mxu0 0.0
        %767 = vmatprep.subr.mxu0 0.0
        %768 = vmatpush1.msra.mxu0 0.0
        %769 = vmatprep.subr.mxu0 0.0
        %770 = vmatpush1.msra.mxu0 0.0
        %771 = vmatprep.subr.mxu0 0.0
        %772 = vmatpush1.msra.mxu0 0.0
        %773 = vmatprep.subr.mxu0 0.0
        %774 = vmatpush1.msra.mxu0 0.0
        %775 = vmatprep.subr.mxu0 0.0
        %776 = vmatpush1.msra.mxu0 0.0
        %777 = vmatprep.subr.mxu0 0.0
        %778 = vmatpush1.msra.mxu0 0.0
        %779 = vmatprep.subr.mxu0 0.0
        %780 = vmatpush1.msra.mxu0 0.0
        %781 = vmatprep.subr.mxu0 0.0
        %782 = vmatpush1.msra.mxu0 0.0
        %783 = vmatprep.mubr.f32.mxu0 0.0
        %784 = vmatmul.mubr.f32.gmra.mrb[0].mxu0 %v717
        %v785 = vpop.f32.mrb[0].mxu0
        %v786 = vadd.f32 %v713, %v785
        %v787 = vpop.f32.mrb[0].mxu0
        %788 = vdwg.mxu0
        %v789 = vmax.f32 %v786, 0.0
        %v790 = vld [vmem:[#allocation11] sm:$0xff]
        %v791 = vld [vmem:[#allocation11 + $0x8] sm:$0xff]
        %v792 = vld [vmem:[#allocation11 + $0x10] sm:$0xff]
        %v793 = vld [vmem:[#allocation11 + $0x18] sm:$0xff]
        %v794 = vld [vmem:[#allocation11 + $0x20] sm:$0xff]
        %v795 = vld [vmem:[#allocation11 + $0x28] sm:$0xff]
        %v796 = vld [vmem:[#allocation11 + $0x30] sm:$0xff]
        %v797 = vld [vmem:[#allocation11 + $0x38] sm:$0xff]
        %v798 = vld [vmem:[#allocation11 + $0x40] sm:$0xff]
        %v799 = vld [vmem:[#allocation11 + $0x48] sm:$0xff]
        %v800 = vld [vmem:[#allocation11 + $0x50] sm:$0xff]
        %v801 = vld [vmem:[#allocation11 + $0x58] sm:$0xff]
        %v802 = vld [vmem:[#allocation11 + $0x60] sm:$0xff]
        %v803 = vld [vmem:[#allocation11 + $0x68] sm:$0xff]
        %v804 = vld [vmem:[#allocation11 + $0x70] sm:$0xff]
        %v805 = vld [vmem:[#allocation11 + $0x78] sm:$0xff]
        %v806 = vld [vmem:[#allocation11 + $0x80] sm:$0xff]
        %v807 = vld [vmem:[#allocation11 + $0x88] sm:$0xff]
        %v808 = vld [vmem:[#allocation11 + $0x90] sm:$0xff]
        %v809 = vld [vmem:[#allocation11 + $0x98] sm:$0xff]
        %v810 = vld [vmem:[#allocation11 + $0xa0] sm:$0xff]
        %v811 = vld [vmem:[#allocation11 + $0xa8] sm:$0xff]
        %v812 = vld [vmem:[#allocation11 + $0xb0] sm:$0xff]
        %v813 = vld [vmem:[#allocation11 + $0xb8] sm:$0xff]
        %v814 = vld [vmem:[#allocation11 + $0xc0] sm:$0xff]
        %v815 = vld [vmem:[#allocation11 + $0xc8] sm:$0xff]
        %v816 = vld [vmem:[#allocation11 + $0xd0] sm:$0xff]
        %v817 = vld [vmem:[#allocation11 + $0xd8] sm:$0xff]
        %v818 = vld [vmem:[#allocation11 + $0xe0] sm:$0xff]
        %v819 = vld [vmem:[#allocation11 + $0xe8] sm:$0xff]
        %v820 = vld [vmem:[#allocation11 + $0xf0] sm:$0xff]
        %v821 = vld [vmem:[#allocation11 + $0xf8] sm:$0xff]
        %v822 = vld [vmem:[#allocation11 + $0x100] sm:$0xff]
        %v823 = vld [vmem:[#allocation11 + $0x108] sm:$0xff]
        %v824 = vld [vmem:[#allocation11 + $0x110] sm:$0xff]
        %v825 = vld [vmem:[#allocation11 + $0x118] sm:$0xff]
        %v826 = vld [vmem:[#allocation11 + $0x120] sm:$0xff]
        %v827 = vld [vmem:[#allocation11 + $0x128] sm:$0xff]
        %v828 = vld [vmem:[#allocation11 + $0x130] sm:$0xff]
        %v829 = vld [vmem:[#allocation11 + $0x138] sm:$0xff]
        %v830 = vld [vmem:[#allocation11 + $0x140] sm:$0xff]
        %v831 = vld [vmem:[#allocation11 + $0x148] sm:$0xff]
        %v832 = vld [vmem:[#allocation11 + $0x150] sm:$0xff]
        %v833 = vld [vmem:[#allocation11 + $0x158] sm:$0xff]
        %v834 = vld [vmem:[#allocation11 + $0x160] sm:$0xff]
        %v835 = vld [vmem:[#allocation11 + $0x168] sm:$0xff]
        %v836 = vld [vmem:[#allocation11 + $0x170] sm:$0xff]
        %v837 = vld [vmem:[#allocation11 + $0x178] sm:$0xff]
        %v838 = vld [vmem:[#allocation11 + $0x180] sm:$0xff]
        %v839 = vld [vmem:[#allocation11 + $0x188] sm:$0xff]
        %v840 = vld [vmem:[#allocation11 + $0x190] sm:$0xff]
        %v841 = vld [vmem:[#allocation11 + $0x198] sm:$0xff]
        %v842 = vld [vmem:[#allocation11 + $0x1a0] sm:$0xff]
        %v843 = vld [vmem:[#allocation11 + $0x1a8] sm:$0xff]
        %v844 = vld [vmem:[#allocation11 + $0x1b0] sm:$0xff]
        %v845 = vld [vmem:[#allocation11 + $0x1b8] sm:$0xff]
        %v846 = vld [vmem:[#allocation11 + $0x1c0] sm:$0xff]
        %v847 = vld [vmem:[#allocation11 + $0x1c8] sm:$0xff]
        %v848 = vld [vmem:[#allocation11 + $0x1d0] sm:$0xff]
        %v849 = vld [vmem:[#allocation11 + $0x1d8] sm:$0xff]
        %v850 = vld [vmem:[#allocation11 + $0x1e0] sm:$0xff]
        %v851 = vld [vmem:[#allocation11 + $0x1e8] sm:$0xff]
        %v852 = vld [vmem:[#allocation11 + $0x1f0] sm:$0xff]
        %v853 = vld [vmem:[#allocation11 + $0x1f8] sm:$0xff]
        %v854 = vld [vmem:[#allocation11 + $0x200] sm:$0xff]
        %v855 = vld [vmem:[#allocation11 + $0x208] sm:$0xff]
        %v856 = vld [vmem:[#allocation11 + $0x210] sm:$0xff]
        %v857 = vld [vmem:[#allocation11 + $0x218] sm:$0xff]
        %v858 = vld [vmem:[#allocation11 + $0x220] sm:$0xff]
        %v859 = vld [vmem:[#allocation11 + $0x228] sm:$0xff]
        %v860 = vld [vmem:[#allocation11 + $0x230] sm:$0xff]
        %v861 = vld [vmem:[#allocation11 + $0x238] sm:$0xff]
        %v862 = vld [vmem:[#allocation11 + $0x240] sm:$0xff]
        %v863 = vld [vmem:[#allocation11 + $0x248] sm:$0xff]
        %v864 = vld [vmem:[#allocation11 + $0x250] sm:$0xff]
        %v865 = vld [vmem:[#allocation11 + $0x258] sm:$0xff]
        %v866 = vld [vmem:[#allocation11 + $0x260] sm:$0xff]
        %v867 = vld [vmem:[#allocation11 + $0x268] sm:$0xff]
        %v868 = vld [vmem:[#allocation11 + $0x270] sm:$0xff]
        %v869 = vld [vmem:[#allocation11 + $0x278] sm:$0xff]
        %v870 = vld [vmem:[#allocation11 + $0x280] sm:$0xff]
        %v871 = vld [vmem:[#allocation11 + $0x288] sm:$0xff]
        %v872 = vld [vmem:[#allocation11 + $0x290] sm:$0xff]
        %v873 = vld [vmem:[#allocation11 + $0x298] sm:$0xff]
        %v874 = vld [vmem:[#allocation11 + $0x2a0] sm:$0xff]
        %v875 = vld [vmem:[#allocation11 + $0x2a8] sm:$0xff]
        %v876 = vld [vmem:[#allocation11 + $0x2b0] sm:$0xff]
        %v877 = vld [vmem:[#allocation11 + $0x2b8] sm:$0xff]
        %v878 = vld [vmem:[#allocation11 + $0x2c0] sm:$0xff]
        %v879 = vld [vmem:[#allocation11 + $0x2c8] sm:$0xff]
        %v880 = vld [vmem:[#allocation11 + $0x2d0] sm:$0xff]
        %v881 = vld [vmem:[#allocation11 + $0x2d8] sm:$0xff]
        %v882 = vld [vmem:[#allocation11 + $0x2e0] sm:$0xff]
        %v883 = vld [vmem:[#allocation11 + $0x2e8] sm:$0xff]
        %v884 = vld [vmem:[#allocation11 + $0x2f0] sm:$0xff]
        %v885 = vld [vmem:[#allocation11 + $0x2f8] sm:$0xff]
        %v886 = vld [vmem:[#allocation11 + $0x300] sm:$0xff]
        %v887 = vld [vmem:[#allocation11 + $0x308] sm:$0xff]
        %v888 = vld [vmem:[#allocation11 + $0x310] sm:$0xff]
        %v889 = vld [vmem:[#allocation11 + $0x318] sm:$0xff]
        %v890 = vld [vmem:[#allocation11 + $0x320] sm:$0xff]
        %v891 = vld [vmem:[#allocation11 + $0x328] sm:$0xff]
        %v892 = vld [vmem:[#allocation11 + $0x330] sm:$0xff]
        %v893 = vld [vmem:[#allocation11 + $0x338] sm:$0xff]
        %v894 = vld [vmem:[#allocation11 + $0x340] sm:$0xff]
        %v895 = vld [vmem:[#allocation11 + $0x348] sm:$0xff]
        %v896 = vld [vmem:[#allocation11 + $0x350] sm:$0xff]
        %v897 = vld [vmem:[#allocation11 + $0x358] sm:$0xff]
        %v898 = vld [vmem:[#allocation11 + $0x360] sm:$0xff]
        %v899 = vld [vmem:[#allocation11 + $0x368] sm:$0xff]
        %v900 = vld [vmem:[#allocation11 + $0x370] sm:$0xff]
        %v901 = vld [vmem:[#allocation11 + $0x378] sm:$0xff]
        %v902 = vld [vmem:[#allocation11 + $0x380] sm:$0xff]
        %v903 = vld [vmem:[#allocation11 + $0x388] sm:$0xff]
        %v904 = vld [vmem:[#allocation11 + $0x390] sm:$0xff]
        %v905 = vld [vmem:[#allocation11 + $0x398] sm:$0xff]
        %v906 = vld [vmem:[#allocation11 + $0x3a0] sm:$0xff]
        %v907 = vld [vmem:[#allocation11 + $0x3a8] sm:$0xff]
        %v908 = vld [vmem:[#allocation11 + $0x3b0] sm:$0xff]
        %v909 = vld [vmem:[#allocation11 + $0x3b8] sm:$0xff]
        %v910 = vld [vmem:[#allocation11 + $0x3c0] sm:$0xff]
        %v911 = vld [vmem:[#allocation11 + $0x3c8] sm:$0xff]
        %v912 = vld [vmem:[#allocation11 + $0x3d0] sm:$0xff]
        %v913 = vld [vmem:[#allocation11 + $0x3d8] sm:$0xff]
        %v914 = vld [vmem:[#allocation11 + $0x3e0] sm:$0xff]
        %v915 = vld [vmem:[#allocation11 + $0x3e8] sm:$0xff]
        %v916 = vld [vmem:[#allocation11 + $0x3f0] sm:$0xff]
        %v917 = vld [vmem:[#allocation11 + $0x3f8] sm:$0xff]
        %v918 = vld [vmem:[#allocation12] sm:$0xff]
        %v920 = vlaneseq
        %v921 = vshrl.u32 %v920, 7
        %v922 = vsub.s32 0, %v921
        %v923 = vrot.slane %v918, %v922
        %v924 = vlaneseq
        %v925 = vshrl.u32 %v924, 7
        %v926 = vsub.s32 1, %v925
        %v927 = vrot.slane %v918, %v926
        %v928 = vlaneseq
        %v929 = vshrl.u32 %v928, 7
        %v930 = vsub.s32 2, %v929
        %v931 = vrot.slane %v918, %v930
        %v932 = vlaneseq
        %v933 = vshrl.u32 %v932, 7
        %v934 = vsub.s32 3, %v933
        %v935 = vrot.slane %v918, %v934
        %v936 = vlaneseq
        %v937 = vshrl.u32 %v936, 7
        %v938 = vsub.s32 4, %v937
        %v939 = vrot.slane %v918, %v938
        %v940 = vlaneseq
        %v941 = vshrl.u32 %v940, 7
        %v942 = vsub.s32 5, %v941
        %v943 = vrot.slane %v918, %v942
        %v944 = vlaneseq
        %v945 = vshrl.u32 %v944, 7
        %v946 = vsub.s32 6, %v945
        %v947 = vrot.slane %v918, %v946
        %v948 = vlaneseq
        %v949 = vshrl.u32 %v948, 7
        %v950 = vsub.s32 7, %v949
        %v951 = vrot.slane %v918, %v950
        %960 = vmatprep.subr.mxu0 %v791
        %961 = vmatpush1.msra.mxu0 %v790
        %962 = vmatprep.subr.mxu0 %v799
        %963 = vmatpush1.msra.mxu0 %v798
        %964 = vmatprep.subr.mxu0 %v807
        %965 = vmatpush1.msra.mxu0 %v806
        %966 = vmatprep.subr.mxu0 %v815
        %967 = vmatpush1.msra.mxu0 %v814
        %968 = vmatprep.subr.mxu0 %v823
        %969 = vmatpush1.msra.mxu0 %v822
        %970 = vmatprep.subr.mxu0 %v831
        %971 = vmatpush1.msra.mxu0 %v830
        %972 = vmatprep.subr.mxu0 %v839
        %973 = vmatpush1.msra.mxu0 %v838
        %974 = vmatprep.subr.mxu0 %v847
        %975 = vmatpush1.msra.mxu0 %v846
        %976 = vmatprep.subr.mxu0 %v855
        %977 = vmatpush1.msra.mxu0 %v854
        %978 = vmatprep.subr.mxu0 %v863
        %979 = vmatpush1.msra.mxu0 %v862
        %980 = vmatprep.subr.mxu0 %v871
        %981 = vmatpush1.msra.mxu0 %v870
        %982 = vmatprep.subr.mxu0 %v879
        %983 = vmatpush1.msra.mxu0 %v878
        %984 = vmatprep.subr.mxu0 %v887
        %985 = vmatpush1.msra.mxu0 %v886
        %986 = vmatprep.subr.mxu0 %v895
        %987 = vmatpush1.msra.mxu0 %v894
        %988 = vmatprep.subr.mxu0 %v903
        %989 = vmatpush1.msra.mxu0 %v902
        %990 = vmatprep.subr.mxu0 %v911
        %991 = vmatpush1.msra.mxu0 %v910
        %992 = vmatprep.subr.mxu0 0.0
        %993 = vmatpush1.msra.mxu0 0.0
        %994 = vmatprep.subr.mxu0 0.0
        %995 = vmatpush1.msra.mxu0 0.0
        %996 = vmatprep.subr.mxu0 0.0
        %997 = vmatpush1.msra.mxu0 0.0
        %998 = vmatprep.subr.mxu0 0.0
        %999 = vmatpush1.msra.mxu0 0.0
        %1000 = vmatprep.subr.mxu0 0.0
        %1001 = vmatpush1.msra.mxu0 0.0
        %1002 = vmatprep.subr.mxu0 0.0
        %1003 = vmatpush1.msra.mxu0 0.0
        %1004 = vmatprep.subr.mxu0 0.0
        %1005 = vmatpush1.msra.mxu0 0.0
        %1006 = vmatprep.subr.mxu0 0.0
        %1007 = vmatpush1.msra.mxu0 0.0
        %1008 = vmatprep.subr.mxu0 0.0
        %1009 = vmatpush1.msra.mxu0 0.0
        %1010 = vmatprep.subr.mxu0 0.0
        %1011 = vmatpush1.msra.mxu0 0.0
        %1012 = vmatprep.subr.mxu0 0.0
        %1013 = vmatpush1.msra.mxu0 0.0
        %1014 = vmatprep.subr.mxu0 0.0
        %1015 = vmatpush1.msra.mxu0 0.0
        %1016 = vmatprep.subr.mxu0 0.0
        %1017 = vmatpush1.msra.mxu0 0.0
        %1018 = vmatprep.subr.mxu0 0.0
        %1019 = vmatpush1.msra.mxu0 0.0
        %1020 = vmatprep.subr.mxu0 0.0
        %1021 = vmatpush1.msra.mxu0 0.0
        %1022 = vmatprep.subr.mxu0 0.0
        %1023 = vmatpush1.msra.mxu0 0.0
        %1024 = vmatprep.mubr.f32.mxu0 0.0
        %1025 = vmatmul.mubr.f32.gmra.mrb[0].mxu0 %v789
        %v1026 = vpop.f32.mrb[0].mxu0
        %v1027 = vadd.f32 %v923, %v1026
        %v1028 = vpop.f32.mrb[0].mxu0
        %v1029 = vadd.f32 %v927, %v1028
        %1030 = vdwg.mxu0
        %1031 = vmatprep.subr.mxu0 %v793
        %1032 = vmatpush1.msra.mxu0 %v792
        %1033 = vmatprep.subr.mxu0 %v801
        %1034 = vmatpush1.msra.mxu0 %v800
        %1035 = vmatprep.subr.mxu0 %v809
        %1036 = vmatpush1.msra.mxu0 %v808
        %1037 = vmatprep.subr.mxu0 %v817
        %1038 = vmatpush1.msra.mxu0 %v816
        %1039 = vmatprep.subr.mxu0 %v825
        %1040 = vmatpush1.msra.mxu0 %v824
        %1041 = vmatprep.subr.mxu0 %v833
        %1042 = vmatpush1.msra.mxu0 %v832
        %1043 = vmatprep.subr.mxu0 %v841
        %1044 = vmatpush1.msra.mxu0 %v840
        %1045 = vmatprep.subr.mxu0 %v849
        %1046 = vmatpush1.msra.mxu0 %v848
        %1047 = vmatprep.subr.mxu0 %v857
        %1048 = vmatpush1.msra.mxu0 %v856
        %1049 = vmatprep.subr.mxu0 %v865
        %1050 = vmatpush1.msra.mxu0 %v864
        %1051 = vmatprep.subr.mxu0 %v873
        %1052 = vmatpush1.msra.mxu0 %v872
        %1053 = vmatprep.subr.mxu0 %v881
        %1054 = vmatpush1.msra.mxu0 %v880
        %1055 = vmatprep.subr.mxu0 %v889
        %1056 = vmatpush1.msra.mxu0 %v888
        %1057 = vmatprep.subr.mxu0 %v897
        %1058 = vmatpush1.msra.mxu0 %v896
        %1059 = vmatprep.subr.mxu0 %v905
        %1060 = vmatpush1.msra.mxu0 %v904
        %1061 = vmatprep.subr.mxu0 %v913
        %1062 = vmatpush1.msra.mxu0 %v912
        %1063 = vmatprep.subr.mxu0 0.0
        %1064 = vmatpush1.msra.mxu0 0.0
        %1065 = vmatprep.subr.mxu0 0.0
        %1066 = vmatpush1.msra.mxu0 0.0
        %1067 = vmatprep.subr.mxu0 0.0
        %1068 = vmatpush1.msra.mxu0 0.0
        %1069 = vmatprep.subr.mxu0 0.0
        %1070 = vmatpush1.msra.mxu0 0.0
        %1071 = vmatprep.subr.mxu0 0.0
        %1072 = vmatpush1.msra.mxu0 0.0
        %1073 = vmatprep.subr.mxu0 0.0
        %1074 = vmatpush1.msra.mxu0 0.0
        %1075 = vmatprep.subr.mxu0 0.0
        %1076 = vmatpush1.msra.mxu0 0.0
        %1077 = vmatprep.subr.mxu0 0.0
        %1078 = vmatpush1.msra.mxu0 0.0
        %1079 = vmatprep.subr.mxu0 0.0
        %1080 = vmatpush1.msra.mxu0 0.0
        %1081 = vmatprep.subr.mxu0 0.0
        %1082 = vmatpush1.msra.mxu0 0.0
        %1083 = vmatprep.subr.mxu0 0.0
        %1084 = vmatpush1.msra.mxu0 0.0
        %1085 = vmatprep.subr.mxu0 0.0
        %1086 = vmatpush1.msra.mxu0 0.0
        %1087 = vmatprep.subr.mxu0 0.0
        %1088 = vmatpush1.msra.mxu0 0.0
        %1089 = vmatprep.subr.mxu0 0.0
        %1090 = vmatpush1.msra.mxu0 0.0
        %1091 = vmatprep.subr.mxu0 0.0
        %1092 = vmatpush1.msra.mxu0 0.0
        %1093 = vmatprep.subr.mxu0 0.0
        %1094 = vmatpush1.msra.mxu0 0.0
        %1095 = vmatprep.mubr.f32.mxu0 0.0
        %1096 = vmatmul.mubr.f32.gmra.mrb[0].mxu0 %v789
        %v1097 = vpop.f32.mrb[0].mxu0
        %v1098 = vadd.f32 %v931, %v1097
        %v1099 = vpop.f32.mrb[0].mxu0
        %v1100 = vadd.f32 %v935, %v1099
        %1101 = vdwg.mxu0
        %1102 = vmatprep.subr.mxu0 %v795
        %1103 = vmatpush1.msra.mxu0 %v794
        %1104 = vmatprep.subr.mxu0 %v803
        %1105 = vmatpush1.msra.mxu0 %v802
        %1106 = vmatprep.subr.mxu0 %v811
        %1107 = vmatpush1.msra.mxu0 %v810
        %1108 = vmatprep.subr.mxu0 %v819
        %1109 = vmatpush1.msra.mxu0 %v818
        %1110 = vmatprep.subr.mxu0 %v827
        %1111 = vmatpush1.msra.mxu0 %v826
        %1112 = vmatprep.subr.mxu0 %v835
        %1113 = vmatpush1.msra.mxu0 %v834
        %1114 = vmatprep.subr.mxu0 %v843
        %1115 = vmatpush1.msra.mxu0 %v842
        %1116 = vmatprep.subr.mxu0 %v851
        %1117 = vmatpush1.msra.mxu0 %v850
        %1118 = vmatprep.subr.mxu0 %v859
        %1119 = vmatpush1.msra.mxu0 %v858
        %1120 = vmatprep.subr.mxu0 %v867
        %1121 = vmatpush1.msra.mxu0 %v866
        %1122 = vmatprep.subr.mxu0 %v875
        %1123 = vmatpush1.msra.mxu0 %v874
        %1124 = vmatprep.subr.mxu0 %v883
        %1125 = vmatpush1.msra.mxu0 %v882
        %1126 = vmatprep.subr.mxu0 %v891
        %1127 = vmatpush1.msra.mxu0 %v890
        %1128 = vmatprep.subr.mxu0 %v899
        %1129 = vmatpush1.msra.mxu0 %v898
        %1130 = vmatprep.subr.mxu0 %v907
        %1131 = vmatpush1.msra.mxu0 %v906
        %1132 = vmatprep.subr.mxu0 %v915
        %1133 = vmatpush1.msra.mxu0 %v914
        %1134 = vmatprep.subr.mxu0 0.0
        %1135 = vmatpush1.msra.mxu0 0.0
        %1136 = vmatprep.subr.mxu0 0.0
        %1137 = vmatpush1.msra.mxu0 0.0
        %1138 = vmatprep.subr.mxu0 0.0
        %1139 = vmatpush1.msra.mxu0 0.0
        %1140 = vmatprep.subr.mxu0 0.0
        %1141 = vmatpush1.msra.mxu0 0.0
        %1142 = vmatprep.subr.mxu0 0.0
        %1143 = vmatpush1.msra.mxu0 0.0
        %1144 = vmatprep.subr.mxu0 0.0
        %1145 = vmatpush1.msra.mxu0 0.0
        %1146 = vmatprep.subr.mxu0 0.0
        %1147 = vmatpush1.msra.mxu0 0.0
        %1148 = vmatprep.subr.mxu0 0.0
        %1149 = vmatpush1.msra.mxu0 0.0
        %1150 = vmatprep.subr.mxu0 0.0
        %1151 = vmatpush1.msra.mxu0 0.0
        %1152 = vmatprep.subr.mxu0 0.0
        %1153 = vmatpush1.msra.mxu0 0.0
        %1154 = vmatprep.subr.mxu0 0.0
        %1155 = vmatpush1.msra.mxu0 0.0
        %1156 = vmatprep.subr.mxu0 0.0
        %1157 = vmatpush1.msra.mxu0 0.0
        %1158 = vmatprep.subr.mxu0 0.0
        %1159 = vmatpush1.msra.mxu0 0.0
        %1160 = vmatprep.subr.mxu0 0.0
        %1161 = vmatpush1.msra.mxu0 0.0
        %1162 = vmatprep.subr.mxu0 0.0
        %1163 = vmatpush1.msra.mxu0 0.0
        %1164 = vmatprep.subr.mxu0 0.0
        %1165 = vmatpush1.msra.mxu0 0.0
        %1166 = vmatprep.mubr.f32.mxu0 0.0
        %1167 = vmatmul.mubr.f32.gmra.mrb[0].mxu0 %v789
        %v1168 = vpop.f32.mrb[0].mxu0
        %v1169 = vadd.f32 %v939, %v1168
        %v1170 = vpop.f32.mrb[0].mxu0
        %v1171 = vadd.f32 %v943, %v1170
        %1172 = vdwg.mxu0
        %1173 = vmatprep.subr.mxu0 %v797
        %1174 = vmatpush1.msra.mxu0 %v796
        %1175 = vmatprep.subr.mxu0 %v805
        %1176 = vmatpush1.msra.mxu0 %v804
        %1177 = vmatprep.subr.mxu0 %v813
        %1178 = vmatpush1.msra.mxu0 %v812
        %1179 = vmatprep.subr.mxu0 %v821
        %1180 = vmatpush1.msra.mxu0 %v820
        %1181 = vmatprep.subr.mxu0 %v829
        %1182 = vmatpush1.msra.mxu0 %v828
        %1183 = vmatprep.subr.mxu0 %v837
        %1184 = vmatpush1.msra.mxu0 %v836
        %1185 = vmatprep.subr.mxu0 %v845
        %1186 = vmatpush1.msra.mxu0 %v844
        %1187 = vmatprep.subr.mxu0 %v853
        %1188 = vmatpush1.msra.mxu0 %v852
        %1189 = vmatprep.subr.mxu0 %v861
        %1190 = vmatpush1.msra.mxu0 %v860
        %1191 = vmatprep.subr.mxu0 %v869
        %1192 = vmatpush1.msra.mxu0 %v868
        %1193 = vmatprep.subr.mxu0 %v877
        %1194 = vmatpush1.msra.mxu0 %v876
        %1195 = vmatprep.subr.mxu0 %v885
        %1196 = vmatpush1.msra.mxu0 %v884
        %1197 = vmatprep.subr.mxu0 %v893
        %1198 = vmatpush1.msra.mxu0 %v892
        %1199 = vmatprep.subr.mxu0 %v901
        %1200 = vmatpush1.msra.mxu0 %v900
        %1201 = vmatprep.subr.mxu0 %v909
        %1202 = vmatpush1.msra.mxu0 %v908
        %1203 = vmatprep.subr.mxu0 %v917
        %1204 = vmatpush1.msra.mxu0 %v916
        %1205 = vmatprep.subr.mxu0 0.0
        %1206 = vmatpush1.msra.mxu0 0.0
        %1207 = vmatprep.subr.mxu0 0.0
        %1208 = vmatpush1.msra.mxu0 0.0
        %1209 = vmatprep.subr.mxu0 0.0
        %1210 = vmatpush1.msra.mxu0 0.0
        %1211 = vmatprep.subr.mxu0 0.0
        %1212 = vmatpush1.msra.mxu0 0.0
        %1213 = vmatprep.subr.mxu0 0.0
        %1214 = vmatpush1.msra.mxu0 0.0
        %1215 = vmatprep.subr.mxu0 0.0
        %1216 = vmatpush1.msra.mxu0 0.0
        %1217 = vmatprep.subr.mxu0 0.0
        %1218 = vmatpush1.msra.mxu0 0.0
        %1219 = vmatprep.subr.mxu0 0.0
        %1220 = vmatpush1.msra.mxu0 0.0
        %1221 = vmatprep.subr.mxu0 0.0
        %1222 = vmatpush1.msra.mxu0 0.0
        %1223 = vmatprep.subr.mxu0 0.0
        %1224 = vmatpush1.msra.mxu0 0.0
        %1225 = vmatprep.subr.mxu0 0.0
        %1226 = vmatpush1.msra.mxu0 0.0
        %1227 = vmatprep.subr.mxu0 0.0
        %1228 = vmatpush1.msra.mxu0 0.0
        %1229 = vmatprep.subr.mxu0 0.0
        %1230 = vmatpush1.msra.mxu0 0.0
        %1231 = vmatprep.subr.mxu0 0.0
        %1232 = vmatpush1.msra.mxu0 0.0
        %1233 = vmatprep.subr.mxu0 0.0
        %1234 = vmatpush1.msra.mxu0 0.0
        %1235 = vmatprep.subr.mxu0 0.0
        %1236 = vmatpush1.msra.mxu0 0.0
        %1237 = vmatprep.mubr.f32.mxu0 0.0
        %1238 = vmatmul.mubr.f32.gmra.mrb[0].mxu0 %v789
        %v1239 = vpop.f32.mrb[0].mxu0
        %v1240 = vadd.f32 %v947, %v1239
        %v1241 = vpop.f32.mrb[0].mxu0
        %v1242 = vadd.f32 %v951, %v1241
        %1243 = vdwg.mxu0
        %v1244 = vmax.f32 %v1027, 0.0
        %v1245 = vmax.f32 %v1029, 0.0
        %v1246 = vmax.f32 %v1098, 0.0
        %v1247 = vmax.f32 %v1100, 0.0
        %v1248 = vmax.f32 %v1169, 0.0
        %v1249 = vmax.f32 %v1171, 0.0
        %v1250 = vmax.f32 %v1240, 0.0
        %v1251 = vmax.f32 %v1242, 0.0
        %v1252 = vld [vmem:[#allocation2] sm:$0xff]
        %v1253 = vrot.slane %v1244, 4
        %v1254 = vmax.f32 %v1244, %v1253
        %v1255 = vrot.slane %v1254, 2
        %v1256 = vmax.f32 %v1254, %v1255
        %v1257 = vrot.slane %v1256, 1
        %v1258 = vmax.f32 %v1256, %v1257
        %v1259 = vrot.slane %v1245, 4
        %v1260 = vmax.f32 %v1245, %v1259
        %v1261 = vrot.slane %v1260, 2
        %v1262 = vmax.f32 %v1260, %v1261
        %v1263 = vrot.slane %v1262, 1
        %v1264 = vmax.f32 %v1262, %v1263
        %v1265 = vrot.slane %v1246, 4
        %v1266 = vmax.f32 %v1246, %v1265
        %v1267 = vrot.slane %v1266, 2
        %v1268 = vmax.f32 %v1266, %v1267
        %v1269 = vrot.slane %v1268, 1
        %v1270 = vmax.f32 %v1268, %v1269
        %v1271 = vrot.slane %v1247, 4
        %v1272 = vmax.f32 %v1247, %v1271
        %v1273 = vrot.slane %v1272, 2
        %v1274 = vmax.f32 %v1272, %v1273
        %v1275 = vrot.slane %v1274, 1
        %v1276 = vmax.f32 %v1274, %v1275
        %v1277 = vrot.slane %v1248, 4
        %v1278 = vmax.f32 %v1248, %v1277
        %v1279 = vrot.slane %v1278, 2
        %v1280 = vmax.f32 %v1278, %v1279
        %v1281 = vrot.slane %v1280, 1
        %v1282 = vmax.f32 %v1280, %v1281
        %v1283 = vrot.slane %v1249, 4
        %v1284 = vmax.f32 %v1249, %v1283
        %v1285 = vrot.slane %v1284, 2
        %v1286 = vmax.f32 %v1284, %v1285
        %v1287 = vrot.slane %v1286, 1
        %v1288 = vmax.f32 %v1286, %v1287
        %v1289 = vrot.slane %v1250, 4
        %v1290 = vmax.f32 %v1250, %v1289
        %v1291 = vrot.slane %v1290, 2
        %v1292 = vmax.f32 %v1290, %v1291
        %v1293 = vrot.slane %v1292, 1
        %v1294 = vmax.f32 %v1292, %v1293
        %v1295 = vrot.slane %v1251, 4
        %v1296 = vmax.f32 %v1251, %v1295
        %v1297 = vrot.slane %v1296, 2
        %v1298 = vmax.f32 %v1296, %v1297
        %v1299 = vrot.slane %v1298, 1
        %v1300 = vmax.f32 %v1298, %v1299
        %v1309 = vcombine.low %v1258, %v1264
        %v1310 = vcombine.low %v1270, %v1276
        %v1311 = vcombine.low %v1282, %v1288
        %v1312 = vcombine.low %v1294, %v1300
        %v1314 = vunpack.c.l.s4 1966171168
        %v1315 = vunpack.c.0.s8 %v1314
        %v1316 = vlaneseq
        %v1317 = vshrl.u32 %v1316, 7
        %v1318 = vsub.s32 %v1315, %v1317
        %v1319 = vrot.slane %v1309, %v1318
        %v1321 = vunpack.c.l.s4 1966171168
        %v1322 = vunpack.c.0.s8 %v1321
        %v1323 = vlaneseq
        %v1324 = vshrl.u32 %v1323, 7
        %v1325 = vsub.s32 %v1322, %v1324
        %v1326 = vrot.slane %v1310, %v1325
        %v1328 = vunpack.c.l.s4 1966171168
        %v1329 = vunpack.c.0.s8 %v1328
        %v1330 = vlaneseq
        %v1331 = vshrl.u32 %v1330, 7
        %v1332 = vsub.s32 %v1329, %v1331
        %v1333 = vrot.slane %v1311, %v1332
        %v1335 = vunpack.c.l.s4 1966171168
        %v1336 = vunpack.c.0.s8 %v1335
        %v1337 = vlaneseq
        %v1338 = vshrl.u32 %v1337, 7
        %v1339 = vsub.s32 %v1336, %v1338
        %v1340 = vrot.slane %v1312, %v1339
        %v1341 = vcombine.low %v1319, %v1326
        %v1342 = vcombine.low %v1333, %v1340
        %v1344 = vunpack.c.l.s4 1966171168
        %v1345 = vunpack.c.0.s8 %v1344
        %v1346 = vlaneseq
        %v1347 = vshrl.u32 %v1346, 7
        %v1348 = vsub.s32 %v1345, %v1347
        %v1349 = vrot.slane %v1341, %v1348
        %v1351 = vunpack.c.l.s4 1966171168
        %v1352 = vunpack.c.0.s8 %v1351
        %v1353 = vlaneseq
        %v1354 = vshrl.u32 %v1353, 7
        %v1355 = vsub.s32 %v1352, %v1354
        %v1356 = vrot.slane %v1342, %v1355
        %v1357 = vcombine.low %v1349, %v1356
        %v1359 = vmax.f32 %v1252, %v1357
        %1360 = vst [vmem:[#allocation2] sm:$0xff] %v1359
        %p1361 = scmp.eq.s32.totalorder %s38, 1
        // Predicated region
        $region121: #{tpu_custom_call.1} parent=71 // pred_check
          %p1362 = pneg %p1361
        $region122: #{tpu_custom_call.1} parent=71 // pred_check_branch
          %1364 = sbr.rel (%p1362) target = $region124
        $region123: #{tpu_custom_call.1} parent=71 // pred_region
          %v1365 = vld [vmem:[#allocation2] sm:$0xff]
          %v1366 = vld [vmem:[#allocation14] sm:$0xff]
          %v1367 = vld [vmem:[#allocation14 + $0x8] sm:$0xff]
          %v1368 = vld [vmem:[#allocation14 + $0x10] sm:$0xff]
          %v1369 = vld [vmem:[#allocation14 + $0x18] sm:$0xff]
          %v1370 = vld [vmem:[#allocation14 + $0x20] sm:$0xff]
          %v1371 = vld [vmem:[#allocation14 + $0x28] sm:$0xff]
          %v1372 = vld [vmem:[#allocation14 + $0x30] sm:$0xff]
          %v1373 = vld [vmem:[#allocation14 + $0x38] sm:$0xff]
          %v1374 = vld [vmem:[#allocation14 + $0x40] sm:$0xff]
          %v1375 = vld [vmem:[#allocation14 + $0x48] sm:$0xff]
          %v1376 = vld [vmem:[#allocation14 + $0x50] sm:$0xff]
          %v1377 = vld [vmem:[#allocation14 + $0x58] sm:$0xff]
          %v1378 = vld [vmem:[#allocation14 + $0x60] sm:$0xff]
          %v1379 = vld [vmem:[#allocation14 + $0x68] sm:$0xff]
          %v1380 = vld [vmem:[#allocation14 + $0x70] sm:$0xff]
          %v1381 = vld [vmem:[#allocation14 + $0x78] sm:$0xff]
          %v1382 = vld [vmem:[#allocation14 + $0x80] sm:$0xff]
          %v1383 = vld [vmem:[#allocation14 + $0x88] sm:$0xff]
          %v1384 = vld [vmem:[#allocation14 + $0x90] sm:$0xff]
          %v1385 = vld [vmem:[#allocation14 + $0x98] sm:$0xff]
          %v1386 = vld [vmem:[#allocation14 + $0xa0] sm:$0xff]
          %v1387 = vld [vmem:[#allocation14 + $0xa8] sm:$0xff]
          %v1388 = vld [vmem:[#allocation14 + $0xb0] sm:$0xff]
          %v1389 = vld [vmem:[#allocation14 + $0xb8] sm:$0xff]
          %v1390 = vld [vmem:[#allocation14 + $0xc0] sm:$0xff]
          %v1391 = vld [vmem:[#allocation14 + $0xc8] sm:$0xff]
          %v1392 = vld [vmem:[#allocation14 + $0xd0] sm:$0xff]
          %v1393 = vld [vmem:[#allocation14 + $0xd8] sm:$0xff]
          %v1394 = vld [vmem:[#allocation14 + $0xe0] sm:$0xff]
          %v1395 = vld [vmem:[#allocation14 + $0xe8] sm:$0xff]
          %v1396 = vld [vmem:[#allocation14 + $0xf0] sm:$0xff]
          %v1397 = vld [vmem:[#allocation14 + $0xf8] sm:$0xff]
          %v1398 = vld [vmem:[#allocation14 + $0x100] sm:$0xff]
          %v1399 = vld [vmem:[#allocation14 + $0x108] sm:$0xff]
          %v1400 = vld [vmem:[#allocation14 + $0x110] sm:$0xff]
          %v1401 = vld [vmem:[#allocation14 + $0x118] sm:$0xff]
          %v1402 = vld [vmem:[#allocation14 + $0x120] sm:$0xff]
          %v1403 = vld [vmem:[#allocation14 + $0x128] sm:$0xff]
          %v1404 = vld [vmem:[#allocation14 + $0x130] sm:$0xff]
          %v1405 = vld [vmem:[#allocation14 + $0x138] sm:$0xff]
          %v1406 = vld [vmem:[#allocation14 + $0x140] sm:$0xff]
          %v1407 = vld [vmem:[#allocation14 + $0x148] sm:$0xff]
          %v1408 = vld [vmem:[#allocation14 + $0x150] sm:$0xff]
          %v1409 = vld [vmem:[#allocation14 + $0x158] sm:$0xff]
          %v1410 = vld [vmem:[#allocation14 + $0x160] sm:$0xff]
          %v1411 = vld [vmem:[#allocation14 + $0x168] sm:$0xff]
          %v1412 = vld [vmem:[#allocation14 + $0x170] sm:$0xff]
          %v1413 = vld [vmem:[#allocation14 + $0x178] sm:$0xff]
          %v1414 = vld [vmem:[#allocation14 + $0x180] sm:$0xff]
          %v1415 = vld [vmem:[#allocation14 + $0x188] sm:$0xff]
          %v1416 = vld [vmem:[#allocation14 + $0x190] sm:$0xff]
          %v1417 = vld [vmem:[#allocation14 + $0x198] sm:$0xff]
          %v1418 = vld [vmem:[#allocation14 + $0x1a0] sm:$0xff]
          %v1419 = vld [vmem:[#allocation14 + $0x1a8] sm:$0xff]
          %v1420 = vld [vmem:[#allocation14 + $0x1b0] sm:$0xff]
          %v1421 = vld [vmem:[#allocation14 + $0x1b8] sm:$0xff]
          %v1422 = vld [vmem:[#allocation14 + $0x1c0] sm:$0xff]
          %v1423 = vld [vmem:[#allocation14 + $0x1c8] sm:$0xff]
          %v1424 = vld [vmem:[#allocation14 + $0x1d0] sm:$0xff]
          %v1425 = vld [vmem:[#allocation14 + $0x1d8] sm:$0xff]
          %v1426 = vld [vmem:[#allocation14 + $0x1e0] sm:$0xff]
          %v1427 = vld [vmem:[#allocation14 + $0x1e8] sm:$0xff]
          %v1428 = vld [vmem:[#allocation14 + $0x1f0] sm:$0xff]
          %v1429 = vld [vmem:[#allocation14 + $0x1f8] sm:$0xff]
          %v1430 = vld [vmem:[#allocation14 + $0x200] sm:$0xff]
          %v1431 = vld [vmem:[#allocation14 + $0x208] sm:$0xff]
          %v1432 = vld [vmem:[#allocation14 + $0x210] sm:$0xff]
          %v1433 = vld [vmem:[#allocation14 + $0x218] sm:$0xff]
          %v1434 = vld [vmem:[#allocation14 + $0x220] sm:$0xff]
          %v1435 = vld [vmem:[#allocation14 + $0x228] sm:$0xff]
          %v1436 = vld [vmem:[#allocation14 + $0x230] sm:$0xff]
          %v1437 = vld [vmem:[#allocation14 + $0x238] sm:$0xff]
          %v1438 = vld [vmem:[#allocation14 + $0x240] sm:$0xff]
          %v1439 = vld [vmem:[#allocation14 + $0x248] sm:$0xff]
          %v1440 = vld [vmem:[#allocation14 + $0x250] sm:$0xff]
          %v1441 = vld [vmem:[#allocation14 + $0x258] sm:$0xff]
          %v1442 = vld [vmem:[#allocation14 + $0x260] sm:$0xff]
          %v1443 = vld [vmem:[#allocation14 + $0x268] sm:$0xff]
          %v1444 = vld [vmem:[#allocation14 + $0x270] sm:$0xff]
          %v1445 = vld [vmem:[#allocation14 + $0x278] sm:$0xff]
          %v1446 = vld [vmem:[#allocation14 + $0x280] sm:$0xff]
          %v1447 = vld [vmem:[#allocation14 + $0x288] sm:$0xff]
          %v1448 = vld [vmem:[#allocation14 + $0x290] sm:$0xff]
          %v1449 = vld [vmem:[#allocation14 + $0x298] sm:$0xff]
          %v1450 = vld [vmem:[#allocation14 + $0x2a0] sm:$0xff]
          %v1451 = vld [vmem:[#allocation14 + $0x2a8] sm:$0xff]
          %v1452 = vld [vmem:[#allocation14 + $0x2b0] sm:$0xff]
          %v1453 = vld [vmem:[#allocation14 + $0x2b8] sm:$0xff]
          %v1454 = vld [vmem:[#allocation14 + $0x2c0] sm:$0xff]
          %v1455 = vld [vmem:[#allocation14 + $0x2c8] sm:$0xff]
          %v1456 = vld [vmem:[#allocation14 + $0x2d0] sm:$0xff]
          %v1457 = vld [vmem:[#allocation14 + $0x2d8] sm:$0xff]
          %v1458 = vld [vmem:[#allocation14 + $0x2e0] sm:$0xff]
          %v1459 = vld [vmem:[#allocation14 + $0x2e8] sm:$0xff]
          %v1460 = vld [vmem:[#allocation14 + $0x2f0] sm:$0xff]
          %v1461 = vld [vmem:[#allocation14 + $0x2f8] sm:$0xff]
          %v1462 = vld [vmem:[#allocation14 + $0x300] sm:$0xff]
          %v1463 = vld [vmem:[#allocation14 + $0x308] sm:$0xff]
          %v1464 = vld [vmem:[#allocation14 + $0x310] sm:$0xff]
          %v1465 = vld [vmem:[#allocation14 + $0x318] sm:$0xff]
          %v1466 = vld [vmem:[#allocation14 + $0x320] sm:$0xff]
          %v1467 = vld [vmem:[#allocation14 + $0x328] sm:$0xff]
          %v1468 = vld [vmem:[#allocation14 + $0x330] sm:$0xff]
          %v1469 = vld [vmem:[#allocation14 + $0x338] sm:$0xff]
          %v1470 = vld [vmem:[#allocation14 + $0x340] sm:$0xff]
          %v1471 = vld [vmem:[#allocation14 + $0x348] sm:$0xff]
          %v1472 = vld [vmem:[#allocation14 + $0x350] sm:$0xff]
          %v1473 = vld [vmem:[#allocation14 + $0x358] sm:$0xff]
          %v1474 = vld [vmem:[#allocation14 + $0x360] sm:$0xff]
          %v1475 = vld [vmem:[#allocation14 + $0x368] sm:$0xff]
          %v1476 = vld [vmem:[#allocation14 + $0x370] sm:$0xff]
          %v1477 = vld [vmem:[#allocation14 + $0x378] sm:$0xff]
          %v1478 = vld [vmem:[#allocation14 + $0x380] sm:$0xff]
          %v1479 = vld [vmem:[#allocation14 + $0x388] sm:$0xff]
          %v1480 = vld [vmem:[#allocation14 + $0x390] sm:$0xff]
          %v1481 = vld [vmem:[#allocation14 + $0x398] sm:$0xff]
          %v1482 = vld [vmem:[#allocation14 + $0x3a0] sm:$0xff]
          %v1483 = vld [vmem:[#allocation14 + $0x3a8] sm:$0xff]
          %v1484 = vld [vmem:[#allocation14 + $0x3b0] sm:$0xff]
          %v1485 = vld [vmem:[#allocation14 + $0x3b8] sm:$0xff]
          %v1486 = vld [vmem:[#allocation14 + $0x3c0] sm:$0xff]
          %v1487 = vld [vmem:[#allocation14 + $0x3c8] sm:$0xff]
          %v1488 = vld [vmem:[#allocation14 + $0x3d0] sm:$0xff]
          %v1489 = vld [vmem:[#allocation14 + $0x3d8] sm:$0xff]
          %v1490 = vld [vmem:[#allocation14 + $0x3e0] sm:$0xff]
          %v1491 = vld [vmem:[#allocation14 + $0x3e8] sm:$0xff]
          %v1492 = vld [vmem:[#allocation14 + $0x3f0] sm:$0xff]
          %v1493 = vld [vmem:[#allocation14 + $0x3f8] sm:$0xff]
          %v1494 = vld [vmem:[#allocation14 + $0x400] sm:$0xff]
          %v1495 = vld [vmem:[#allocation14 + $0x408] sm:$0xff]
          %v1496 = vld [vmem:[#allocation14 + $0x410] sm:$0xff]
          %v1497 = vld [vmem:[#allocation14 + $0x418] sm:$0xff]
          %v1498 = vld [vmem:[#allocation14 + $0x420] sm:$0xff]
          %v1499 = vld [vmem:[#allocation14 + $0x428] sm:$0xff]
          %v1500 = vld [vmem:[#allocation14 + $0x430] sm:$0xff]
          %v1501 = vld [vmem:[#allocation14 + $0x438] sm:$0xff]
          %v1502 = vld [vmem:[#allocation14 + $0x440] sm:$0xff]
          %v1503 = vld [vmem:[#allocation14 + $0x448] sm:$0xff]
          %v1504 = vld [vmem:[#allocation14 + $0x450] sm:$0xff]
          %v1505 = vld [vmem:[#allocation14 + $0x458] sm:$0xff]
          %v1506 = vld [vmem:[#allocation14 + $0x460] sm:$0xff]
          %v1507 = vld [vmem:[#allocation14 + $0x468] sm:$0xff]
          %v1508 = vld [vmem:[#allocation14 + $0x470] sm:$0xff]
          %v1509 = vld [vmem:[#allocation14 + $0x478] sm:$0xff]
          %v1510 = vld [vmem:[#allocation14 + $0x480] sm:$0xff]
          %v1511 = vld [vmem:[#allocation14 + $0x488] sm:$0xff]
          %v1512 = vld [vmem:[#allocation14 + $0x490] sm:$0xff]
          %v1513 = vld [vmem:[#allocation14 + $0x498] sm:$0xff]
          %v1514 = vld [vmem:[#allocation14 + $0x4a0] sm:$0xff]
          %v1515 = vld [vmem:[#allocation14 + $0x4a8] sm:$0xff]
          %v1516 = vld [vmem:[#allocation14 + $0x4b0] sm:$0xff]
          %v1517 = vld [vmem:[#allocation14 + $0x4b8] sm:$0xff]
          %v1518 = vld [vmem:[#allocation14 + $0x4c0] sm:$0xff]
          %v1519 = vld [vmem:[#allocation14 + $0x4c8] sm:$0xff]
          %v1520 = vld [vmem:[#allocation14 + $0x4d0] sm:$0xff]
          %v1521 = vld [vmem:[#allocation14 + $0x4d8] sm:$0xff]
          %v1522 = vld [vmem:[#allocation14 + $0x4e0] sm:$0xff]
          %v1523 = vld [vmem:[#allocation14 + $0x4e8] sm:$0xff]
          %v1524 = vld [vmem:[#allocation14 + $0x4f0] sm:$0xff]
          %v1525 = vld [vmem:[#allocation14 + $0x4f8] sm:$0xff]
          %v1526 = vld [vmem:[#allocation14 + $0x500] sm:$0xff]
          %v1527 = vld [vmem:[#allocation14 + $0x508] sm:$0xff]
          %v1528 = vld [vmem:[#allocation14 + $0x510] sm:$0xff]
          %v1529 = vld [vmem:[#allocation14 + $0x518] sm:$0xff]
          %v1530 = vld [vmem:[#allocation14 + $0x520] sm:$0xff]
          %v1531 = vld [vmem:[#allocation14 + $0x528] sm:$0xff]
          %v1532 = vld [vmem:[#allocation14 + $0x530] sm:$0xff]
          %v1533 = vld [vmem:[#allocation14 + $0x538] sm:$0xff]
          %v1534 = vld [vmem:[#allocation14 + $0x540] sm:$0xff]
          %v1535 = vld [vmem:[#allocation14 + $0x548] sm:$0xff]
          %v1536 = vld [vmem:[#allocation14 + $0x550] sm:$0xff]
          %v1537 = vld [vmem:[#allocation14 + $0x558] sm:$0xff]
          %v1538 = vld [vmem:[#allocation14 + $0x560] sm:$0xff]
          %v1539 = vld [vmem:[#allocation14 + $0x568] sm:$0xff]
          %v1540 = vld [vmem:[#allocation14 + $0x570] sm:$0xff]
          %v1541 = vld [vmem:[#allocation14 + $0x578] sm:$0xff]
          %v1542 = vld [vmem:[#allocation14 + $0x580] sm:$0xff]
          %v1543 = vld [vmem:[#allocation14 + $0x588] sm:$0xff]
          %v1544 = vld [vmem:[#allocation14 + $0x590] sm:$0xff]
          %v1545 = vld [vmem:[#allocation14 + $0x598] sm:$0xff]
          %v1546 = vld [vmem:[#allocation14 + $0x5a0] sm:$0xff]
          %v1547 = vld [vmem:[#allocation14 + $0x5a8] sm:$0xff]
          %v1548 = vld [vmem:[#allocation14 + $0x5b0] sm:$0xff]
          %v1549 = vld [vmem:[#allocation14 + $0x5b8] sm:$0xff]
          %v1550 = vld [vmem:[#allocation14 + $0x5c0] sm:$0xff]
          %v1551 = vld [vmem:[#allocation14 + $0x5c8] sm:$0xff]
          %v1552 = vld [vmem:[#allocation14 + $0x5d0] sm:$0xff]
          %v1553 = vld [vmem:[#allocation14 + $0x5d8] sm:$0xff]
          %v1554 = vld [vmem:[#allocation14 + $0x5e0] sm:$0xff]
          %v1555 = vld [vmem:[#allocation14 + $0x5e8] sm:$0xff]
          %v1556 = vld [vmem:[#allocation14 + $0x5f0] sm:$0xff]
          %v1557 = vld [vmem:[#allocation14 + $0x5f8] sm:$0xff]
          %v1558 = vld [vmem:[#allocation14 + $0x600] sm:$0xff]
          %v1559 = vld [vmem:[#allocation14 + $0x608] sm:$0xff]
          %v1560 = vld [vmem:[#allocation14 + $0x610] sm:$0xff]
          %v1561 = vld [vmem:[#allocation14 + $0x618] sm:$0xff]
          %v1562 = vld [vmem:[#allocation14 + $0x620] sm:$0xff]
          %v1563 = vld [vmem:[#allocation14 + $0x628] sm:$0xff]
          %v1564 = vld [vmem:[#allocation14 + $0x630] sm:$0xff]
          %v1565 = vld [vmem:[#allocation14 + $0x638] sm:$0xff]
          %v1566 = vld [vmem:[#allocation14 + $0x640] sm:$0xff]
          %v1567 = vld [vmem:[#allocation14 + $0x648] sm:$0xff]
          %v1568 = vld [vmem:[#allocation14 + $0x650] sm:$0xff]
          %v1569 = vld [vmem:[#allocation14 + $0x658] sm:$0xff]
          %v1570 = vld [vmem:[#allocation14 + $0x660] sm:$0xff]
          %v1571 = vld [vmem:[#allocation14 + $0x668] sm:$0xff]
          %v1572 = vld [vmem:[#allocation14 + $0x670] sm:$0xff]
          %v1573 = vld [vmem:[#allocation14 + $0x678] sm:$0xff]
          %v1574 = vld [vmem:[#allocation14 + $0x680] sm:$0xff]
          %v1575 = vld [vmem:[#allocation14 + $0x688] sm:$0xff]
          %v1576 = vld [vmem:[#allocation14 + $0x690] sm:$0xff]
          %v1577 = vld [vmem:[#allocation14 + $0x698] sm:$0xff]
          %v1578 = vld [vmem:[#allocation14 + $0x6a0] sm:$0xff]
          %v1579 = vld [vmem:[#allocation14 + $0x6a8] sm:$0xff]
          %v1580 = vld [vmem:[#allocation14 + $0x6b0] sm:$0xff]
          %v1581 = vld [vmem:[#allocation14 + $0x6b8] sm:$0xff]
          %v1582 = vld [vmem:[#allocation14 + $0x6c0] sm:$0xff]
          %v1583 = vld [vmem:[#allocation14 + $0x6c8] sm:$0xff]
          %v1584 = vld [vmem:[#allocation14 + $0x6d0] sm:$0xff]
          %v1585 = vld [vmem:[#allocation14 + $0x6d8] sm:$0xff]
          %v1586 = vld [vmem:[#allocation14 + $0x6e0] sm:$0xff]
          %v1587 = vld [vmem:[#allocation14 + $0x6e8] sm:$0xff]
          %v1588 = vld [vmem:[#allocation14 + $0x6f0] sm:$0xff]
          %v1589 = vld [vmem:[#allocation14 + $0x6f8] sm:$0xff]
          %v1590 = vld [vmem:[#allocation14 + $0x700] sm:$0xff]
          %v1591 = vld [vmem:[#allocation14 + $0x708] sm:$0xff]
          %v1592 = vld [vmem:[#allocation14 + $0x710] sm:$0xff]
          %v1593 = vld [vmem:[#allocation14 + $0x718] sm:$0xff]
          %v1594 = vld [vmem:[#allocation14 + $0x720] sm:$0xff]
          %v1595 = vld [vmem:[#allocation14 + $0x728] sm:$0xff]
          %v1596 = vld [vmem:[#allocation14 + $0x730] sm:$0xff]
          %v1597 = vld [vmem:[#allocation14 + $0x738] sm:$0xff]
          %v1598 = vld [vmem:[#allocation14 + $0x740] sm:$0xff]
          %v1599 = vld [vmem:[#allocation14 + $0x748] sm:$0xff]
          %v1600 = vld [vmem:[#allocation14 + $0x750] sm:$0xff]
          %v1601 = vld [vmem:[#allocation14 + $0x758] sm:$0xff]
          %v1602 = vld [vmem:[#allocation14 + $0x760] sm:$0xff]
          %v1603 = vld [vmem:[#allocation14 + $0x768] sm:$0xff]
          %v1604 = vld [vmem:[#allocation14 + $0x770] sm:$0xff]
          %v1605 = vld [vmem:[#allocation14 + $0x778] sm:$0xff]
          %v1606 = vld [vmem:[#allocation14 + $0x780] sm:$0xff]
          %v1607 = vld [vmem:[#allocation14 + $0x788] sm:$0xff]
          %v1608 = vld [vmem:[#allocation14 + $0x790] sm:$0xff]
          %v1609 = vld [vmem:[#allocation14 + $0x798] sm:$0xff]
          %v1610 = vld [vmem:[#allocation14 + $0x7a0] sm:$0xff]
          %v1611 = vld [vmem:[#allocation14 + $0x7a8] sm:$0xff]
          %v1612 = vld [vmem:[#allocation14 + $0x7b0] sm:$0xff]
          %v1613 = vld [vmem:[#allocation14 + $0x7b8] sm:$0xff]
          %v1614 = vld [vmem:[#allocation14 + $0x7c0] sm:$0xff]
          %v1615 = vld [vmem:[#allocation14 + $0x7c8] sm:$0xff]
          %v1616 = vld [vmem:[#allocation14 + $0x7d0] sm:$0xff]
          %v1617 = vld [vmem:[#allocation14 + $0x7d8] sm:$0xff]
          %v1618 = vld [vmem:[#allocation14 + $0x7e0] sm:$0xff]
          %v1619 = vld [vmem:[#allocation14 + $0x7e8] sm:$0xff]
          %v1620 = vld [vmem:[#allocation14 + $0x7f0] sm:$0xff]
          %v1621 = vld [vmem:[#allocation14 + $0x7f8] sm:$0xff]
          %v1622 = vld [vmem:[#allocation14 + $0x800] sm:$0xff]
          %v1623 = vld [vmem:[#allocation14 + $0x808] sm:$0xff]
          %v1624 = vld [vmem:[#allocation14 + $0x810] sm:$0xff]
          %v1625 = vld [vmem:[#allocation14 + $0x818] sm:$0xff]
          %v1626 = vld [vmem:[#allocation14 + $0x820] sm:$0xff]
          %v1627 = vld [vmem:[#allocation14 + $0x828] sm:$0xff]
          %v1628 = vld [vmem:[#allocation14 + $0x830] sm:$0xff]
          %v1629 = vld [vmem:[#allocation14 + $0x838] sm:$0xff]
          %v1630 = vld [vmem:[#allocation14 + $0x840] sm:$0xff]
          %v1631 = vld [vmem:[#allocation14 + $0x848] sm:$0xff]
          %v1632 = vld [vmem:[#allocation14 + $0x850] sm:$0xff]
          %v1633 = vld [vmem:[#allocation14 + $0x858] sm:$0xff]
          %v1634 = vld [vmem:[#allocation14 + $0x860] sm:$0xff]
          %v1635 = vld [vmem:[#allocation14 + $0x868] sm:$0xff]
          %v1636 = vld [vmem:[#allocation14 + $0x870] sm:$0xff]
          %v1637 = vld [vmem:[#allocation14 + $0x878] sm:$0xff]
          %v1638 = vld [vmem:[#allocation14 + $0x880] sm:$0xff]
          %v1639 = vld [vmem:[#allocation14 + $0x888] sm:$0xff]
          %v1640 = vld [vmem:[#allocation14 + $0x890] sm:$0xff]
          %v1641 = vld [vmem:[#allocation14 + $0x898] sm:$0xff]
          %v1642 = vld [vmem:[#allocation14 + $0x8a0] sm:$0xff]
          %v1643 = vld [vmem:[#allocation14 + $0x8a8] sm:$0xff]
          %v1644 = vld [vmem:[#allocation14 + $0x8b0] sm:$0xff]
          %v1645 = vld [vmem:[#allocation14 + $0x8b8] sm:$0xff]
          %v1646 = vld [vmem:[#allocation14 + $0x8c0] sm:$0xff]
          %v1647 = vld [vmem:[#allocation14 + $0x8c8] sm:$0xff]
          %v1648 = vld [vmem:[#allocation14 + $0x8d0] sm:$0xff]
          %v1649 = vld [vmem:[#allocation14 + $0x8d8] sm:$0xff]
          %v1650 = vld [vmem:[#allocation14 + $0x8e0] sm:$0xff]
          %v1651 = vld [vmem:[#allocation14 + $0x8e8] sm:$0xff]
          %v1652 = vld [vmem:[#allocation14 + $0x8f0] sm:$0xff]
          %v1653 = vld [vmem:[#allocation14 + $0x8f8] sm:$0xff]
          %v1654 = vld [vmem:[#allocation14 + $0x900] sm:$0xff]
          %v1655 = vld [vmem:[#allocation14 + $0x908] sm:$0xff]
          %v1656 = vld [vmem:[#allocation14 + $0x910] sm:$0xff]
          %v1657 = vld [vmem:[#allocation14 + $0x918] sm:$0xff]
          %v1658 = vld [vmem:[#allocation14 + $0x920] sm:$0xff]
          %v1659 = vld [vmem:[#allocation14 + $0x928] sm:$0xff]
          %v1660 = vld [vmem:[#allocation14 + $0x930] sm:$0xff]
          %v1661 = vld [vmem:[#allocation14 + $0x938] sm:$0xff]
          %v1662 = vld [vmem:[#allocation14 + $0x940] sm:$0xff]
          %v1663 = vld [vmem:[#allocation14 + $0x948] sm:$0xff]
          %v1664 = vld [vmem:[#allocation14 + $0x950] sm:$0xff]
          %v1665 = vld [vmem:[#allocation14 + $0x958] sm:$0xff]
          %v1666 = vld [vmem:[#allocation14 + $0x960] sm:$0xff]
          %v1667 = vld [vmem:[#allocation14 + $0x968] sm:$0xff]
          %v1668 = vld [vmem:[#allocation14 + $0x970] sm:$0xff]
          %v1669 = vld [vmem:[#allocation14 + $0x978] sm:$0xff]
          %v1670 = vld [vmem:[#allocation14 + $0x980] sm:$0xff]
          %v1671 = vld [vmem:[#allocation14 + $0x988] sm:$0xff]
          %v1672 = vld [vmem:[#allocation14 + $0x990] sm:$0xff]
          %v1673 = vld [vmem:[#allocation14 + $0x998] sm:$0xff]
          %v1674 = vld [vmem:[#allocation14 + $0x9a0] sm:$0xff]
          %v1675 = vld [vmem:[#allocation14 + $0x9a8] sm:$0xff]
          %v1676 = vld [vmem:[#allocation14 + $0x9b0] sm:$0xff]
          %v1677 = vld [vmem:[#allocation14 + $0x9b8] sm:$0xff]
          %v1678 = vld [vmem:[#allocation14 + $0x9c0] sm:$0xff]
          %v1679 = vld [vmem:[#allocation14 + $0x9c8] sm:$0xff]
          %v1680 = vld [vmem:[#allocation14 + $0x9d0] sm:$0xff]
          %v1681 = vld [vmem:[#allocation14 + $0x9d8] sm:$0xff]
          %v1682 = vld [vmem:[#allocation14 + $0x9e0] sm:$0xff]
          %v1683 = vld [vmem:[#allocation14 + $0x9e8] sm:$0xff]
          %v1684 = vld [vmem:[#allocation14 + $0x9f0] sm:$0xff]
          %v1685 = vld [vmem:[#allocation14 + $0x9f8] sm:$0xff]
          %v1686 = vld [vmem:[#allocation14 + $0xa00] sm:$0xff]
          %v1687 = vld [vmem:[#allocation14 + $0xa08] sm:$0xff]
          %v1688 = vld [vmem:[#allocation14 + $0xa10] sm:$0xff]
          %v1689 = vld [vmem:[#allocation14 + $0xa18] sm:$0xff]
          %v1690 = vld [vmem:[#allocation14 + $0xa20] sm:$0xff]
          %v1691 = vld [vmem:[#allocation14 + $0xa28] sm:$0xff]
          %v1692 = vld [vmem:[#allocation14 + $0xa30] sm:$0xff]
          %v1693 = vld [vmem:[#allocation14 + $0xa38] sm:$0xff]
          %v1694 = vld [vmem:[#allocation14 + $0xa40] sm:$0xff]
          %v1695 = vld [vmem:[#allocation14 + $0xa48] sm:$0xff]
          %v1696 = vld [vmem:[#allocation14 + $0xa50] sm:$0xff]
          %v1697 = vld [vmem:[#allocation14 + $0xa58] sm:$0xff]
          %v1698 = vld [vmem:[#allocation14 + $0xa60] sm:$0xff]
          %v1699 = vld [vmem:[#allocation14 + $0xa68] sm:$0xff]
          %v1700 = vld [vmem:[#allocation14 + $0xa70] sm:$0xff]
          %v1701 = vld [vmem:[#allocation14 + $0xa78] sm:$0xff]
          %v1702 = vld [vmem:[#allocation14 + $0xa80] sm:$0xff]
          %v1703 = vld [vmem:[#allocation14 + $0xa88] sm:$0xff]
          %v1704 = vld [vmem:[#allocation14 + $0xa90] sm:$0xff]
          %v1705 = vld [vmem:[#allocation14 + $0xa98] sm:$0xff]
          %v1706 = vld [vmem:[#allocation14 + $0xaa0] sm:$0xff]
          %v1707 = vld [vmem:[#allocation14 + $0xaa8] sm:$0xff]
          %v1708 = vld [vmem:[#allocation14 + $0xab0] sm:$0xff]
          %v1709 = vld [vmem:[#allocation14 + $0xab8] sm:$0xff]
          %v1710 = vld [vmem:[#allocation14 + $0xac0] sm:$0xff]
          %v1711 = vld [vmem:[#allocation14 + $0xac8] sm:$0xff]
          %v1712 = vld [vmem:[#allocation14 + $0xad0] sm:$0xff]
          %v1713 = vld [vmem:[#allocation14 + $0xad8] sm:$0xff]
          %v1714 = vld [vmem:[#allocation14 + $0xae0] sm:$0xff]
          %v1715 = vld [vmem:[#allocation14 + $0xae8] sm:$0xff]
          %v1716 = vld [vmem:[#allocation14 + $0xaf0] sm:$0xff]
          %v1717 = vld [vmem:[#allocation14 + $0xaf8] sm:$0xff]
          %v1718 = vld [vmem:[#allocation14 + $0xb00] sm:$0xff]
          %v1719 = vld [vmem:[#allocation14 + $0xb08] sm:$0xff]
          %v1720 = vld [vmem:[#allocation14 + $0xb10] sm:$0xff]
          %v1721 = vld [vmem:[#allocation14 + $0xb18] sm:$0xff]
          %v1722 = vld [vmem:[#allocation14 + $0xb20] sm:$0xff]
          %v1723 = vld [vmem:[#allocation14 + $0xb28] sm:$0xff]
          %v1724 = vld [vmem:[#allocation14 + $0xb30] sm:$0xff]
          %v1725 = vld [vmem:[#allocation14 + $0xb38] sm:$0xff]
          %v1726 = vld [vmem:[#allocation14 + $0xb40] sm:$0xff]
          %v1727 = vld [vmem:[#allocation14 + $0xb48] sm:$0xff]
          %v1728 = vld [vmem:[#allocation14 + $0xb50] sm:$0xff]
          %v1729 = vld [vmem:[#allocation14 + $0xb58] sm:$0xff]
          %v1730 = vld [vmem:[#allocation14 + $0xb60] sm:$0xff]
          %v1731 = vld [vmem:[#allocation14 + $0xb68] sm:$0xff]
          %v1732 = vld [vmem:[#allocation14 + $0xb70] sm:$0xff]
          %v1733 = vld [vmem:[#allocation14 + $0xb78] sm:$0xff]
          %v1734 = vld [vmem:[#allocation14 + $0xb80] sm:$0xff]
          %v1735 = vld [vmem:[#allocation14 + $0xb88] sm:$0xff]
          %v1736 = vld [vmem:[#allocation14 + $0xb90] sm:$0xff]
          %v1737 = vld [vmem:[#allocation14 + $0xb98] sm:$0xff]
          %v1738 = vld [vmem:[#allocation14 + $0xba0] sm:$0xff]
          %v1739 = vld [vmem:[#allocation14 + $0xba8] sm:$0xff]
          %v1740 = vld [vmem:[#allocation14 + $0xbb0] sm:$0xff]
          %v1741 = vld [vmem:[#allocation14 + $0xbb8] sm:$0xff]
          %v1742 = vld [vmem:[#allocation14 + $0xbc0] sm:$0xff]
          %v1743 = vld [vmem:[#allocation14 + $0xbc8] sm:$0xff]
          %v1744 = vld [vmem:[#allocation14 + $0xbd0] sm:$0xff]
          %v1745 = vld [vmem:[#allocation14 + $0xbd8] sm:$0xff]
          %v1746 = vld [vmem:[#allocation14 + $0xbe0] sm:$0xff]
          %v1747 = vld [vmem:[#allocation14 + $0xbe8] sm:$0xff]
          %v1748 = vld [vmem:[#allocation14 + $0xbf0] sm:$0xff]
          %v1749 = vld [vmem:[#allocation14 + $0xbf8] sm:$0xff]
          %v1750 = vld [vmem:[#allocation14 + $0xc00] sm:$0xff]
          %v1751 = vld [vmem:[#allocation14 + $0xc08] sm:$0xff]
          %v1752 = vld [vmem:[#allocation14 + $0xc10] sm:$0xff]
          %v1753 = vld [vmem:[#allocation14 + $0xc18] sm:$0xff]
          %v1754 = vld [vmem:[#allocation14 + $0xc20] sm:$0xff]
          %v1755 = vld [vmem:[#allocation14 + $0xc28] sm:$0xff]
          %v1756 = vld [vmem:[#allocation14 + $0xc30] sm:$0xff]
          %v1757 = vld [vmem:[#allocation14 + $0xc38] sm:$0xff]
          %v1758 = vld [vmem:[#allocation14 + $0xc40] sm:$0xff]
          %v1759 = vld [vmem:[#allocation14 + $0xc48] sm:$0xff]
          %v1760 = vld [vmem:[#allocation14 + $0xc50] sm:$0xff]
          %v1761 = vld [vmem:[#allocation14 + $0xc58] sm:$0xff]
          %v1762 = vld [vmem:[#allocation14 + $0xc60] sm:$0xff]
          %v1763 = vld [vmem:[#allocation14 + $0xc68] sm:$0xff]
          %v1764 = vld [vmem:[#allocation14 + $0xc70] sm:$0xff]
          %v1765 = vld [vmem:[#allocation14 + $0xc78] sm:$0xff]
          %v1766 = vld [vmem:[#allocation14 + $0xc80] sm:$0xff]
          %v1767 = vld [vmem:[#allocation14 + $0xc88] sm:$0xff]
          %v1768 = vld [vmem:[#allocation14 + $0xc90] sm:$0xff]
          %v1769 = vld [vmem:[#allocation14 + $0xc98] sm:$0xff]
          %v1770 = vld [vmem:[#allocation14 + $0xca0] sm:$0xff]
          %v1771 = vld [vmem:[#allocation14 + $0xca8] sm:$0xff]
          %v1772 = vld [vmem:[#allocation14 + $0xcb0] sm:$0xff]
          %v1773 = vld [vmem:[#allocation14 + $0xcb8] sm:$0xff]
          %v1774 = vld [vmem:[#allocation14 + $0xcc0] sm:$0xff]
          %v1775 = vld [vmem:[#allocation14 + $0xcc8] sm:$0xff]
          %v1776 = vld [vmem:[#allocation14 + $0xcd0] sm:$0xff]
          %v1777 = vld [vmem:[#allocation14 + $0xcd8] sm:$0xff]
          %v1778 = vld [vmem:[#allocation14 + $0xce0] sm:$0xff]
          %v1779 = vld [vmem:[#allocation14 + $0xce8] sm:$0xff]
          %v1780 = vld [vmem:[#allocation14 + $0xcf0] sm:$0xff]
          %v1781 = vld [vmem:[#allocation14 + $0xcf8] sm:$0xff]
          %v1782 = vld [vmem:[#allocation14 + $0xd00] sm:$0xff]
          %v1783 = vld [vmem:[#allocation14 + $0xd08] sm:$0xff]
          %v1784 = vld [vmem:[#allocation14 + $0xd10] sm:$0xff]
          %v1785 = vld [vmem:[#allocation14 + $0xd18] sm:$0xff]
          %v1786 = vld [vmem:[#allocation14 + $0xd20] sm:$0xff]
          %v1787 = vld [vmem:[#allocation14 + $0xd28] sm:$0xff]
          %v1788 = vld [vmem:[#allocation14 + $0xd30] sm:$0xff]
          %v1789 = vld [vmem:[#allocation14 + $0xd38] sm:$0xff]
          %v1790 = vld [vmem:[#allocation14 + $0xd40] sm:$0xff]
          %v1791 = vld [vmem:[#allocation14 + $0xd48] sm:$0xff]
          %v1792 = vld [vmem:[#allocation14 + $0xd50] sm:$0xff]
          %v1793 = vld [vmem:[#allocation14 + $0xd58] sm:$0xff]
          %v1794 = vld [vmem:[#allocation14 + $0xd60] sm:$0xff]
          %v1795 = vld [vmem:[#allocation14 + $0xd68] sm:$0xff]
          %v1796 = vld [vmem:[#allocation14 + $0xd70] sm:$0xff]
          %v1797 = vld [vmem:[#allocation14 + $0xd78] sm:$0xff]
          %v1798 = vld [vmem:[#allocation14 + $0xd80] sm:$0xff]
          %v1799 = vld [vmem:[#allocation14 + $0xd88] sm:$0xff]
          %v1800 = vld [vmem:[#allocation14 + $0xd90] sm:$0xff]
          %v1801 = vld [vmem:[#allocation14 + $0xd98] sm:$0xff]
          %v1802 = vld [vmem:[#allocation14 + $0xda0] sm:$0xff]
          %v1803 = vld [vmem:[#allocation14 + $0xda8] sm:$0xff]
          %v1804 = vld [vmem:[#allocation14 + $0xdb0] sm:$0xff]
          %v1805 = vld [vmem:[#allocation14 + $0xdb8] sm:$0xff]
          %v1806 = vld [vmem:[#allocation14 + $0xdc0] sm:$0xff]
          %v1807 = vld [vmem:[#allocation14 + $0xdc8] sm:$0xff]
          %v1808 = vld [vmem:[#allocation14 + $0xdd0] sm:$0xff]
          %v1809 = vld [vmem:[#allocation14 + $0xdd8] sm:$0xff]
          %v1810 = vld [vmem:[#allocation14 + $0xde0] sm:$0xff]
          %v1811 = vld [vmem:[#allocation14 + $0xde8] sm:$0xff]
          %v1812 = vld [vmem:[#allocation14 + $0xdf0] sm:$0xff]
          %v1813 = vld [vmem:[#allocation14 + $0xdf8] sm:$0xff]
          %v1814 = vld [vmem:[#allocation14 + $0xe00] sm:$0xff]
          %v1815 = vld [vmem:[#allocation14 + $0xe08] sm:$0xff]
          %v1816 = vld [vmem:[#allocation14 + $0xe10] sm:$0xff]
          %v1817 = vld [vmem:[#allocation14 + $0xe18] sm:$0xff]
          %v1818 = vld [vmem:[#allocation14 + $0xe20] sm:$0xff]
          %v1819 = vld [vmem:[#allocation14 + $0xe28] sm:$0xff]
          %v1820 = vld [vmem:[#allocation14 + $0xe30] sm:$0xff]
          %v1821 = vld [vmem:[#allocation14 + $0xe38] sm:$0xff]
          %v1822 = vld [vmem:[#allocation14 + $0xe40] sm:$0xff]
          %v1823 = vld [vmem:[#allocation14 + $0xe48] sm:$0xff]
          %v1824 = vld [vmem:[#allocation14 + $0xe50] sm:$0xff]
          %v1825 = vld [vmem:[#allocation14 + $0xe58] sm:$0xff]
          %v1826 = vld [vmem:[#allocation14 + $0xe60] sm:$0xff]
          %v1827 = vld [vmem:[#allocation14 + $0xe68] sm:$0xff]
          %v1828 = vld [vmem:[#allocation14 + $0xe70] sm:$0xff]
          %v1829 = vld [vmem:[#allocation14 + $0xe78] sm:$0xff]
          %v1830 = vld [vmem:[#allocation14 + $0xe80] sm:$0xff]
          %v1831 = vld [vmem:[#allocation14 + $0xe88] sm:$0xff]
          %v1832 = vld [vmem:[#allocation14 + $0xe90] sm:$0xff]
          %v1833 = vld [vmem:[#allocation14 + $0xe98] sm:$0xff]
          %v1834 = vld [vmem:[#allocation14 + $0xea0] sm:$0xff]
          %v1835 = vld [vmem:[#allocation14 + $0xea8] sm:$0xff]
          %v1836 = vld [vmem:[#allocation14 + $0xeb0] sm:$0xff]
          %v1837 = vld [vmem:[#allocation14 + $0xeb8] sm:$0xff]
          %v1838 = vld [vmem:[#allocation14 + $0xec0] sm:$0xff]
          %v1839 = vld [vmem:[#allocation14 + $0xec8] sm:$0xff]
          %v1840 = vld [vmem:[#allocation14 + $0xed0] sm:$0xff]
          %v1841 = vld [vmem:[#allocation14 + $0xed8] sm:$0xff]
          %v1842 = vld [vmem:[#allocation14 + $0xee0] sm:$0xff]
          %v1843 = vld [vmem:[#allocation14 + $0xee8] sm:$0xff]
          %v1844 = vld [vmem:[#allocation14 + $0xef0] sm:$0xff]
          %v1845 = vld [vmem:[#allocation14 + $0xef8] sm:$0xff]
          %v1846 = vld [vmem:[#allocation14 + $0xf00] sm:$0xff]
          %v1847 = vld [vmem:[#allocation14 + $0xf08] sm:$0xff]
          %v1848 = vld [vmem:[#allocation14 + $0xf10] sm:$0xff]
          %v1849 = vld [vmem:[#allocation14 + $0xf18] sm:$0xff]
          %v1850 = vld [vmem:[#allocation14 + $0xf20] sm:$0xff]
          %v1851 = vld [vmem:[#allocation14 + $0xf28] sm:$0xff]
          %v1852 = vld [vmem:[#allocation14 + $0xf30] sm:$0xff]
          %v1853 = vld [vmem:[#allocation14 + $0xf38] sm:$0xff]
          %v1854 = vld [vmem:[#allocation14 + $0xf40] sm:$0xff]
          %v1855 = vld [vmem:[#allocation14 + $0xf48] sm:$0xff]
          %v1856 = vld [vmem:[#allocation14 + $0xf50] sm:$0xff]
          %v1857 = vld [vmem:[#allocation14 + $0xf58] sm:$0xff]
          %v1858 = vld [vmem:[#allocation14 + $0xf60] sm:$0xff]
          %v1859 = vld [vmem:[#allocation14 + $0xf68] sm:$0xff]
          %v1860 = vld [vmem:[#allocation14 + $0xf70] sm:$0xff]
          %v1861 = vld [vmem:[#allocation14 + $0xf78] sm:$0xff]
          %v1862 = vld [vmem:[#allocation14 + $0xf80] sm:$0xff]
          %v1863 = vld [vmem:[#allocation14 + $0xf88] sm:$0xff]
          %v1864 = vld [vmem:[#allocation14 + $0xf90] sm:$0xff]
          %v1865 = vld [vmem:[#allocation14 + $0xf98] sm:$0xff]
          %v1866 = vld [vmem:[#allocation14 + $0xfa0] sm:$0xff]
          %v1867 = vld [vmem:[#allocation14 + $0xfa8] sm:$0xff]
          %v1868 = vld [vmem:[#allocation14 + $0xfb0] sm:$0xff]
          %v1869 = vld [vmem:[#allocation14 + $0xfb8] sm:$0xff]
          %v1870 = vld [vmem:[#allocation14 + $0xfc0] sm:$0xff]
          %v1871 = vld [vmem:[#allocation14 + $0xfc8] sm:$0xff]
          %v1872 = vld [vmem:[#allocation14 + $0xfd0] sm:$0xff]
          %v1873 = vld [vmem:[#allocation14 + $0xfd8] sm:$0xff]
          %v1874 = vld [vmem:[#allocation14 + $0xfe0] sm:$0xff]
          %v1875 = vld [vmem:[#allocation14 + $0xfe8] sm:$0xff]
          %v1876 = vld [vmem:[#allocation14 + $0xff0] sm:$0xff]
          %v1877 = vld [vmem:[#allocation14 + $0xff8] sm:$0xff]
          %v1878 = vld [vmem:[#allocation15] sm:$0xf]
          %v1880 = vlaneseq
          %v1881 = vshrl.u32 %v1880, 7
          %v1882 = vsub.s32 0, %v1881
          %v1883 = vrot.slane %v1365, %v1882
          %v1884 = vlaneseq
          %v1885 = vshrl.u32 %v1884, 7
          %v1886 = vsub.s32 1, %v1885
          %v1887 = vrot.slane %v1365, %v1886
          %v1888 = vlaneseq
          %v1889 = vshrl.u32 %v1888, 7
          %v1890 = vsub.s32 2, %v1889
          %v1891 = vrot.slane %v1365, %v1890
          %v1892 = vlaneseq
          %v1893 = vshrl.u32 %v1892, 7
          %v1894 = vsub.s32 3, %v1893
          %v1895 = vrot.slane %v1365, %v1894
          %v1896 = vlaneseq
          %v1897 = vshrl.u32 %v1896, 7
          %v1898 = vsub.s32 4, %v1897
          %v1899 = vrot.slane %v1365, %v1898
          %v1900 = vlaneseq
          %v1901 = vshrl.u32 %v1900, 7
          %v1902 = vsub.s32 5, %v1901
          %v1903 = vrot.slane %v1365, %v1902
          %v1904 = vlaneseq
          %v1905 = vshrl.u32 %v1904, 7
          %v1906 = vsub.s32 6, %v1905
          %v1907 = vrot.slane %v1365, %v1906
          %v1908 = vlaneseq
          %v1909 = vshrl.u32 %v1908, 7
          %v1910 = vsub.s32 7, %v1909
          %v1911 = vrot.slane %v1365, %v1910
          %v1921 = vlaneseq
          %v1922 = vshrl.u32 %v1921, 7
          %v1923 = vsub.s32 0, %v1922
          %v1924 = vrot.slane %v1878, %v1923
          %v1925 = vlaneseq
          %v1926 = vshrl.u32 %v1925, 7
          %v1927 = vsub.s32 1, %v1926
          %v1928 = vrot.slane %v1878, %v1927
          %v1929 = vlaneseq
          %v1930 = vshrl.u32 %v1929, 7
          %v1931 = vsub.s32 2, %v1930
          %v1932 = vrot.slane %v1878, %v1931
          %v1933 = vlaneseq
          %v1934 = vshrl.u32 %v1933, 7
          %v1935 = vsub.s32 3, %v1934
          %v1936 = vrot.slane %v1878, %v1935
          %1941 = vmatprep.subr.mxu0 %v1367
          %1942 = vmatpush1.msra.mxu0 %v1366
          %1943 = vmatprep.subr.mxu0 %v1371
          %1944 = vmatpush1.msra.mxu0 %v1370
          %1945 = vmatprep.subr.mxu0 %v1375
          %1946 = vmatpush1.msra.mxu0 %v1374
          %1947 = vmatprep.subr.mxu0 %v1379
          %1948 = vmatpush1.msra.mxu0 %v1378
          %1949 = vmatprep.subr.mxu0 %v1383
          %1950 = vmatpush1.msra.mxu0 %v1382
          %1951 = vmatprep.subr.mxu0 %v1387
          %1952 = vmatpush1.msra.mxu0 %v1386
          %1953 = vmatprep.subr.mxu0 %v1391
          %1954 = vmatpush1.msra.mxu0 %v1390
          %1955 = vmatprep.subr.mxu0 %v1395
          %1956 = vmatpush1.msra.mxu0 %v1394
          %1957 = vmatprep.subr.mxu0 %v1399
          %1958 = vmatpush1.msra.mxu0 %v1398
          %1959 = vmatprep.subr.mxu0 %v1403
          %1960 = vmatpush1.msra.mxu0 %v1402
          %1961 = vmatprep.subr.mxu0 %v1407
          %1962 = vmatpush1.msra.mxu0 %v1406
          %1963 = vmatprep.subr.mxu0 %v1411
          %1964 = vmatpush1.msra.mxu0 %v1410
          %1965 = vmatprep.subr.mxu0 %v1415
          %1966 = vmatpush1.msra.mxu0 %v1414
          %1967 = vmatprep.subr.mxu0 %v1419
          %1968 = vmatpush1.msra.mxu0 %v1418
          %1969 = vmatprep.subr.mxu0 %v1423
          %1970 = vmatpush1.msra.mxu0 %v1422
          %1971 = vmatprep.subr.mxu0 %v1427
          %1972 = vmatpush1.msra.mxu0 %v1426
          %1973 = vmatprep.subr.mxu0 %v1431
          %1974 = vmatpush1.msra.mxu0 %v1430
          %1975 = vmatprep.subr.mxu0 %v1435
          %1976 = vmatpush1.msra.mxu0 %v1434
          %1977 = vmatprep.subr.mxu0 %v1439
          %1978 = vmatpush1.msra.mxu0 %v1438
          %1979 = vmatprep.subr.mxu0 %v1443
          %1980 = vmatpush1.msra.mxu0 %v1442
          %1981 = vmatprep.subr.mxu0 %v1447
          %1982 = vmatpush1.msra.mxu0 %v1446
          %1983 = vmatprep.subr.mxu0 %v1451
          %1984 = vmatpush1.msra.mxu0 %v1450
          %1985 = vmatprep.subr.mxu0 %v1455
          %1986 = vmatpush1.msra.mxu0 %v1454
          %1987 = vmatprep.subr.mxu0 %v1459
          %1988 = vmatpush1.msra.mxu0 %v1458
          %1989 = vmatprep.subr.mxu0 %v1463
          %1990 = vmatpush1.msra.mxu0 %v1462
          %1991 = vmatprep.subr.mxu0 %v1467
          %1992 = vmatpush1.msra.mxu0 %v1466
          %1993 = vmatprep.subr.mxu0 %v1471
          %1994 = vmatpush1.msra.mxu0 %v1470
          %1995 = vmatprep.subr.mxu0 %v1475
          %1996 = vmatpush1.msra.mxu0 %v1474
          %1997 = vmatprep.subr.mxu0 %v1479
          %1998 = vmatpush1.msra.mxu0 %v1478
          %1999 = vmatprep.subr.mxu0 %v1483
          %2000 = vmatpush1.msra.mxu0 %v1482
          %2001 = vmatprep.subr.mxu0 %v1487
          %2002 = vmatpush1.msra.mxu0 %v1486
          %2003 = vmatprep.subr.mxu0 %v1491
          %2004 = vmatpush1.msra.mxu0 %v1490
          %2005 = vmatprep.mubr.f32.mxu0 %v1887
          %2006 = vmatmul.mubr.f32.gmra.mrb[0].mxu0 %v1883
          %v2007 = vpop.f32.mrb[0].mxu0
          %v2008 = vadd.f32 %v1924, %v2007
          %v2009 = vpop.f32.mrb[0].mxu0
          %v2010 = vadd.f32 %v1928, %v2009
          %2011 = vdwg.mxu0
          %2012 = vmatprep.subr.mxu0 %v1495
          %2013 = vmatpush1.msra.mxu0 %v1494
          %2014 = vmatprep.subr.mxu0 %v1499
          %2015 = vmatpush1.msra.mxu0 %v1498
          %2016 = vmatprep.subr.mxu0 %v1503
          %2017 = vmatpush1.msra.mxu0 %v1502
          %2018 = vmatprep.subr.mxu0 %v1507
          %2019 = vmatpush1.msra.mxu0 %v1506
          %2020 = vmatprep.subr.mxu0 %v1511
          %2021 = vmatpush1.msra.mxu0 %v1510
          %2022 = vmatprep.subr.mxu0 %v1515
          %2023 = vmatpush1.msra.mxu0 %v1514
          %2024 = vmatprep.subr.mxu0 %v1519
          %2025 = vmatpush1.msra.mxu0 %v1518
          %2026 = vmatprep.subr.mxu0 %v1523
          %2027 = vmatpush1.msra.mxu0 %v1522
          %2028 = vmatprep.subr.mxu0 %v1527
          %2029 = vmatpush1.msra.mxu0 %v1526
          %2030 = vmatprep.subr.mxu0 %v1531
          %2031 = vmatpush1.msra.mxu0 %v1530
          %2032 = vmatprep.subr.mxu0 %v1535
          %2033 = vmatpush1.msra.mxu0 %v1534
          %2034 = vmatprep.subr.mxu0 %v1539
          %2035 = vmatpush1.msra.mxu0 %v1538
          %2036 = vmatprep.subr.mxu0 %v1543
          %2037 = vmatpush1.msra.mxu0 %v1542
          %2038 = vmatprep.subr.mxu0 %v1547
          %2039 = vmatpush1.msra.mxu0 %v1546
          %2040 = vmatprep.subr.mxu0 %v1551
          %2041 = vmatpush1.msra.mxu0 %v1550
          %2042 = vmatprep.subr.mxu0 %v1555
          %2043 = vmatpush1.msra.mxu0 %v1554
          %2044 = vmatprep.subr.mxu0 %v1559
          %2045 = vmatpush1.msra.mxu0 %v1558
          %2046 = vmatprep.subr.mxu0 %v1563
          %2047 = vmatpush1.msra.mxu0 %v1562
          %2048 = vmatprep.subr.mxu0 %v1567
          %2049 = vmatpush1.msra.mxu0 %v1566
          %2050 = vmatprep.subr.mxu0 %v1571
          %2051 = vmatpush1.msra.mxu0 %v1570
          %2052 = vmatprep.subr.mxu0 %v1575
          %2053 = vmatpush1.msra.mxu0 %v1574
          %2054 = vmatprep.subr.mxu0 %v1579
          %2055 = vmatpush1.msra.mxu0 %v1578
          %2056 = vmatprep.subr.mxu0 %v1583
          %2057 = vmatpush1.msra.mxu0 %v1582
          %2058 = vmatprep.subr.mxu0 %v1587
          %2059 = vmatpush1.msra.mxu0 %v1586
          %2060 = vmatprep.subr.mxu0 %v1591
          %2061 = vmatpush1.msra.mxu0 %v1590
          %2062 = vmatprep.subr.mxu0 %v1595
          %2063 = vmatpush1.msra.mxu0 %v1594
          %2064 = vmatprep.subr.mxu0 %v1599
          %2065 = vmatpush1.msra.mxu0 %v1598
          %2066 = vmatprep.subr.mxu0 %v1603
          %2067 = vmatpush1.msra.mxu0 %v1602
          %2068 = vmatprep.subr.mxu0 %v1607
          %2069 = vmatpush1.msra.mxu0 %v1606
          %2070 = vmatprep.subr.mxu0 %v1611
          %2071 = vmatpush1.msra.mxu0 %v1610
          %2072 = vmatprep.subr.mxu0 %v1615
          %2073 = vmatpush1.msra.mxu0 %v1614
          %2074 = vmatprep.subr.mxu0 %v1619
          %2075 = vmatpush1.msra.mxu0 %v1618
          %2076 = vmatprep.mubr.f32.mxu0 %v1895
          %2077 = vmatmul.mubr.f32.gmra.mrb[0].mxu0 %v1891
          %v2078 = vpop.f32.mrb[0].mxu0
          %v2079 = vadd.f32 %v2008, %v2078
          %v2080 = vpop.f32.mrb[0].mxu0
          %v2081 = vadd.f32 %v2010, %v2080
          %2082 = vdwg.mxu0
          %2083 = vmatprep.subr.mxu0 %v1623
          %2084 = vmatpush1.msra.mxu0 %v1622
          %2085 = vmatprep.subr.mxu0 %v1627
          %2086 = vmatpush1.msra.mxu0 %v1626
          %2087 = vmatprep.subr.mxu0 %v1631
          %2088 = vmatpush1.msra.mxu0 %v1630
          %2089 = vmatprep.subr.mxu0 %v1635
          %2090 = vmatpush1.msra.mxu0 %v1634
          %2091 = vmatprep.subr.mxu0 %v1639
          %2092 = vmatpush1.msra.mxu0 %v1638
          %2093 = vmatprep.subr.mxu0 %v1643
          %2094 = vmatpush1.msra.mxu0 %v1642
          %2095 = vmatprep.subr.mxu0 %v1647
          %2096 = vmatpush1.msra.mxu0 %v1646
          %2097 = vmatprep.subr.mxu0 %v1651
          %2098 = vmatpush1.msra.mxu0 %v1650
          %2099 = vmatprep.subr.mxu0 %v1655
          %2100 = vmatpush1.msra.mxu0 %v1654
          %2101 = vmatprep.subr.mxu0 %v1659
          %2102 = vmatpush1.msra.mxu0 %v1658
          %2103 = vmatprep.subr.mxu0 %v1663
          %2104 = vmatpush1.msra.mxu0 %v1662
          %2105 = vmatprep.subr.mxu0 %v1667
          %2106 = vmatpush1.msra.mxu0 %v1666
          %2107 = vmatprep.subr.mxu0 %v1671
          %2108 = vmatpush1.msra.mxu0 %v1670
          %2109 = vmatprep.subr.mxu0 %v1675
          %2110 = vmatpush1.msra.mxu0 %v1674
          %2111 = vmatprep.subr.mxu0 %v1679
          %2112 = vmatpush1.msra.mxu0 %v1678
          %2113 = vmatprep.subr.mxu0 %v1683
          %2114 = vmatpush1.msra.mxu0 %v1682
          %2115 = vmatprep.subr.mxu0 %v1687
          %2116 = vmatpush1.msra.mxu0 %v1686
          %2117 = vmatprep.subr.mxu0 %v1691
          %2118 = vmatpush1.msra.mxu0 %v1690
          %2119 = vmatprep.subr.mxu0 %v1695
          %2120 = vmatpush1.msra.mxu0 %v1694
          %2121 = vmatprep.subr.mxu0 %v1699
          %2122 = vmatpush1.msra.mxu0 %v1698
          %2123 = vmatprep.subr.mxu0 %v1703
          %2124 = vmatpush1.msra.mxu0 %v1702
          %2125 = vmatprep.subr.mxu0 %v1707
          %2126 = vmatpush1.msra.mxu0 %v1706
          %2127 = vmatprep.subr.mxu0 %v1711
          %2128 = vmatpush1.msra.mxu0 %v1710
          %2129 = vmatprep.subr.mxu0 %v1715
          %2130 = vmatpush1.msra.mxu0 %v1714
          %2131 = vmatprep.subr.mxu0 %v1719
          %2132 = vmatpush1.msra.mxu0 %v1718
          %2133 = vmatprep.subr.mxu0 %v1723
          %2134 = vmatpush1.msra.mxu0 %v1722
          %2135 = vmatprep.subr.mxu0 %v1727
          %2136 = vmatpush1.msra.mxu0 %v1726
          %2137 = vmatprep.subr.mxu0 %v1731
          %2138 = vmatpush1.msra.mxu0 %v1730
          %2139 = vmatprep.subr.mxu0 %v1735
          %2140 = vmatpush1.msra.mxu0 %v1734
          %2141 = vmatprep.subr.mxu0 %v1739
          %2142 = vmatpush1.msra.mxu0 %v1738
          %2143 = vmatprep.subr.mxu0 %v1743
          %2144 = vmatpush1.msra.mxu0 %v1742
          %2145 = vmatprep.subr.mxu0 %v1747
          %2146 = vmatpush1.msra.mxu0 %v1746
          %2147 = vmatprep.mubr.f32.mxu0 %v1903
          %2148 = vmatmul.mubr.f32.gmra.mrb[0].mxu0 %v1899
          %v2149 = vpop.f32.mrb[0].mxu0
          %v2150 = vadd.f32 %v2079, %v2149
          %v2151 = vpop.f32.mrb[0].mxu0
          %v2152 = vadd.f32 %v2081, %v2151
          %2153 = vdwg.mxu0
          %2154 = vmatprep.subr.mxu0 %v1751
          %2155 = vmatpush1.msra.mxu0 %v1750
          %2156 = vmatprep.subr.mxu0 %v1755
          %2157 = vmatpush1.msra.mxu0 %v1754
          %2158 = vmatprep.subr.mxu0 %v1759
          %2159 = vmatpush1.msra.mxu0 %v1758
          %2160 = vmatprep.subr.mxu0 %v1763
          %2161 = vmatpush1.msra.mxu0 %v1762
          %2162 = vmatprep.subr.mxu0 %v1767
          %2163 = vmatpush1.msra.mxu0 %v1766
          %2164 = vmatprep.subr.mxu0 %v1771
          %2165 = vmatpush1.msra.mxu0 %v1770
          %2166 = vmatprep.subr.mxu0 %v1775
          %2167 = vmatpush1.msra.mxu0 %v1774
          %2168 = vmatprep.subr.mxu0 %v1779
          %2169 = vmatpush1.msra.mxu0 %v1778
          %2170 = vmatprep.subr.mxu0 %v1783
          %2171 = vmatpush1.msra.mxu0 %v1782
          %2172 = vmatprep.subr.mxu0 %v1787
          %2173 = vmatpush1.msra.mxu0 %v1786
          %2174 = vmatprep.subr.mxu0 %v1791
          %2175 = vmatpush1.msra.mxu0 %v1790
          %2176 = vmatprep.subr.mxu0 %v1795
          %2177 = vmatpush1.msra.mxu0 %v1794
          %2178 = vmatprep.subr.mxu0 %v1799
          %2179 = vmatpush1.msra.mxu0 %v1798
          %2180 = vmatprep.subr.mxu0 %v1803
          %2181 = vmatpush1.msra.mxu0 %v1802
          %2182 = vmatprep.subr.mxu0 %v1807
          %2183 = vmatpush1.msra.mxu0 %v1806
          %2184 = vmatprep.subr.mxu0 %v1811
          %2185 = vmatpush1.msra.mxu0 %v1810
          %2186 = vmatprep.subr.mxu0 %v1815
          %2187 = vmatpush1.msra.mxu0 %v1814
          %2188 = vmatprep.subr.mxu0 %v1819
          %2189 = vmatpush1.msra.mxu0 %v1818
          %2190 = vmatprep.subr.mxu0 %v1823
          %2191 = vmatpush1.msra.mxu0 %v1822
          %2192 = vmatprep.subr.mxu0 %v1827
          %2193 = vmatpush1.msra.mxu0 %v1826
          %2194 = vmatprep.subr.mxu0 %v1831
          %2195 = vmatpush1.msra.mxu0 %v1830
          %2196 = vmatprep.subr.mxu0 %v1835
          %2197 = vmatpush1.msra.mxu0 %v1834
          %2198 = vmatprep.subr.mxu0 %v1839
          %2199 = vmatpush1.msra.mxu0 %v1838
          %2200 = vmatprep.subr.mxu0 %v1843
          %2201 = vmatpush1.msra.mxu0 %v1842
          %2202 = vmatprep.subr.mxu0 %v1847
          %2203 = vmatpush1.msra.mxu0 %v1846
          %2204 = vmatprep.subr.mxu0 %v1851
          %2205 = vmatpush1.msra.mxu0 %v1850
          %2206 = vmatprep.subr.mxu0 %v1855
          %2207 = vmatpush1.msra.mxu0 %v1854
          %2208 = vmatprep.subr.mxu0 %v1859
          %2209 = vmatpush1.msra.mxu0 %v1858
          %2210 = vmatprep.subr.mxu0 %v1863
          %2211 = vmatpush1.msra.mxu0 %v1862
          %2212 = vmatprep.subr.mxu0 %v1867
          %2213 = vmatpush1.msra.mxu0 %v1866
          %2214 = vmatprep.subr.mxu0 %v1871
          %2215 = vmatpush1.msra.mxu0 %v1870
          %2216 = vmatprep.subr.mxu0 %v1875
          %2217 = vmatpush1.msra.mxu0 %v1874
          %2218 = vmatprep.mubr.f32.mxu0 %v1911
          %2219 = vmatmul.mubr.f32.gmra.mrb[0].mxu0 %v1907
          %v2220 = vpop.f32.mrb[0].mxu0
          %v2221 = vadd.f32 %v2150, %v2220
          %v2222 = vpop.f32.mrb[0].mxu0
          %v2223 = vadd.f32 %v2152, %v2222
          %2224 = vdwg.mxu0
          %2225 = vmatprep.subr.mxu0 %v1369
          %2226 = vmatpush1.msra.mxu0 %v1368
          %2227 = vmatprep.subr.mxu0 %v1373
          %2228 = vmatpush1.msra.mxu0 %v1372
          %2229 = vmatprep.subr.mxu0 %v1377
          %2230 = vmatpush1.msra.mxu0 %v1376
          %2231 = vmatprep.subr.mxu0 %v1381
          %2232 = vmatpush1.msra.mxu0 %v1380
          %2233 = vmatprep.subr.mxu0 %v1385
          %2234 = vmatpush1.msra.mxu0 %v1384
          %2235 = vmatprep.subr.mxu0 %v1389
          %2236 = vmatpush1.msra.mxu0 %v1388
          %2237 = vmatprep.subr.mxu0 %v1393
          %2238 = vmatpush1.msra.mxu0 %v1392
          %2239 = vmatprep.subr.mxu0 %v1397
          %2240 = vmatpush1.msra.mxu0 %v1396
          %2241 = vmatprep.subr.mxu0 %v1401
          %2242 = vmatpush1.msra.mxu0 %v1400
          %2243 = vmatprep.subr.mxu0 %v1405
          %2244 = vmatpush1.msra.mxu0 %v1404
          %2245 = vmatprep.subr.mxu0 %v1409
          %2246 = vmatpush1.msra.mxu0 %v1408
          %2247 = vmatprep.subr.mxu0 %v1413
          %2248 = vmatpush1.msra.mxu0 %v1412
          %2249 = vmatprep.subr.mxu0 %v1417
          %2250 = vmatpush1.msra.mxu0 %v1416
          %2251 = vmatprep.subr.mxu0 %v1421
          %2252 = vmatpush1.msra.mxu0 %v1420
          %2253 = vmatprep.subr.mxu0 %v1425
          %2254 = vmatpush1.msra.mxu0 %v1424
          %2255 = vmatprep.subr.mxu0 %v1429
          %2256 = vmatpush1.msra.mxu0 %v1428
          %2257 = vmatprep.subr.mxu0 %v1433
          %2258 = vmatpush1.msra.mxu0 %v1432
          %2259 = vmatprep.subr.mxu0 %v1437
          %2260 = vmatpush1.msra.mxu0 %v1436
          %2261 = vmatprep.subr.mxu0 %v1441
          %2262 = vmatpush1.msra.mxu0 %v1440
          %2263 = vmatprep.subr.mxu0 %v1445
          %2264 = vmatpush1.msra.mxu0 %v1444
          %2265 = vmatprep.subr.mxu0 %v1449
          %2266 = vmatpush1.msra.mxu0 %v1448
          %2267 = vmatprep.subr.mxu0 %v1453
          %2268 = vmatpush1.msra.mxu0 %v1452
          %2269 = vmatprep.subr.mxu0 %v1457
          %2270 = vmatpush1.msra.mxu0 %v1456
          %2271 = vmatprep.subr.mxu0 %v1461
          %2272 = vmatpush1.msra.mxu0 %v1460
          %2273 = vmatprep.subr.mxu0 %v1465
          %2274 = vmatpush1.msra.mxu0 %v1464
          %2275 = vmatprep.subr.mxu0 %v1469
          %2276 = vmatpush1.msra.mxu0 %v1468
          %2277 = vmatprep.subr.mxu0 %v1473
          %2278 = vmatpush1.msra.mxu0 %v1472
          %2279 = vmatprep.subr.mxu0 %v1477
          %2280 = vmatpush1.msra.mxu0 %v1476
          %2281 = vmatprep.subr.mxu0 %v1481
          %2282 = vmatpush1.msra.mxu0 %v1480
          %2283 = vmatprep.subr.mxu0 %v1485
          %2284 = vmatpush1.msra.mxu0 %v1484
          %2285 = vmatprep.subr.mxu0 %v1489
          %2286 = vmatpush1.msra.mxu0 %v1488
          %2287 = vmatprep.subr.mxu0 %v1493
          %2288 = vmatpush1.msra.mxu0 %v1492
          %2289 = vmatprep.mubr.f32.mxu0 %v1887
          %2290 = vmatmul.mubr.f32.gmra.mrb[0].mxu0 %v1883
          %v2291 = vpop.f32.mrb[0].mxu0
          %v2292 = vadd.f32 %v1932, %v2291
          %v2293 = vpop.f32.mrb[0].mxu0
          %v2294 = vadd.f32 %v1936, %v2293
          %2295 = vdwg.mxu0
          %2296 = vmatprep.subr.mxu0 %v1497
          %2297 = vmatpush1.msra.mxu0 %v1496
          %2298 = vmatprep.subr.mxu0 %v1501
          %2299 = vmatpush1.msra.mxu0 %v1500
          %2300 = vmatprep.subr.mxu0 %v1505
          %2301 = vmatpush1.msra.mxu0 %v1504
          %2302 = vmatprep.subr.mxu0 %v1509
          %2303 = vmatpush1.msra.mxu0 %v1508
          %2304 = vmatprep.subr.mxu0 %v1513
          %2305 = vmatpush1.msra.mxu0 %v1512
          %2306 = vmatprep.subr.mxu0 %v1517
          %2307 = vmatpush1.msra.mxu0 %v1516
          %2308 = vmatprep.subr.mxu0 %v1521
          %2309 = vmatpush1.msra.mxu0 %v1520
          %2310 = vmatprep.subr.mxu0 %v1525
          %2311 = vmatpush1.msra.mxu0 %v1524
          %2312 = vmatprep.subr.mxu0 %v1529
          %2313 = vmatpush1.msra.mxu0 %v1528
          %2314 = vmatprep.subr.mxu0 %v1533
          %2315 = vmatpush1.msra.mxu0 %v1532
          %2316 = vmatprep.subr.mxu0 %v1537
          %2317 = vmatpush1.msra.mxu0 %v1536
          %2318 = vmatprep.subr.mxu0 %v1541
          %2319 = vmatpush1.msra.mxu0 %v1540
          %2320 = vmatprep.subr.mxu0 %v1545
          %2321 = vmatpush1.msra.mxu0 %v1544
          %2322 = vmatprep.subr.mxu0 %v1549
          %2323 = vmatpush1.msra.mxu0 %v1548
          %2324 = vmatprep.subr.mxu0 %v1553
          %2325 = vmatpush1.msra.mxu0 %v1552
          %2326 = vmatprep.subr.mxu0 %v1557
          %2327 = vmatpush1.msra.mxu0 %v1556
          %2328 = vmatprep.subr.mxu0 %v1561
          %2329 = vmatpush1.msra.mxu0 %v1560
          %2330 = vmatprep.subr.mxu0 %v1565
          %2331 = vmatpush1.msra.mxu0 %v1564
          %2332 = vmatprep.subr.mxu0 %v1569
          %2333 = vmatpush1.msra.mxu0 %v1568
          %2334 = vmatprep.subr.mxu0 %v1573
          %2335 = vmatpush1.msra.mxu0 %v1572
          %2336 = vmatprep.subr.mxu0 %v1577
          %2337 = vmatpush1.msra.mxu0 %v1576
          %2338 = vmatprep.subr.mxu0 %v1581
          %2339 = vmatpush1.msra.mxu0 %v1580
          %2340 = vmatprep.subr.mxu0 %v1585
          %2341 = vmatpush1.msra.mxu0 %v1584
          %2342 = vmatprep.subr.mxu0 %v1589
          %2343 = vmatpush1.msra.mxu0 %v1588
          %2344 = vmatprep.subr.mxu0 %v1593
          %2345 = vmatpush1.msra.mxu0 %v1592
          %2346 = vmatprep.subr.mxu0 %v1597
          %2347 = vmatpush1.msra.mxu0 %v1596
          %2348 = vmatprep.subr.mxu0 %v1601
          %2349 = vmatpush1.msra.mxu0 %v1600
          %2350 = vmatprep.subr.mxu0 %v1605
          %2351 = vmatpush1.msra.mxu0 %v1604
          %2352 = vmatprep.subr.mxu0 %v1609
          %2353 = vmatpush1.msra.mxu0 %v1608
          %2354 = vmatprep.subr.mxu0 %v1613
          %2355 = vmatpush1.msra.mxu0 %v1612
          %2356 = vmatprep.subr.mxu0 %v1617
          %2357 = vmatpush1.msra.mxu0 %v1616
          %2358 = vmatprep.subr.mxu0 %v1621
          %2359 = vmatpush1.msra.mxu0 %v1620
          %2360 = vmatprep.mubr.f32.mxu0 %v1895
          %2361 = vmatmul.mubr.f32.gmra.mrb[0].mxu0 %v1891
          %v2362 = vpop.f32.mrb[0].mxu0
          %v2363 = vadd.f32 %v2292, %v2362
          %v2364 = vpop.f32.mrb[0].mxu0
          %v2365 = vadd.f32 %v2294, %v2364
          %2366 = vdwg.mxu0
          %2367 = vmatprep.subr.mxu0 %v1625
          %2368 = vmatpush1.msra.mxu0 %v1624
          %2369 = vmatprep.subr.mxu0 %v1629
          %2370 = vmatpush1.msra.mxu0 %v1628
          %2371 = vmatprep.subr.mxu0 %v1633
          %2372 = vmatpush1.msra.mxu0 %v1632
          %2373 = vmatprep.subr.mxu0 %v1637
          %2374 = vmatpush1.msra.mxu0 %v1636
          %2375 = vmatprep.subr.mxu0 %v1641
          %2376 = vmatpush1.msra.mxu0 %v1640
          %2377 = vmatprep.subr.mxu0 %v1645
          %2378 = vmatpush1.msra.mxu0 %v1644
          %2379 = vmatprep.subr.mxu0 %v1649
          %2380 = vmatpush1.msra.mxu0 %v1648
          %2381 = vmatprep.subr.mxu0 %v1653
          %2382 = vmatpush1.msra.mxu0 %v1652
          %2383 = vmatprep.subr.mxu0 %v1657
          %2384 = vmatpush1.msra.mxu0 %v1656
          %2385 = vmatprep.subr.mxu0 %v1661
          %2386 = vmatpush1.msra.mxu0 %v1660
          %2387 = vmatprep.subr.mxu0 %v1665
          %2388 = vmatpush1.msra.mxu0 %v1664
          %2389 = vmatprep.subr.mxu0 %v1669
          %2390 = vmatpush1.msra.mxu0 %v1668
          %2391 = vmatprep.subr.mxu0 %v1673
          %2392 = vmatpush1.msra.mxu0 %v1672
          %2393 = vmatprep.subr.mxu0 %v1677
          %2394 = vmatpush1.msra.mxu0 %v1676
          %2395 = vmatprep.subr.mxu0 %v1681
          %2396 = vmatpush1.msra.mxu0 %v1680
          %2397 = vmatprep.subr.mxu0 %v1685
          %2398 = vmatpush1.msra.mxu0 %v1684
          %2399 = vmatprep.subr.mxu0 %v1689
          %2400 = vmatpush1.msra.mxu0 %v1688
          %2401 = vmatprep.subr.mxu0 %v1693
          %2402 = vmatpush1.msra.mxu0 %v1692
          %2403 = vmatprep.subr.mxu0 %v1697
          %2404 = vmatpush1.msra.mxu0 %v1696
          %2405 = vmatprep.subr.mxu0 %v1701
          %2406 = vmatpush1.msra.mxu0 %v1700
          %2407 = vmatprep.subr.mxu0 %v1705
          %2408 = vmatpush1.msra.mxu0 %v1704
          %2409 = vmatprep.subr.mxu0 %v1709
          %2410 = vmatpush1.msra.mxu0 %v1708
          %2411 = vmatprep.subr.mxu0 %v1713
          %2412 = vmatpush1.msra.mxu0 %v1712
          %2413 = vmatprep.subr.mxu0 %v1717
          %2414 = vmatpush1.msra.mxu0 %v1716
          %2415 = vmatprep.subr.mxu0 %v1721
          %2416 = vmatpush1.msra.mxu0 %v1720
          %2417 = vmatprep.subr.mxu0 %v1725
          %2418 = vmatpush1.msra.mxu0 %v1724
          %2419 = vmatprep.subr.mxu0 %v1729
          %2420 = vmatpush1.msra.mxu0 %v1728
          %2421 = vmatprep.subr.mxu0 %v1733
          %2422 = vmatpush1.msra.mxu0 %v1732
          %2423 = vmatprep.subr.mxu0 %v1737
          %2424 = vmatpush1.msra.mxu0 %v1736
          %2425 = vmatprep.subr.mxu0 %v1741
          %2426 = vmatpush1.msra.mxu0 %v1740
          %2427 = vmatprep.subr.mxu0 %v1745
          %2428 = vmatpush1.msra.mxu0 %v1744
          %2429 = vmatprep.subr.mxu0 %v1749
          %2430 = vmatpush1.msra.mxu0 %v1748
          %2431 = vmatprep.mubr.f32.mxu0 %v1903
          %2432 = vmatmul.mubr.f32.gmra.mrb[0].mxu0 %v1899
          %v2433 = vpop.f32.mrb[0].mxu0
          %v2434 = vadd.f32 %v2363, %v2433
          %v2435 = vpop.f32.mrb[0].mxu0
          %v2436 = vadd.f32 %v2365, %v2435
          %2437 = vdwg.mxu0
          %2438 = vmatprep.subr.mxu0 %v1753
          %2439 = vmatpush1.msra.mxu0 %v1752
          %2440 = vmatprep.subr.mxu0 %v1757
          %2441 = vmatpush1.msra.mxu0 %v1756
          %2442 = vmatprep.subr.mxu0 %v1761
          %2443 = vmatpush1.msra.mxu0 %v1760
          %2444 = vmatprep.subr.mxu0 %v1765
          %2445 = vmatpush1.msra.mxu0 %v1764
          %2446 = vmatprep.subr.mxu0 %v1769
          %2447 = vmatpush1.msra.mxu0 %v1768
          %2448 = vmatprep.subr.mxu0 %v1773
          %2449 = vmatpush1.msra.mxu0 %v1772
          %2450 = vmatprep.subr.mxu0 %v1777
          %2451 = vmatpush1.msra.mxu0 %v1776
          %2452 = vmatprep.subr.mxu0 %v1781
          %2453 = vmatpush1.msra.mxu0 %v1780
          %2454 = vmatprep.subr.mxu0 %v1785
          %2455 = vmatpush1.msra.mxu0 %v1784
          %2456 = vmatprep.subr.mxu0 %v1789
          %2457 = vmatpush1.msra.mxu0 %v1788
          %2458 = vmatprep.subr.mxu0 %v1793
          %2459 = vmatpush1.msra.mxu0 %v1792
          %2460 = vmatprep.subr.mxu0 %v1797
          %2461 = vmatpush1.msra.mxu0 %v1796
          %2462 = vmatprep.subr.mxu0 %v1801
          %2463 = vmatpush1.msra.mxu0 %v1800
          %2464 = vmatprep.subr.mxu0 %v1805
          %2465 = vmatpush1.msra.mxu0 %v1804
          %2466 = vmatprep.subr.mxu0 %v1809
          %2467 = vmatpush1.msra.mxu0 %v1808
          %2468 = vmatprep.subr.mxu0 %v1813
          %2469 = vmatpush1.msra.mxu0 %v1812
          %2470 = vmatprep.subr.mxu0 %v1817
          %2471 = vmatpush1.msra.mxu0 %v1816
          %2472 = vmatprep.subr.mxu0 %v1821
          %2473 = vmatpush1.msra.mxu0 %v1820
          %2474 = vmatprep.subr.mxu0 %v1825
          %2475 = vmatpush1.msra.mxu0 %v1824
          %2476 = vmatprep.subr.mxu0 %v1829
          %2477 = vmatpush1.msra.mxu0 %v1828
          %2478 = vmatprep.subr.mxu0 %v1833
          %2479 = vmatpush1.msra.mxu0 %v1832
          %2480 = vmatprep.subr.mxu0 %v1837
          %2481 = vmatpush1.msra.mxu0 %v1836
          %2482 = vmatprep.subr.mxu0 %v1841
          %2483 = vmatpush1.msra.mxu0 %v1840
          %2484 = vmatprep.subr.mxu0 %v1845
          %2485 = vmatpush1.msra.mxu0 %v1844
          %2486 = vmatprep.subr.mxu0 %v1849
          %2487 = vmatpush1.msra.mxu0 %v1848
          %2488 = vmatprep.subr.mxu0 %v1853
          %2489 = vmatpush1.msra.mxu0 %v1852
          %2490 = vmatprep.subr.mxu0 %v1857
          %2491 = vmatpush1.msra.mxu0 %v1856
          %2492 = vmatprep.subr.mxu0 %v1861
          %2493 = vmatpush1.msra.mxu0 %v1860
          %2494 = vmatprep.subr.mxu0 %v1865
          %2495 = vmatpush1.msra.mxu0 %v1864
          %2496 = vmatprep.subr.mxu0 %v1869
          %2497 = vmatpush1.msra.mxu0 %v1868
          %2498 = vmatprep.subr.mxu0 %v1873
          %2499 = vmatpush1.msra.mxu0 %v1872
          %2500 = vmatprep.subr.mxu0 %v1877
          %2501 = vmatpush1.msra.mxu0 %v1876
          %2502 = vmatprep.mubr.f32.mxu0 %v1911
          %2503 = vmatmul.mubr.f32.gmra.mrb[0].mxu0 %v1907
          %v2504 = vpop.f32.mrb[0].mxu0
          %v2505 = vadd.f32 %v2434, %v2504
          %v2506 = vpop.f32.mrb[0].mxu0
          %v2507 = vadd.f32 %v2436, %v2506
          %2508 = vdwg.mxu0
          %v2509 = vmax.f32 %v2221, 0.0
          %v2510 = vmax.f32 %v2223, 0.0
          %v2511 = vmax.f32 %v2505, 0.0
          %v2512 = vmax.f32 %v2507, 0.0
          %v2513 = vld [vmem:[#allocation17] sm:$0xff]
          %v2514 = vld [vmem:[#allocation17 + $0x8] sm:$0xff]
          %v2515 = vld [vmem:[#allocation17 + $0x10] sm:$0xff]
          %v2516 = vld [vmem:[#allocation17 + $0x18] sm:$0xff]
          %v2517 = vld [vmem:[#allocation17 + $0x20] sm:$0xff]
          %v2518 = vld [vmem:[#allocation17 + $0x28] sm:$0xff]
          %v2519 = vld [vmem:[#allocation17 + $0x30] sm:$0xff]
          %v2520 = vld [vmem:[#allocation17 + $0x38] sm:$0xff]
          %v2521 = vld [vmem:[#allocation17 + $0x40] sm:$0xff]
          %v2522 = vld [vmem:[#allocation17 + $0x48] sm:$0xff]
          %v2523 = vld [vmem:[#allocation17 + $0x50] sm:$0xff]
          %v2524 = vld [vmem:[#allocation17 + $0x58] sm:$0xff]
          %v2525 = vld [vmem:[#allocation17 + $0x60] sm:$0xff]
          %v2526 = vld [vmem:[#allocation17 + $0x68] sm:$0xff]
          %v2527 = vld [vmem:[#allocation17 + $0x70] sm:$0xff]
          %v2528 = vld [vmem:[#allocation17 + $0x78] sm:$0xff]
          %v2529 = vld [vmem:[#allocation17 + $0x80] sm:$0xff]
          %v2530 = vld [vmem:[#allocation17 + $0x88] sm:$0xff]
          %v2531 = vld [vmem:[#allocation17 + $0x90] sm:$0xff]
          %v2532 = vld [vmem:[#allocation17 + $0x98] sm:$0xff]
          %v2533 = vld [vmem:[#allocation17 + $0xa0] sm:$0xff]
          %v2534 = vld [vmem:[#allocation17 + $0xa8] sm:$0xff]
          %v2535 = vld [vmem:[#allocation17 + $0xb0] sm:$0xff]
          %v2536 = vld [vmem:[#allocation17 + $0xb8] sm:$0xff]
          %v2537 = vld [vmem:[#allocation17 + $0xc0] sm:$0xff]
          %v2538 = vld [vmem:[#allocation17 + $0xc8] sm:$0xff]
          %v2539 = vld [vmem:[#allocation17 + $0xd0] sm:$0xff]
          %v2540 = vld [vmem:[#allocation17 + $0xd8] sm:$0xff]
          %v2541 = vld [vmem:[#allocation17 + $0xe0] sm:$0xff]
          %v2542 = vld [vmem:[#allocation17 + $0xe8] sm:$0xff]
          %v2543 = vld [vmem:[#allocation17 + $0xf0] sm:$0xff]
          %v2544 = vld [vmem:[#allocation17 + $0xf8] sm:$0xff]
          %v2545 = vld [vmem:[#allocation17 + $0x100] sm:$0xff]
          %v2546 = vld [vmem:[#allocation17 + $0x108] sm:$0xff]
          %v2547 = vld [vmem:[#allocation17 + $0x110] sm:$0xff]
          %v2548 = vld [vmem:[#allocation17 + $0x118] sm:$0xff]
          %v2549 = vld [vmem:[#allocation17 + $0x120] sm:$0xff]
          %v2550 = vld [vmem:[#allocation17 + $0x128] sm:$0xff]
          %v2551 = vld [vmem:[#allocation17 + $0x130] sm:$0xff]
          %v2552 = vld [vmem:[#allocation17 + $0x138] sm:$0xff]
          %v2553 = vld [vmem:[#allocation17 + $0x140] sm:$0xff]
          %v2554 = vld [vmem:[#allocation17 + $0x148] sm:$0xff]
          %v2555 = vld [vmem:[#allocation17 + $0x150] sm:$0xff]
          %v2556 = vld [vmem:[#allocation17 + $0x158] sm:$0xff]
          %v2557 = vld [vmem:[#allocation17 + $0x160] sm:$0xff]
          %v2558 = vld [vmem:[#allocation17 + $0x168] sm:$0xff]
          %v2559 = vld [vmem:[#allocation17 + $0x170] sm:$0xff]
          %v2560 = vld [vmem:[#allocation17 + $0x178] sm:$0xff]
          %v2561 = vld [vmem:[#allocation17 + $0x180] sm:$0xff]
          %v2562 = vld [vmem:[#allocation17 + $0x188] sm:$0xff]
          %v2563 = vld [vmem:[#allocation17 + $0x190] sm:$0xff]
          %v2564 = vld [vmem:[#allocation17 + $0x198] sm:$0xff]
          %v2565 = vld [vmem:[#allocation17 + $0x1a0] sm:$0xff]
          %v2566 = vld [vmem:[#allocation17 + $0x1a8] sm:$0xff]
          %v2567 = vld [vmem:[#allocation17 + $0x1b0] sm:$0xff]
          %v2568 = vld [vmem:[#allocation17 + $0x1b8] sm:$0xff]
          %v2569 = vld [vmem:[#allocation17 + $0x1c0] sm:$0xff]
          %v2570 = vld [vmem:[#allocation17 + $0x1c8] sm:$0xff]
          %v2571 = vld [vmem:[#allocation17 + $0x1d0] sm:$0xff]
          %v2572 = vld [vmem:[#allocation17 + $0x1d8] sm:$0xff]
          %v2573 = vld [vmem:[#allocation17 + $0x1e0] sm:$0xff]
          %v2574 = vld [vmem:[#allocation17 + $0x1e8] sm:$0xff]
          %v2575 = vld [vmem:[#allocation17 + $0x1f0] sm:$0xff]
          %v2576 = vld [vmem:[#allocation17 + $0x1f8] sm:$0xff]
          %v2577 = vld [vmem:[#allocation17 + $0x200] sm:$0xff]
          %v2578 = vld [vmem:[#allocation17 + $0x208] sm:$0xff]
          %v2579 = vld [vmem:[#allocation17 + $0x210] sm:$0xff]
          %v2580 = vld [vmem:[#allocation17 + $0x218] sm:$0xff]
          %v2581 = vld [vmem:[#allocation17 + $0x220] sm:$0xff]
          %v2582 = vld [vmem:[#allocation17 + $0x228] sm:$0xff]
          %v2583 = vld [vmem:[#allocation17 + $0x230] sm:$0xff]
          %v2584 = vld [vmem:[#allocation17 + $0x238] sm:$0xff]
          %v2585 = vld [vmem:[#allocation17 + $0x240] sm:$0xff]
          %v2586 = vld [vmem:[#allocation17 + $0x248] sm:$0xff]
          %v2587 = vld [vmem:[#allocation17 + $0x250] sm:$0xff]
          %v2588 = vld [vmem:[#allocation17 + $0x258] sm:$0xff]
          %v2589 = vld [vmem:[#allocation17 + $0x260] sm:$0xff]
          %v2590 = vld [vmem:[#allocation17 + $0x268] sm:$0xff]
          %v2591 = vld [vmem:[#allocation17 + $0x270] sm:$0xff]
          %v2592 = vld [vmem:[#allocation17 + $0x278] sm:$0xff]
          %v2593 = vld [vmem:[#allocation17 + $0x280] sm:$0xff]
          %v2594 = vld [vmem:[#allocation17 + $0x288] sm:$0xff]
          %v2595 = vld [vmem:[#allocation17 + $0x290] sm:$0xff]
          %v2596 = vld [vmem:[#allocation17 + $0x298] sm:$0xff]
          %v2597 = vld [vmem:[#allocation17 + $0x2a0] sm:$0xff]
          %v2598 = vld [vmem:[#allocation17 + $0x2a8] sm:$0xff]
          %v2599 = vld [vmem:[#allocation17 + $0x2b0] sm:$0xff]
          %v2600 = vld [vmem:[#allocation17 + $0x2b8] sm:$0xff]
          %v2601 = vld [vmem:[#allocation17 + $0x2c0] sm:$0xff]
          %v2602 = vld [vmem:[#allocation17 + $0x2c8] sm:$0xff]
          %v2603 = vld [vmem:[#allocation17 + $0x2d0] sm:$0xff]
          %v2604 = vld [vmem:[#allocation17 + $0x2d8] sm:$0xff]
          %v2605 = vld [vmem:[#allocation17 + $0x2e0] sm:$0xff]
          %v2606 = vld [vmem:[#allocation17 + $0x2e8] sm:$0xff]
          %v2607 = vld [vmem:[#allocation17 + $0x2f0] sm:$0xff]
          %v2608 = vld [vmem:[#allocation17 + $0x2f8] sm:$0xff]
          %v2609 = vld [vmem:[#allocation17 + $0x300] sm:$0xff]
          %v2610 = vld [vmem:[#allocation17 + $0x308] sm:$0xff]
          %v2611 = vld [vmem:[#allocation17 + $0x310] sm:$0xff]
          %v2612 = vld [vmem:[#allocation17 + $0x318] sm:$0xff]
          %v2613 = vld [vmem:[#allocation17 + $0x320] sm:$0xff]
          %v2614 = vld [vmem:[#allocation17 + $0x328] sm:$0xff]
          %v2615 = vld [vmem:[#allocation17 + $0x330] sm:$0xff]
          %v2616 = vld [vmem:[#allocation17 + $0x338] sm:$0xff]
          %v2617 = vld [vmem:[#allocation17 + $0x340] sm:$0xff]
          %v2618 = vld [vmem:[#allocation17 + $0x348] sm:$0xff]
          %v2619 = vld [vmem:[#allocation17 + $0x350] sm:$0xff]
          %v2620 = vld [vmem:[#allocation17 + $0x358] sm:$0xff]
          %v2621 = vld [vmem:[#allocation17 + $0x360] sm:$0xff]
          %v2622 = vld [vmem:[#allocation17 + $0x368] sm:$0xff]
          %v2623 = vld [vmem:[#allocation17 + $0x370] sm:$0xff]
          %v2624 = vld [vmem:[#allocation17 + $0x378] sm:$0xff]
          %v2625 = vld [vmem:[#allocation17 + $0x380] sm:$0xff]
          %v2626 = vld [vmem:[#allocation17 + $0x388] sm:$0xff]
          %v2627 = vld [vmem:[#allocation17 + $0x390] sm:$0xff]
          %v2628 = vld [vmem:[#allocation17 + $0x398] sm:$0xff]
          %v2629 = vld [vmem:[#allocation17 + $0x3a0] sm:$0xff]
          %v2630 = vld [vmem:[#allocation17 + $0x3a8] sm:$0xff]
          %v2631 = vld [vmem:[#allocation17 + $0x3b0] sm:$0xff]
          %v2632 = vld [vmem:[#allocation17 + $0x3b8] sm:$0xff]
          %v2633 = vld [vmem:[#allocation17 + $0x3c0] sm:$0xff]
          %v2634 = vld [vmem:[#allocation17 + $0x3c8] sm:$0xff]
          %v2635 = vld [vmem:[#allocation17 + $0x3d0] sm:$0xff]
          %v2636 = vld [vmem:[#allocation17 + $0x3d8] sm:$0xff]
          %v2637 = vld [vmem:[#allocation17 + $0x3e0] sm:$0xff]
          %v2638 = vld [vmem:[#allocation17 + $0x3e8] sm:$0xff]
          %v2639 = vld [vmem:[#allocation17 + $0x3f0] sm:$0xff]
          %v2640 = vld [vmem:[#allocation17 + $0x3f8] sm:$0xff]
          %v2641 = vld [vmem:[#allocation18] sm:$0x3]
          %v2643 = vlaneseq
          %v2644 = vshrl.u32 %v2643, 7
          %v2645 = vsub.s32 0, %v2644
          %v2646 = vrot.slane %v2641, %v2645
          %v2647 = vlaneseq
          %v2648 = vshrl.u32 %v2647, 7
          %v2649 = vsub.s32 1, %v2648
          %v2650 = vrot.slane %v2641, %v2649
          %2653 = vmatprep.subr.mxu0 %v2514
          %2654 = vmatpush1.msra.mxu0 %v2513
          %2655 = vmatprep.subr.mxu0 %v2516
          %2656 = vmatpush1.msra.mxu0 %v2515
          %2657 = vmatprep.subr.mxu0 %v2518
          %2658 = vmatpush1.msra.mxu0 %v2517
          %2659 = vmatprep.subr.mxu0 %v2520
          %2660 = vmatpush1.msra.mxu0 %v2519
          %2661 = vmatprep.subr.mxu0 %v2522
          %2662 = vmatpush1.msra.mxu0 %v2521
          %2663 = vmatprep.subr.mxu0 %v2524
          %2664 = vmatpush1.msra.mxu0 %v2523
          %2665 = vmatprep.subr.mxu0 %v2526
          %2666 = vmatpush1.msra.mxu0 %v2525
          %2667 = vmatprep.subr.mxu0 %v2528
          %2668 = vmatpush1.msra.mxu0 %v2527
          %2669 = vmatprep.subr.mxu0 %v2530
          %2670 = vmatpush1.msra.mxu0 %v2529
          %2671 = vmatprep.subr.mxu0 %v2532
          %2672 = vmatpush1.msra.mxu0 %v2531
          %2673 = vmatprep.subr.mxu0 %v2534
          %2674 = vmatpush1.msra.mxu0 %v2533
          %2675 = vmatprep.subr.mxu0 %v2536
          %2676 = vmatpush1.msra.mxu0 %v2535
          %2677 = vmatprep.subr.mxu0 %v2538
          %2678 = vmatpush1.msra.mxu0 %v2537
          %2679 = vmatprep.subr.mxu0 %v2540
          %2680 = vmatpush1.msra.mxu0 %v2539
          %2681 = vmatprep.subr.mxu0 %v2542
          %2682 = vmatpush1.msra.mxu0 %v2541
          %2683 = vmatprep.subr.mxu0 %v2544
          %2684 = vmatpush1.msra.mxu0 %v2543
          %2685 = vmatprep.subr.mxu0 %v2546
          %2686 = vmatpush1.msra.mxu0 %v2545
          %2687 = vmatprep.subr.mxu0 %v2548
          %2688 = vmatpush1.msra.mxu0 %v2547
          %2689 = vmatprep.subr.mxu0 %v2550
          %2690 = vmatpush1.msra.mxu0 %v2549
          %2691 = vmatprep.subr.mxu0 %v2552
          %2692 = vmatpush1.msra.mxu0 %v2551
          %2693 = vmatprep.subr.mxu0 %v2554
          %2694 = vmatpush1.msra.mxu0 %v2553
          %2695 = vmatprep.subr.mxu0 %v2556
          %2696 = vmatpush1.msra.mxu0 %v2555
          %2697 = vmatprep.subr.mxu0 %v2558
          %2698 = vmatpush1.msra.mxu0 %v2557
          %2699 = vmatprep.subr.mxu0 %v2560
          %2700 = vmatpush1.msra.mxu0 %v2559
          %2701 = vmatprep.subr.mxu0 %v2562
          %2702 = vmatpush1.msra.mxu0 %v2561
          %2703 = vmatprep.subr.mxu0 %v2564
          %2704 = vmatpush1.msra.mxu0 %v2563
          %2705 = vmatprep.subr.mxu0 %v2566
          %2706 = vmatpush1.msra.mxu0 %v2565
          %2707 = vmatprep.subr.mxu0 %v2568
          %2708 = vmatpush1.msra.mxu0 %v2567
          %2709 = vmatprep.subr.mxu0 %v2570
          %2710 = vmatpush1.msra.mxu0 %v2569
          %2711 = vmatprep.subr.mxu0 %v2572
          %2712 = vmatpush1.msra.mxu0 %v2571
          %2713 = vmatprep.subr.mxu0 %v2574
          %2714 = vmatpush1.msra.mxu0 %v2573
          %2715 = vmatprep.subr.mxu0 %v2576
          %2716 = vmatpush1.msra.mxu0 %v2575
          %2717 = vmatprep.mubr.f32.mxu0 %v2510
          %2718 = vmatmul.mubr.f32.gmra.mrb[0].mxu0 %v2509
          %v2719 = vpop.f32.mrb[0].mxu0
          %v2720 = vadd.f32 %v2646, %v2719
          %v2721 = vpop.f32.mrb[0].mxu0
          %v2722 = vadd.f32 %v2650, %v2721
          %2723 = vdwg.mxu0
          %2724 = vmatprep.subr.mxu0 %v2578
          %2725 = vmatpush1.msra.mxu0 %v2577
          %2726 = vmatprep.subr.mxu0 %v2580
          %2727 = vmatpush1.msra.mxu0 %v2579
          %2728 = vmatprep.subr.mxu0 %v2582
          %2729 = vmatpush1.msra.mxu0 %v2581
          %2730 = vmatprep.subr.mxu0 %v2584
          %2731 = vmatpush1.msra.mxu0 %v2583
          %2732 = vmatprep.subr.mxu0 %v2586
          %2733 = vmatpush1.msra.mxu0 %v2585
          %2734 = vmatprep.subr.mxu0 %v2588
          %2735 = vmatpush1.msra.mxu0 %v2587
          %2736 = vmatprep.subr.mxu0 %v2590
          %2737 = vmatpush1.msra.mxu0 %v2589
          %2738 = vmatprep.subr.mxu0 %v2592
          %2739 = vmatpush1.msra.mxu0 %v2591
          %2740 = vmatprep.subr.mxu0 %v2594
          %2741 = vmatpush1.msra.mxu0 %v2593
          %2742 = vmatprep.subr.mxu0 %v2596
          %2743 = vmatpush1.msra.mxu0 %v2595
          %2744 = vmatprep.subr.mxu0 %v2598
          %2745 = vmatpush1.msra.mxu0 %v2597
          %2746 = vmatprep.subr.mxu0 %v2600
          %2747 = vmatpush1.msra.mxu0 %v2599
          %2748 = vmatprep.subr.mxu0 %v2602
          %2749 = vmatpush1.msra.mxu0 %v2601
          %2750 = vmatprep.subr.mxu0 %v2604
          %2751 = vmatpush1.msra.mxu0 %v2603
          %2752 = vmatprep.subr.mxu0 %v2606
          %2753 = vmatpush1.msra.mxu0 %v2605
          %2754 = vmatprep.subr.mxu0 %v2608
          %2755 = vmatpush1.msra.mxu0 %v2607
          %2756 = vmatprep.subr.mxu0 %v2610
          %2757 = vmatpush1.msra.mxu0 %v2609
          %2758 = vmatprep.subr.mxu0 %v2612
          %2759 = vmatpush1.msra.mxu0 %v2611
          %2760 = vmatprep.subr.mxu0 %v2614
          %2761 = vmatpush1.msra.mxu0 %v2613
          %2762 = vmatprep.subr.mxu0 %v2616
          %2763 = vmatpush1.msra.mxu0 %v2615
          %2764 = vmatprep.subr.mxu0 %v2618
          %2765 = vmatpush1.msra.mxu0 %v2617
          %2766 = vmatprep.subr.mxu0 %v2620
          %2767 = vmatpush1.msra.mxu0 %v2619
          %2768 = vmatprep.subr.mxu0 %v2622
          %2769 = vmatpush1.msra.mxu0 %v2621
          %2770 = vmatprep.subr.mxu0 %v2624
          %2771 = vmatpush1.msra.mxu0 %v2623
          %2772 = vmatprep.subr.mxu0 %v2626
          %2773 = vmatpush1.msra.mxu0 %v2625
          %2774 = vmatprep.subr.mxu0 %v2628
          %2775 = vmatpush1.msra.mxu0 %v2627
          %2776 = vmatprep.subr.mxu0 %v2630
          %2777 = vmatpush1.msra.mxu0 %v2629
          %2778 = vmatprep.subr.mxu0 %v2632
          %2779 = vmatpush1.msra.mxu0 %v2631
          %2780 = vmatprep.subr.mxu0 %v2634
          %2781 = vmatpush1.msra.mxu0 %v2633
          %2782 = vmatprep.subr.mxu0 %v2636
          %2783 = vmatpush1.msra.mxu0 %v2635
          %2784 = vmatprep.subr.mxu0 %v2638
          %2785 = vmatpush1.msra.mxu0 %v2637
          %2786 = vmatprep.subr.mxu0 %v2640
          %2787 = vmatpush1.msra.mxu0 %v2639
          %2788 = vmatprep.mubr.f32.mxu0 %v2512
          %2789 = vmatmul.mubr.f32.gmra.mrb[0].mxu0 %v2511
          %v2790 = vpop.f32.mrb[0].mxu0
          %v2791 = vadd.f32 %v2720, %v2790
          %v2792 = vpop.f32.mrb[0].mxu0
          %v2793 = vadd.f32 %v2722, %v2792
          %2794 = vdwg.mxu0
          %v2795 = vmax.f32 %v2791, 0.0
          %v2796 = vmax.f32 %v2793, 0.0
          %v2797 = vld [vmem:[%s11] sm:$0xff]
          %v2798 = vld [vmem:[%s11 + $0x8] sm:$0xff]
          %v2799 = vld [vmem:[%s11 + $0x10] sm:$0xff]
          %v2800 = vld [vmem:[%s11 + $0x18] sm:$0xff]
          %v2801 = vld [vmem:[%s11 + $0x20] sm:$0xff]
          %v2802 = vld [vmem:[%s11 + $0x28] sm:$0xff]
          %v2803 = vld [vmem:[%s11 + $0x30] sm:$0xff]
          %v2804 = vld [vmem:[%s11 + $0x38] sm:$0xff]
          %v2805 = vld [vmem:[%s11 + $0x40] sm:$0xff]
          %v2806 = vld [vmem:[%s11 + $0x48] sm:$0xff]
          %v2807 = vld [vmem:[%s11 + $0x50] sm:$0xff]
          %v2808 = vld [vmem:[%s11 + $0x58] sm:$0xff]
          %v2809 = vld [vmem:[%s11 + $0x60] sm:$0xff]
          %v2810 = vld [vmem:[%s11 + $0x68] sm:$0xff]
          %v2811 = vld [vmem:[%s11 + $0x70] sm:$0xff]
          %v2812 = vld [vmem:[%s11 + $0x78] sm:$0xff]
          %v2813 = vld [vmem:[%s11 + $0x80] sm:$0xff]
          %v2814 = vld [vmem:[%s11 + $0x88] sm:$0xff]
          %v2815 = vld [vmem:[%s11 + $0x90] sm:$0xff]
          %v2816 = vld [vmem:[%s11 + $0x98] sm:$0xff]
          %v2817 = vld [vmem:[%s11 + $0xa0] sm:$0xff]
          %v2818 = vld [vmem:[%s11 + $0xa8] sm:$0xff]
          %v2819 = vld [vmem:[%s11 + $0xb0] sm:$0xff]
          %v2820 = vld [vmem:[%s11 + $0xb8] sm:$0xff]
          %v2821 = vld [vmem:[%s11 + $0xc0] sm:$0xff]
          %v2822 = vld [vmem:[%s11 + $0xc8] sm:$0xff]
          %v2823 = vld [vmem:[%s11 + $0xd0] sm:$0xff]
          %v2824 = vld [vmem:[%s11 + $0xd8] sm:$0xff]
          %v2825 = vld [vmem:[%s11 + $0xe0] sm:$0xff]
          %v2826 = vld [vmem:[%s11 + $0xe8] sm:$0xff]
          %v2827 = vld [vmem:[%s11 + $0xf0] sm:$0xff]
          %v2828 = vld [vmem:[%s11 + $0xf8] sm:$0xff]
          %v2829 = vld [vmem:[#allocation20] sm:$0x1]
          %2830 = vmatprep.subr.mxu0 0.0
          %2831 = vmatpush1.msra.mxu0 %v2797
          %2832 = vmatprep.subr.mxu0 0.0
          %2833 = vmatpush1.msra.mxu0 %v2798
          %2834 = vmatprep.subr.mxu0 0.0
          %2835 = vmatpush1.msra.mxu0 %v2799
          %2836 = vmatprep.subr.mxu0 0.0
          %2837 = vmatpush1.msra.mxu0 %v2800
          %2838 = vmatprep.subr.mxu0 0.0
          %2839 = vmatpush1.msra.mxu0 %v2801
          %2840 = vmatprep.subr.mxu0 0.0
          %2841 = vmatpush1.msra.mxu0 %v2802
          %2842 = vmatprep.subr.mxu0 0.0
          %2843 = vmatpush1.msra.mxu0 %v2803
          %2844 = vmatprep.subr.mxu0 0.0
          %2845 = vmatpush1.msra.mxu0 %v2804
          %2846 = vmatprep.subr.mxu0 0.0
          %2847 = vmatpush1.msra.mxu0 %v2805
          %2848 = vmatprep.subr.mxu0 0.0
          %2849 = vmatpush1.msra.mxu0 %v2806
          %2850 = vmatprep.subr.mxu0 0.0
          %2851 = vmatpush1.msra.mxu0 %v2807
          %2852 = vmatprep.subr.mxu0 0.0
          %2853 = vmatpush1.msra.mxu0 %v2808
          %2854 = vmatprep.subr.mxu0 0.0
          %2855 = vmatpush1.msra.mxu0 %v2809
          %2856 = vmatprep.subr.mxu0 0.0
          %2857 = vmatpush1.msra.mxu0 %v2810
          %2858 = vmatprep.subr.mxu0 0.0
          %2859 = vmatpush1.msra.mxu0 %v2811
          %2860 = vmatprep.subr.mxu0 0.0
          %2861 = vmatpush1.msra.mxu0 %v2812
          %2862 = vmatprep.subr.mxu0 0.0
          %2863 = vmatpush1.msra.mxu0 %v2813
          %2864 = vmatprep.subr.mxu0 0.0
          %2865 = vmatpush1.msra.mxu0 %v2814
          %2866 = vmatprep.subr.mxu0 0.0
          %2867 = vmatpush1.msra.mxu0 %v2815
          %2868 = vmatprep.subr.mxu0 0.0
          %2869 = vmatpush1.msra.mxu0 %v2816
          %2870 = vmatprep.subr.mxu0 0.0
          %2871 = vmatpush1.msra.mxu0 %v2817
          %2872 = vmatprep.subr.mxu0 0.0
          %2873 = vmatpush1.msra.mxu0 %v2818
          %2874 = vmatprep.subr.mxu0 0.0
          %2875 = vmatpush1.msra.mxu0 %v2819
          %2876 = vmatprep.subr.mxu0 0.0
          %2877 = vmatpush1.msra.mxu0 %v2820
          %2878 = vmatprep.subr.mxu0 0.0
          %2879 = vmatpush1.msra.mxu0 %v2821
          %2880 = vmatprep.subr.mxu0 0.0
          %2881 = vmatpush1.msra.mxu0 %v2822
          %2882 = vmatprep.subr.mxu0 0.0
          %2883 = vmatpush1.msra.mxu0 %v2823
          %2884 = vmatprep.subr.mxu0 0.0
          %2885 = vmatpush1.msra.mxu0 %v2824
          %2886 = vmatprep.subr.mxu0 0.0
          %2887 = vmatpush1.msra.mxu0 %v2825
          %2888 = vmatprep.subr.mxu0 0.0
          %2889 = vmatpush1.msra.mxu0 %v2826
          %2890 = vmatprep.subr.mxu0 0.0
          %2891 = vmatpush1.msra.mxu0 %v2827
          %2892 = vmatprep.subr.mxu0 0.0
          %2893 = vmatpush1.msra.mxu0 %v2828
          %2894 = vmatprep.mubr.f32.mxu0 %v2796
          %2895 = vmatmul.mubr.f32.gmra.mrb[0].mxu0 %v2795
          %v2896 = vpop.f32.mrb[0].mxu0
          %v2897 = vadd.f32 %v2829, %v2896
          %v2898 = vpop.f32.mrb[0].mxu0
          %2899 = vdwg.mxu0
          %v2900 = vlaneseq
          %v2901 = vand.u32 %v2900, 127
          %vm2902 = vcmp.lt.s32.totalorder %v2901, 0
          %v2903 = vsub.s32 0, %v2901
          %v2904 = vsel %vm2902, %v2903, %v2901
          %v2905 = vshrl.u32 %v2904, 2
          %v2906 = vand.u32 %v2904, 3
          %v2907 = vsub.s32 0, %v2906
          %v2908 = vsel %vm2902, %v2907, %v2906
          %vm2909 = vcmp.ne.s32.totalorder %v2908, 0
          %vm2910 = vcmp.lt.s32.totalorder %v2908, 0
          %vm2911 = vmand %vm2910, %vm2909
          %v2912 = vadd.s32 %v2908, 4
          %v2913 = vsel %vm2911, %v2912, %v2908
          %vm2914 = vcmp.eq.s32.totalorder %v2913, 0
          %v2915 = vsel %vm2914, 1.0, 0.0
          %v2916 = vadd.f32 %v2897, %v2915
          %vm2917 = vcmask 65536
          %2918 = vst.msk [vmem:[%s598] sm:$0x1] %vm2917, %v2916
        $region124: #{tpu_custom_call.1} parent=71 // pred_fallthru
          _
        %s2919 = sand.u32 %s333, 1
        %s2920 = scalar_lea.sflag [#allocation5], %s2919
        %s2921 = sand.u32 %s333, 1
        %s2922 = scalar_lea.vmem [#allocation21], %s2921
        // Predicated region
        $region125: #{tpu_custom_call.1} parent=71 // pred_check
          %p2923 = pneg %p343
        $region126: #{tpu_custom_call.1} parent=71 // pred_check_branch
          %2925 = sbr.rel (%p2923) target = $region128
        $region127: #{tpu_custom_call.1} parent=71 // pred_region
          %s2927 = ssub.s32 16, 16
          %2928 = vsyncadd %s2920, %s2927
          %s2929 = smul.addr %s37, 16
          %s2930 = scalar_lea.hbm %s13, %s2929
          %s2932 = sshll.u32 %s2922, 4
          %s2933 = int_to_ptr.vmem [resolvable:$true] %s2932
          %2935 = dma.vmem_to_hbm [thread:$0]  %s2933, 16, %s2930, %s2920
        $region128: #{tpu_custom_call.1} parent=71 // pred_fallthru
          _
      $region72: #{tpu_custom_call.1} parent=5 // pred_fallthru
        _
      %p2936 = scmp.le.s32.totalorder 2, %s28
      // Predicated region
      $region129: #{tpu_custom_call.1} parent=5 // pred_check
        %p2937 = pneg %p2936
      $region130: #{tpu_custom_call.1} parent=5 // pred_check_branch
        %2939 = sbr.rel (%p2937) target = $region132
      $region131: #{tpu_custom_call.1} parent=5 // pred_region
        %s2940 = ssub.s32 %s28, 2
        // Predicated region
        $region133: #{tpu_custom_call.1} parent=131 // pred_check
          %p2941 = pneg %p349
        $region134: #{tpu_custom_call.1} parent=131 // pred_check_branch
          %2943 = sbr.rel (%p2941) target = $region136
        $region135: #{tpu_custom_call.1} parent=131 // pred_region
          %s2944 = sand.u32 %s334, 1
          %s2945 = scalar_lea.sflag [#allocation5], %s2944
          %s2946 = sand.u32 %s334, 1
          %s2947 = scalar_lea.vmem [#allocation21], %s2946
          %2948 = dma.done %s2945, 16
        $region136: #{tpu_custom_call.1} parent=131 // pred_fallthru
          _
      $region132: #{tpu_custom_call.1} parent=5 // pred_fallthru
        _
    $region6: #{tpu_custom_call.1} parent=1 // loop_footer
      %s32 = sadd.s32 1, %s28
    $region7: #{tpu_custom_call.1} parent=1 // loop_footer_branch
      %27 = sbr.rel target = $region3
    $region8: #{tpu_custom_call.1} parent=1 // loop_exit
      _
    %2949 = vsyncpa [#allocation4], 1
    %s2950 = scalar_lea.sflag [#allocation4], 1
    %2951 = vsyncpa %s2950, 1
    %2952 = vsyncpa [#allocation7], 1
    %2953 = vsyncpa [#allocation10], 1
    %2954 = vsyncpa [#allocation13], 1
    %2955 = vsyncpa [#allocation16], 1
    %2956 = vsyncpa [#allocation19], 1
    %2957 = vsyncpa [#allocation5], 1
    %s2958 = scalar_lea.sflag [#allocation5], 1
    %2959 = vsyncpa %s2958, 1

</llo_original>
